<compile_context>
chip_gen: v5e
topology: v5e:2x2
jax: 0.10.0
libtpu: 0.0.40
codegen_flags: <defaults>
</compile_context>

<pallas_src>
import jax
import jax.numpy as jnp
from jax.experimental import pallas as pl
from jax.experimental.pallas import tpu as pltpu

_EPS = 1e-5
_HIGH = jax.lax.Precision.HIGHEST


def _band_weights(w_hwio, W):
    """(3,3,Ci,Co) HWIO -> (3, W*Ci, W*Co) banded matrices.

    band[dy][x_src*Ci + ci, x_out*Co + co] = w[dy, x_src - x_out + 1, ci, co]
    (zero outside the 3-tap band), so one conv row == one lane-dense matmul per dy.
    Wrapper-side weight preprocessing on tiny arrays.
    """
    _, _, Ci, Co = w_hwio.shape
    xs = jnp.arange(W)
    # Cross-correlation, pad=1: source x_src contributes to output x_out with kernel
    # index kx = x_src - x_out + 1 (valid when 0 <= kx <= 2).
    dx = xs[:, None] - xs[None, :] + 1                        # (x_src, x_out) -> kx
    valid = ((dx >= 0) & (dx <= 2)).astype(w_hwio.dtype)
    dxc = jnp.clip(dx, 0, 2)
    bands = []
    for dy in range(3):
        g = w_hwio[dy][dxc] * valid[:, :, None, None]         # (x_src, x_out, Ci, Co)
        g = jnp.transpose(g, (0, 2, 1, 3)).reshape(W * Ci, W * Co)
        bands.append(g)
    return jnp.stack(bands)                                   # (3, W*Ci, W*Co)


def basic_block_kernel(x_ref, g1_ref, b1_ref, g2_ref, b2_ref, a_ref,
                       wb1_ref, wb2_ref, sp_ref, sn_ref, o_ref):
    x = x_ref[...]                                            # (R, L) f32, R=N*H, L=W*C
    A = a_ref[...]                                            # (L, L) f32: channel avg

    def bn_relu(h, gamma, beta):
        # One-pass stats: per-lane sums over rows, then channel reduce + lane-broadcast
        # in a single constant matmul (A already folds the 1/(N*H*W) normalization).
        s1 = jnp.sum(h, axis=0, keepdims=True)                # (1, L)
        s2 = jnp.sum(h * h, axis=0, keepdims=True)            # (1, L)
        m = jnp.dot(s1, A, precision=_HIGH,
                    preferred_element_type=jnp.float32)       # per-channel mean
        ex2 = jnp.dot(s2, A, precision=_HIGH,
                      preferred_element_type=jnp.float32)     # per-channel E[x^2]
        var = ex2 - m * m                                     # biased variance
        scale = gamma * jax.lax.rsqrt(var + _EPS)             # (1, L)
        shift = beta - m * scale
        return jnp.maximum(h * scale + shift, 0.0)            # fused affine + ReLU

    def conv3x3(h, wb_ref):
        # Row shifts (y-taps, with image-boundary masking) via tiny 0/1 matmuls;
        # x-taps + channel mixing live inside the banded (L, L) matrices.
        h_up = jnp.dot(sp_ref[...], h, precision=_HIGH,
                       preferred_element_type=jnp.float32)    # h[row-1] (or 0)
        h_dn = jnp.dot(sn_ref[...], h, precision=_HIGH,
                       preferred_element_type=jnp.float32)    # h[row+1] (or 0)
        out = jnp.dot(h_up, wb_ref[0], precision=_HIGH,
                      preferred_element_type=jnp.float32)
        out = out + jnp.dot(h, wb_ref[1], precision=_HIGH,
                            preferred_element_type=jnp.float32)
        out = out + jnp.dot(h_dn, wb_ref[2], precision=_HIGH,
                            preferred_element_type=jnp.float32)
        return out

    h = bn_relu(x, g1_ref[...], b1_ref[...])                  # relu1(bn1(x))
    h = conv3x3(h, wb1_ref)                                   # conv1
    h = bn_relu(h, g2_ref[...], b2_ref[...])                  # relu2(bn2(.))
    h = conv3x3(h, wb2_ref)                                   # conv2
    o_ref[...] = (x + h).astype(o_ref.dtype)                  # residual (equalInOut)


def basic_block_forward(x_nchw, params):
    """Wrapper: NCHW in/out (PyTorch convention); (N*H, W*C) lane-dense inside."""
    g1, b1, w1, g2, b2, w2 = params                           # w*: (Co, Ci, 3, 3) OIHW
    N, C, H, W = x_nchw.shape
    R, L = N * H, W * C

    # Layout glue (would be hoisted across blocks in a real network).
    x = jnp.transpose(x_nchw, (0, 2, 3, 1)).reshape(R, L)

    # Weight preprocessing (tiny): OIHW -> HWIO -> banded matrices, f32.
    wb1 = _band_weights(jnp.transpose(w1, (2, 3, 1, 0)), W).astype(jnp.float32)
    wb2 = _band_weights(jnp.transpose(w2, (2, 3, 1, 0)), W).astype(jnp.float32)

    # Channel-average matrix (reduce over W positions + broadcast back, folds 1/(N*H*W)).
    lane = jnp.arange(L)
    A = ((lane[:, None] % C) == (lane[None, :] % C)).astype(jnp.float32) / float(N * H * W)

    # Row-shift matrices over the folded (n, y) row index; they also zero contributions
    # that would cross an image boundary in y (i.e. the zero padding rows).
    r = jnp.arange(R)
    y = r % H
    sp = ((r[:, None] - 1 == r[None, :]) & (y[:, None] != 0)).astype(jnp.float32)
    sn = ((r[:, None] + 1 == r[None, :]) & (y[:, None] != H - 1)).astype(jnp.float32)

    # Per-channel affine params tiled to lane layout (lane l -> channel l % C).
    g1l = jnp.tile(g1, W).reshape(1, L)
    b1l = jnp.tile(b1, W).reshape(1, L)
    g2l = jnp.tile(g2, W).reshape(1, L)
    b2l = jnp.tile(b2, W).reshape(1, L)

    out = pl.pallas_call(
        basic_block_kernel,
        out_shape=jax.ShapeDtypeStruct((R, L), x.dtype),
        in_specs=[pl.BlockSpec(memory_space=pltpu.MemorySpace.VMEM)] * 10,
        out_specs=pl.BlockSpec(memory_space=pltpu.MemorySpace.VMEM),
        compiler_params=pltpu.CompilerParams(vmem_limit_bytes=64 * 1024 * 1024),
    )(x, g1l, b1l, g2l, b2l, A, wb1, wb2, sp, sn)

    return jnp.transpose(out.reshape(N, H, W, C), (0, 3, 1, 2))  # -> NCHW


def reference_forward(x, params):
    """Pure-JAX f32 reference (NCHW), mirrors the PyTorch forward for this config."""
    g1, b1, w1, g2, b2, w2 = params

    def bn_relu(t, g, b):
        mean = jnp.mean(t, axis=(0, 2, 3), keepdims=True)
        var = jnp.mean((t - mean) ** 2, axis=(0, 2, 3), keepdims=True)
        y = (t - mean) / jnp.sqrt(var + _EPS) * g.reshape(1, -1, 1, 1) + b.reshape(1, -1, 1, 1)
        return jnp.maximum(y, 0.0)

    def conv(t, w):
        return jax.lax.conv_general_dilated(
            t, w, window_strides=(1, 1), padding="SAME",
            dimension_numbers=("NCHW", "OIHW", "NCHW"))

    out = bn_relu(x, g1, b1)
    out = conv(out, w1)
    out = bn_relu(out, g2, b2)
    out = conv(out, w2)
    return x + out


if __name__ == "__main__":
    N, C, H, W = 2, 8, 16, 16                                 # in_planes == out_planes == 8
    key = jax.random.PRNGKey(0)
    kx, kw1, kw2, kg1, kb1, kg2, kb2 = jax.random.split(key, 7)

    x = jax.random.normal(kx, (N, C, H, W), jnp.float32)

    fan_in = C * 3 * 3
    std = (2.0 / fan_in) ** 0.5
    w1 = std * jax.random.normal(kw1, (C, C, 3, 3), jnp.float32)   # conv1 weight (OIHW)
    w2 = std * jax.random.normal(kw2, (C, C, 3, 3), jnp.float32)   # conv2 weight (OIHW)
    g1 = 1.0 + 0.1 * jax.random.normal(kg1, (C,), jnp.float32)     # bn1 gamma
    b1 = 0.1 * jax.random.normal(kb1, (C,), jnp.float32)           # bn1 beta
    g2 = 1.0 + 0.1 * jax.random.normal(kg2, (C,), jnp.float32)     # bn2 gamma
    b2 = 0.1 * jax.random.normal(kb2, (C,), jnp.float32)           # bn2 beta
    params = (g1, b1, w1, g2, b2, w2)

    out = basic_block_forward(x, params)
    out = jax.block_until_ready(out)

    ref = reference_forward(x, params)
    assert out.shape == (N, C, H, W) and out.dtype == jnp.float32
    err = jnp.max(jnp.abs(out - ref))
    assert jnp.allclose(out, ref, rtol=2e-2, atol=2e-2), f"Pallas mismatch, max abs err={err}"

    print("KERNEL_OK")
</pallas_src>

<mosaic_0001>
module attributes {stable_mosaic.version = 11 : i64} {
  func.func @basic_block_kernel(%arg0: memref<32x128xf32, #tpu.memory_space<vmem>>, %arg1: memref<1x128xf32, #tpu.memory_space<vmem>>, %arg2: memref<1x128xf32, #tpu.memory_space<vmem>>, %arg3: memref<1x128xf32, #tpu.memory_space<vmem>>, %arg4: memref<1x128xf32, #tpu.memory_space<vmem>>, %arg5: memref<128x128xf32, #tpu.memory_space<vmem>>, %arg6: memref<3x128x128xf32, #tpu.memory_space<vmem>>, %arg7: memref<3x128x128xf32, #tpu.memory_space<vmem>>, %arg8: memref<32x32xf32, #tpu.memory_space<vmem>>, %arg9: memref<32x32xf32, #tpu.memory_space<vmem>>, %arg10: memref<32x128xf32, #tpu.memory_space<vmem>>) attributes {dimension_semantics = [], scalar_prefetch = 0 : i64, scratch_operands = 0 : i64, tpu.core_type = #tpu.core_type<tc>} {
    %c0 = arith.constant 0 : index
    %c0_0 = arith.constant 0 : index
    %0 = vector.load %arg0[%c0, %c0_0] : memref<32x128xf32, #tpu.memory_space<vmem>>, vector<32x128xf32>
    %c0_1 = arith.constant 0 : index
    %c0_2 = arith.constant 0 : index
    %1 = vector.load %arg5[%c0_1, %c0_2] : memref<128x128xf32, #tpu.memory_space<vmem>>, vector<128x128xf32>
    %c0_3 = arith.constant 0 : index
    %c0_4 = arith.constant 0 : index
    %2 = vector.load %arg1[%c0_3, %c0_4] : memref<1x128xf32, #tpu.memory_space<vmem>>, vector<1x128xf32>
    %c0_5 = arith.constant 0 : index
    %c0_6 = arith.constant 0 : index
    %3 = vector.load %arg2[%c0_5, %c0_6] : memref<1x128xf32, #tpu.memory_space<vmem>>, vector<1x128xf32>
    %cst = arith.constant dense<0.000000e+00> : vector<128xf32>
    %4 = vector.multi_reduction <add>, %0, %cst [0] : vector<32x128xf32> to vector<128xf32>
    %5 = vector.shape_cast %4 : vector<128xf32> to vector<1x128xf32>
    %6 = arith.mulf %0, %0 : vector<32x128xf32>
    %cst_7 = arith.constant dense<0.000000e+00> : vector<128xf32>
    %7 = vector.multi_reduction <add>, %6, %cst_7 [0] : vector<32x128xf32> to vector<128xf32>
    %8 = vector.shape_cast %7 : vector<128xf32> to vector<1x128xf32>
    %cst_8 = arith.constant dense<0.000000e+00> : vector<1x128xf32>
    %9 = tpu.matmul %5, %1, %cst_8 {dimension_numbers = #tpu.dot_dimension_numbers<[1], [0], [0], [1], [0, 0, 1, 1], [], []>, precision = #tpu.contract_precision<fp32>} : vector<1x128xf32>, vector<128x128xf32>, vector<1x128xf32> -> vector<1x128xf32>
    %cst_9 = arith.constant dense<0.000000e+00> : vector<1x128xf32>
    %10 = tpu.matmul %8, %1, %cst_9 {dimension_numbers = #tpu.dot_dimension_numbers<[1], [0], [0], [1], [0, 0, 1, 1], [], []>, precision = #tpu.contract_precision<fp32>} : vector<1x128xf32>, vector<128x128xf32>, vector<1x128xf32> -> vector<1x128xf32>
    %11 = arith.mulf %9, %9 : vector<1x128xf32>
    %12 = arith.subf %10, %11 : vector<1x128xf32>
    %cst_10 = arith.constant 9.99999974E-6 : f32
    %13 = vector.broadcast %cst_10 : f32 to vector<1x128xf32>
    %14 = arith.addf %12, %13 : vector<1x128xf32>
    %15 = math.rsqrt %14 : vector<1x128xf32>
    %16 = arith.mulf %2, %15 : vector<1x128xf32>
    %17 = arith.mulf %9, %16 : vector<1x128xf32>
    %18 = arith.subf %3, %17 : vector<1x128xf32>
    %19 = vector.broadcast %16 : vector<1x128xf32> to vector<32x128xf32>
    %20 = arith.mulf %0, %19 : vector<32x128xf32>
    %21 = vector.broadcast %18 : vector<1x128xf32> to vector<32x128xf32>
    %22 = arith.addf %20, %21 : vector<32x128xf32>
    %cst_11 = arith.constant 0.000000e+00 : f32
    %23 = vector.broadcast %cst_11 : f32 to vector<32x128xf32>
    %24 = arith.maximumf %22, %23 : vector<32x128xf32>
    %c0_12 = arith.constant 0 : index
    %c0_13 = arith.constant 0 : index
    %25 = vector.load %arg8[%c0_12, %c0_13] : memref<32x32xf32, #tpu.memory_space<vmem>>, vector<32x32xf32>
    %cst_14 = arith.constant dense<0.000000e+00> : vector<32x128xf32>
    %26 = tpu.matmul %25, %24, %cst_14 {dimension_numbers = #tpu.dot_dimension_numbers<[1], [0], [0], [1], [0, 0, 1, 1], [], []>, precision = #tpu.contract_precision<fp32>} : vector<32x32xf32>, vector<32x128xf32>, vector<32x128xf32> -> vector<32x128xf32>
    %c0_15 = arith.constant 0 : index
    %c0_16 = arith.constant 0 : index
    %27 = vector.load %arg9[%c0_15, %c0_16] : memref<32x32xf32, #tpu.memory_space<vmem>>, vector<32x32xf32>
    %cst_17 = arith.constant dense<0.000000e+00> : vector<32x128xf32>
    %28 = tpu.matmul %27, %24, %cst_17 {dimension_numbers = #tpu.dot_dimension_numbers<[1], [0], [0], [1], [0, 0, 1, 1], [], []>, precision = #tpu.contract_precision<fp32>} : vector<32x32xf32>, vector<32x128xf32>, vector<32x128xf32> -> vector<32x128xf32>
    %c0_18 = arith.constant 0 : index
    %c0_19 = arith.constant 0 : index
    %c0_20 = arith.constant 0 : index
    %29 = vector.load %arg6[%c0_18, %c0_19, %c0_20] : memref<3x128x128xf32, #tpu.memory_space<vmem>>, vector<1x128x128xf32>
    %30 = vector.shape_cast %29 : vector<1x128x128xf32> to vector<128x128xf32>
    %cst_21 = arith.constant dense<0.000000e+00> : vector<32x128xf32>
    %31 = tpu.matmul %26, %30, %cst_21 {dimension_numbers = #tpu.dot_dimension_numbers<[1], [0], [0], [1], [0, 0, 1, 1], [], []>, precision = #tpu.contract_precision<fp32>} : vector<32x128xf32>, vector<128x128xf32>, vector<32x128xf32> -> vector<32x128xf32>
    %c1 = arith.constant 1 : index
    %c0_22 = arith.constant 0 : index
    %c0_23 = arith.constant 0 : index
    %32 = vector.load %arg6[%c1, %c0_22, %c0_23] : memref<3x128x128xf32, #tpu.memory_space<vmem>>, vector<1x128x128xf32>
    %33 = vector.shape_cast %32 : vector<1x128x128xf32> to vector<128x128xf32>
    %cst_24 = arith.constant dense<0.000000e+00> : vector<32x128xf32>
    %34 = tpu.matmul %24, %33, %cst_24 {dimension_numbers = #tpu.dot_dimension_numbers<[1], [0], [0], [1], [0, 0, 1, 1], [], []>, precision = #tpu.contract_precision<fp32>} : vector<32x128xf32>, vector<128x128xf32>, vector<32x128xf32> -> vector<32x128xf32>
    %35 = arith.addf %31, %34 : vector<32x128xf32>
    %c2 = arith.constant 2 : index
    %c0_25 = arith.constant 0 : index
    %c0_26 = arith.constant 0 : index
    %36 = vector.load %arg6[%c2, %c0_25, %c0_26] : memref<3x128x128xf32, #tpu.memory_space<vmem>>, vector<1x128x128xf32>
    %37 = vector.shape_cast %36 : vector<1x128x128xf32> to vector<128x128xf32>
    %cst_27 = arith.constant dense<0.000000e+00> : vector<32x128xf32>
    %38 = tpu.matmul %28, %37, %cst_27 {dimension_numbers = #tpu.dot_dimension_numbers<[1], [0], [0], [1], [0, 0, 1, 1], [], []>, precision = #tpu.contract_precision<fp32>} : vector<32x128xf32>, vector<128x128xf32>, vector<32x128xf32> -> vector<32x128xf32>
    %39 = arith.addf %35, %38 : vector<32x128xf32>
    %c0_28 = arith.constant 0 : index
    %c0_29 = arith.constant 0 : index
    %40 = vector.load %arg3[%c0_28, %c0_29] : memref<1x128xf32, #tpu.memory_space<vmem>>, vector<1x128xf32>
    %c0_30 = arith.constant 0 : index
    %c0_31 = arith.constant 0 : index
    %41 = vector.load %arg4[%c0_30, %c0_31] : memref<1x128xf32, #tpu.memory_space<vmem>>, vector<1x128xf32>
    %cst_32 = arith.constant dense<0.000000e+00> : vector<128xf32>
    %42 = vector.multi_reduction <add>, %39, %cst_32 [0] : vector<32x128xf32> to vector<128xf32>
    %43 = vector.shape_cast %42 : vector<128xf32> to vector<1x128xf32>
    %44 = arith.mulf %39, %39 : vector<32x128xf32>
    %cst_33 = arith.constant dense<0.000000e+00> : vector<128xf32>
    %45 = vector.multi_reduction <add>, %44, %cst_33 [0] : vector<32x128xf32> to vector<128xf32>
    %46 = vector.shape_cast %45 : vector<128xf32> to vector<1x128xf32>
    %cst_34 = arith.constant dense<0.000000e+00> : vector<1x128xf32>
    %47 = tpu.matmul %43, %1, %cst_34 {dimension_numbers = #tpu.dot_dimension_numbers<[1], [0], [0], [1], [0, 0, 1, 1], [], []>, precision = #tpu.contract_precision<fp32>} : vector<1x128xf32>, vector<128x128xf32>, vector<1x128xf32> -> vector<1x128xf32>
    %cst_35 = arith.constant dense<0.000000e+00> : vector<1x128xf32>
    %48 = tpu.matmul %46, %1, %cst_35 {dimension_numbers = #tpu.dot_dimension_numbers<[1], [0], [0], [1], [0, 0, 1, 1], [], []>, precision = #tpu.contract_precision<fp32>} : vector<1x128xf32>, vector<128x128xf32>, vector<1x128xf32> -> vector<1x128xf32>
    %49 = arith.mulf %47, %47 : vector<1x128xf32>
    %50 = arith.subf %48, %49 : vector<1x128xf32>
    %cst_36 = arith.constant 9.99999974E-6 : f32
    %51 = vector.broadcast %cst_36 : f32 to vector<1x128xf32>
    %52 = arith.addf %50, %51 : vector<1x128xf32>
    %53 = math.rsqrt %52 : vector<1x128xf32>
    %54 = arith.mulf %40, %53 : vector<1x128xf32>
    %55 = arith.mulf %47, %54 : vector<1x128xf32>
    %56 = arith.subf %41, %55 : vector<1x128xf32>
    %57 = vector.broadcast %54 : vector<1x128xf32> to vector<32x128xf32>
    %58 = arith.mulf %39, %57 : vector<32x128xf32>
    %59 = vector.broadcast %56 : vector<1x128xf32> to vector<32x128xf32>
    %60 = arith.addf %58, %59 : vector<32x128xf32>
    %cst_37 = arith.constant 0.000000e+00 : f32
    %61 = vector.broadcast %cst_37 : f32 to vector<32x128xf32>
    %62 = arith.maximumf %60, %61 : vector<32x128xf32>
    %c0_38 = arith.constant 0 : index
    %c0_39 = arith.constant 0 : index
    %63 = vector.load %arg8[%c0_38, %c0_39] : memref<32x32xf32, #tpu.memory_space<vmem>>, vector<32x32xf32>
    %cst_40 = arith.constant dense<0.000000e+00> : vector<32x128xf32>
    %64 = tpu.matmul %63, %62, %cst_40 {dimension_numbers = #tpu.dot_dimension_numbers<[1], [0], [0], [1], [0, 0, 1, 1], [], []>, precision = #tpu.contract_precision<fp32>} : vector<32x32xf32>, vector<32x128xf32>, vector<32x128xf32> -> vector<32x128xf32>
    %c0_41 = arith.constant 0 : index
    %c0_42 = arith.constant 0 : index
    %65 = vector.load %arg9[%c0_41, %c0_42] : memref<32x32xf32, #tpu.memory_space<vmem>>, vector<32x32xf32>
    %cst_43 = arith.constant dense<0.000000e+00> : vector<32x128xf32>
    %66 = tpu.matmul %65, %62, %cst_43 {dimension_numbers = #tpu.dot_dimension_numbers<[1], [0], [0], [1], [0, 0, 1, 1], [], []>, precision = #tpu.contract_precision<fp32>} : vector<32x32xf32>, vector<32x128xf32>, vector<32x128xf32> -> vector<32x128xf32>
    %c0_44 = arith.constant 0 : index
    %c0_45 = arith.constant 0 : index
    %c0_46 = arith.constant 0 : index
    %67 = vector.load %arg7[%c0_44, %c0_45, %c0_46] : memref<3x128x128xf32, #tpu.memory_space<vmem>>, vector<1x128x128xf32>
    %68 = vector.shape_cast %67 : vector<1x128x128xf32> to vector<128x128xf32>
    %cst_47 = arith.constant dense<0.000000e+00> : vector<32x128xf32>
    %69 = tpu.matmul %64, %68, %cst_47 {dimension_numbers = #tpu.dot_dimension_numbers<[1], [0], [0], [1], [0, 0, 1, 1], [], []>, precision = #tpu.contract_precision<fp32>} : vector<32x128xf32>, vector<128x128xf32>, vector<32x128xf32> -> vector<32x128xf32>
    %c1_48 = arith.constant 1 : index
    %c0_49 = arith.constant 0 : index
    %c0_50 = arith.constant 0 : index
    %70 = vector.load %arg7[%c1_48, %c0_49, %c0_50] : memref<3x128x128xf32, #tpu.memory_space<vmem>>, vector<1x128x128xf32>
    %71 = vector.shape_cast %70 : vector<1x128x128xf32> to vector<128x128xf32>
    %cst_51 = arith.constant dense<0.000000e+00> : vector<32x128xf32>
    %72 = tpu.matmul %62, %71, %cst_51 {dimension_numbers = #tpu.dot_dimension_numbers<[1], [0], [0], [1], [0, 0, 1, 1], [], []>, precision = #tpu.contract_precision<fp32>} : vector<32x128xf32>, vector<128x128xf32>, vector<32x128xf32> -> vector<32x128xf32>
    %73 = arith.addf %69, %72 : vector<32x128xf32>
    %c2_52 = arith.constant 2 : index
    %c0_53 = arith.constant 0 : index
    %c0_54 = arith.constant 0 : index
    %74 = vector.load %arg7[%c2_52, %c0_53, %c0_54] : memref<3x128x128xf32, #tpu.memory_space<vmem>>, vector<1x128x128xf32>
    %75 = vector.shape_cast %74 : vector<1x128x128xf32> to vector<128x128xf32>
    %cst_55 = arith.constant dense<0.000000e+00> : vector<32x128xf32>
    %76 = tpu.matmul %66, %75, %cst_55 {dimension_numbers = #tpu.dot_dimension_numbers<[1], [0], [0], [1], [0, 0, 1, 1], [], []>, precision = #tpu.contract_precision<fp32>} : vector<32x128xf32>, vector<128x128xf32>, vector<32x128xf32> -> vector<32x128xf32>
    %77 = arith.addf %73, %76 : vector<32x128xf32>
    %78 = arith.addf %0, %77 : vector<32x128xf32>
    %c0_56 = arith.constant 0 : index
    %c0_57 = arith.constant 0 : index
    %79 = vector.load %arg10[%c0_56, %c0_57] : memref<32x128xf32, #tpu.memory_space<vmem>>, vector<32x128xf32>
    tpu.vector_store %arg10[%c0_56, %c0_57], %78 {strides = array<i32>} : memref<32x128xf32, #tpu.memory_space<vmem>>, vector<32x128xf32>,
    return
  }
}

</mosaic_0001>

<llo_original>
// kernel: tpu_custom_call.1
$region0: #{tpu_custom_call.1}
  #allocation0 [shape = 'u32[]', space=smem, size = 0x4, offset = 0x4, fixed_abs, tag = 'smem constant byte address 0x4 - core index']
  #allocation1 [shape = 'u32[72,128]{1,0:T(1,128)}', space=vmem, size = 0x9000, scoped, tag = 'internal scratch']
  %s0 = inlined_call_operand.hbm [shape: f32[32,128], index: 0, kind: input, shape index: {}]
  %s1 = inlined_call_operand.hbm [shape: f32[1,128], index: 1, kind: input, shape index: {}]
  %s2 = inlined_call_operand.vmem [shape: f32[1,128], index: 2, kind: input, shape index: {}]
  %s3 = inlined_call_operand.vmem [shape: f32[1,128], index: 3, kind: input, shape index: {}]
  %s4 = inlined_call_operand.vmem [shape: f32[1,128], index: 4, kind: input, shape index: {}]
  %s5 = inlined_call_operand.hbm [shape: f32[128,128], index: 5, kind: input, shape index: {}]
  %s6 = inlined_call_operand.hbm [shape: f32[3,128,128], index: 6, kind: input, shape index: {}]
  %s7 = inlined_call_operand.hbm [shape: f32[3,128,128], index: 7, kind: input, shape index: {}]
  %s8 = inlined_call_operand.hbm [shape: f32[32,32], index: 8, kind: input, shape index: {}]
  %s9 = inlined_call_operand.hbm [shape: f32[32,32], index: 9, kind: input, shape index: {}]
  %s10 = inlined_call_operand.hbm [shape: f32[32,128], index: 10, kind: output, shape index: {}]
  %s11 = sld [smem:[#allocation0]]
  $region78: #{tpu_custom_call.1} parent=0
    _
  %s13 = ssub.s32 1, %s11
  %s14 = scalar_select 0, %s13, %s11
  $region1: #{tpu_custom_call.1} parent=0
    #allocation2 [shape = 'u8[16384]{0}', space=vmem, size = 0x4000, scoped, tag = 'input window, operand 0, single buffered']
    #allocation3 [shape = 's32[1]{0}', space=sflag, size = 0x4, scoped, tag = 'scoped memory for tpu_custom_call.1']
    #allocation4 [shape = 's32[1]{0}', space=sflag, size = 0x4, scoped, tag = 'scoped memory for tpu_custom_call.1']
    #allocation5 [shape = 'u8[512]{0}', space=vmem, size = 0x400, scoped, tag = 'input window, operand 1, single buffered']
    #allocation6 [shape = 's32[1]{0}', space=sflag, size = 0x4, scoped, tag = 'scoped memory for tpu_custom_call.1']
    #allocation7 [shape = 'u8[65536]{0}', space=vmem, size = 0x10000, scoped, tag = 'input window, operand 5, single buffered']
    #allocation8 [shape = 'u8[196608]{0}', space=vmem, size = 0x30000, scoped, tag = 'input window, operand 6, single buffered']
    #allocation9 [shape = 's32[1]{0}', space=sflag, size = 0x4, scoped, tag = 'scoped memory for tpu_custom_call.1']
    #allocation10 [shape = 'u8[196608]{0}', space=vmem, size = 0x30000, scoped, tag = 'input window, operand 7, single buffered']
    #allocation11 [shape = 'u8[16384]{0}', space=vmem, size = 0x4000, scoped, tag = 'input window, operand 8, single buffered']
    #allocation12 [shape = 's32[1]{0}', space=sflag, size = 0x4, scoped, tag = 'scoped memory for tpu_custom_call.1']
    #allocation13 [shape = 'u8[16384]{0}', space=vmem, size = 0x4000, scoped, tag = 'input window, operand 9, single buffered']
    #allocation14 [shape = 'u8[16384]{0}', space=vmem, size = 0x4000, scoped, tag = 'output window, operand 0, single buffered']
    %15 = vsyncpa [#allocation3], 0
    %16 = vsyncpa [#allocation6], 0
    %17 = vsyncpa [#allocation9], 0
    %18 = vsyncpa [#allocation12], 0
    %19 = vsyncpa [#allocation4], 0
    // Predicated region
    $region2: #{tpu_custom_call.1} parent=1 // pred_check
      _
    $region3: #{tpu_custom_call.1} parent=1 // pred_check_branch
      %21 = sbr.rel (0) target = $region5
    $region4: #{tpu_custom_call.1} parent=1 // pred_region
      %23 = vsyncadd [#allocation3], 0
      %s24 = sshll.u32 %s0, 4
      %s25 = int_to_ptr.hbm [resolvable:$true] %s24
      %s26 = sshll.u32 [#allocation2], 4
      %s27 = int_to_ptr.vmem [resolvable:$true] %s26
      %32 = dma.hbm_to_vmem [thread:$0]  %s25, 512, %s27, [#allocation3], 128, 128, 8
    $region5: #{tpu_custom_call.1} parent=1 // pred_fallthru
      _
    // Predicated region
    $region6: #{tpu_custom_call.1} parent=1 // pred_check
      _
    $region7: #{tpu_custom_call.1} parent=1 // pred_check_branch
      %34 = sbr.rel (0) target = $region9
    $region8: #{tpu_custom_call.1} parent=1 // pred_region
      %36 = vsyncadd [#allocation6], 0
      %s38 = sshll.u32 %s1, 4
      %s39 = int_to_ptr.hbm [resolvable:$true] %s38
      %s40 = sshll.u32 [#allocation5], 4
      %s41 = int_to_ptr.vmem [resolvable:$true] %s40
      %43 = dma.hbm_to_vmem [thread:$0]  %s39, 16, %s41, [#allocation6]
    $region9: #{tpu_custom_call.1} parent=1 // pred_fallthru
      _
    // Predicated region
    $region10: #{tpu_custom_call.1} parent=1 // pred_check
      _
    $region11: #{tpu_custom_call.1} parent=1 // pred_check_branch
      %45 = sbr.rel (0) target = $region13
    $region12: #{tpu_custom_call.1} parent=1 // pred_region
      _
    $region13: #{tpu_custom_call.1} parent=1 // pred_fallthru
      _
    // Predicated region
    $region14: #{tpu_custom_call.1} parent=1 // pred_check
      _
    $region15: #{tpu_custom_call.1} parent=1 // pred_check_branch
      %47 = sbr.rel (0) target = $region17
    $region16: #{tpu_custom_call.1} parent=1 // pred_region
      _
    $region17: #{tpu_custom_call.1} parent=1 // pred_fallthru
      _
    // Predicated region
    $region18: #{tpu_custom_call.1} parent=1 // pred_check
      _
    $region19: #{tpu_custom_call.1} parent=1 // pred_check_branch
      %49 = sbr.rel (0) target = $region21
    $region20: #{tpu_custom_call.1} parent=1 // pred_region
      _
    $region21: #{tpu_custom_call.1} parent=1 // pred_fallthru
      _
    // Predicated region
    $region22: #{tpu_custom_call.1} parent=1 // pred_check
      _
    $region23: #{tpu_custom_call.1} parent=1 // pred_check_branch
      %51 = sbr.rel (0) target = $region25
    $region24: #{tpu_custom_call.1} parent=1 // pred_region
      %53 = vsyncadd [#allocation6], 0
      %s54 = sshll.u32 %s5, 4
      %s55 = int_to_ptr.hbm [resolvable:$true] %s54
      %s56 = sshll.u32 [#allocation7], 4
      %s57 = int_to_ptr.vmem [resolvable:$true] %s56
      %62 = dma.hbm_to_vmem [thread:$0]  %s55, 2048, %s57, [#allocation6], 128, 128, 8
    $region25: #{tpu_custom_call.1} parent=1 // pred_fallthru
      _
    // Predicated region
    $region26: #{tpu_custom_call.1} parent=1 // pred_check
      _
    $region27: #{tpu_custom_call.1} parent=1 // pred_check_branch
      %64 = sbr.rel (0) target = $region29
    $region28: #{tpu_custom_call.1} parent=1 // pred_region
      %66 = vsyncadd [#allocation9], 0
      %s67 = sshll.u32 %s6, 4
      %s68 = int_to_ptr.hbm [resolvable:$true] %s67
      %s69 = sshll.u32 [#allocation8], 4
      %s70 = int_to_ptr.vmem [resolvable:$true] %s69
      %75 = dma.hbm_to_vmem [thread:$0]  %s68, 6144, %s70, [#allocation9], 128, 128, 8
    $region29: #{tpu_custom_call.1} parent=1 // pred_fallthru
      _
    // Predicated region
    $region30: #{tpu_custom_call.1} parent=1 // pred_check
      _
    $region31: #{tpu_custom_call.1} parent=1 // pred_check_branch
      %77 = sbr.rel (0) target = $region33
    $region32: #{tpu_custom_call.1} parent=1 // pred_region
      %79 = vsyncadd [#allocation9], 0
      %s80 = sshll.u32 %s7, 4
      %s81 = int_to_ptr.hbm [resolvable:$true] %s80
      %s82 = sshll.u32 [#allocation10], 4
      %s83 = int_to_ptr.vmem [resolvable:$true] %s82
      %88 = dma.hbm_to_vmem [thread:$0]  %s81, 6144, %s83, [#allocation9], 128, 128, 8
    $region33: #{tpu_custom_call.1} parent=1 // pred_fallthru
      _
    // Predicated region
    $region34: #{tpu_custom_call.1} parent=1 // pred_check
      _
    $region35: #{tpu_custom_call.1} parent=1 // pred_check_branch
      %90 = sbr.rel (0) target = $region37
    $region36: #{tpu_custom_call.1} parent=1 // pred_region
      %92 = vsyncadd [#allocation12], 0
      %s93 = sshll.u32 %s8, 4
      %s94 = int_to_ptr.hbm [resolvable:$true] %s93
      %s95 = sshll.u32 [#allocation11], 4
      %s96 = int_to_ptr.vmem [resolvable:$true] %s95
      %101 = dma.hbm_to_vmem [thread:$0]  %s94, 512, %s96, [#allocation12], 128, 128, 8
    $region37: #{tpu_custom_call.1} parent=1 // pred_fallthru
      _
    // Predicated region
    $region38: #{tpu_custom_call.1} parent=1 // pred_check
      _
    $region39: #{tpu_custom_call.1} parent=1 // pred_check_branch
      %103 = sbr.rel (0) target = $region41
    $region40: #{tpu_custom_call.1} parent=1 // pred_region
      %105 = vsyncadd [#allocation12], 0
      %s106 = sshll.u32 %s9, 4
      %s107 = int_to_ptr.hbm [resolvable:$true] %s106
      %s108 = sshll.u32 [#allocation13], 4
      %s109 = int_to_ptr.vmem [resolvable:$true] %s108
      %114 = dma.hbm_to_vmem [thread:$0]  %s107, 512, %s109, [#allocation12], 128, 128, 8
    $region41: #{tpu_custom_call.1} parent=1 // pred_fallthru
      _
    // Predicated region
    $region42: #{tpu_custom_call.1} parent=1 // pred_check
      _
    $region43: #{tpu_custom_call.1} parent=1 // pred_check_branch
      %116 = sbr.rel (0) target = $region45
    $region44: #{tpu_custom_call.1} parent=1 // pred_region
      %118 = dma.done [#allocation3], 512
    $region45: #{tpu_custom_call.1} parent=1 // pred_fallthru
      _
    // Predicated region
    $region46: #{tpu_custom_call.1} parent=1 // pred_check
      _
    $region47: #{tpu_custom_call.1} parent=1 // pred_check_branch
      %120 = sbr.rel (0) target = $region49
    $region48: #{tpu_custom_call.1} parent=1 // pred_region
      %122 = dma.done [#allocation6], 16
    $region49: #{tpu_custom_call.1} parent=1 // pred_fallthru
      _
    // Predicated region
    $region50: #{tpu_custom_call.1} parent=1 // pred_check
      _
    $region51: #{tpu_custom_call.1} parent=1 // pred_check_branch
      %124 = sbr.rel (0) target = $region53
    $region52: #{tpu_custom_call.1} parent=1 // pred_region
      %126 = dma.done [#allocation6], 2048
    $region53: #{tpu_custom_call.1} parent=1 // pred_fallthru
      _
    // Predicated region
    $region54: #{tpu_custom_call.1} parent=1 // pred_check
      _
    $region55: #{tpu_custom_call.1} parent=1 // pred_check_branch
      %128 = sbr.rel (0) target = $region57
    $region56: #{tpu_custom_call.1} parent=1 // pred_region
      %130 = dma.done [#allocation9], 6144
    $region57: #{tpu_custom_call.1} parent=1 // pred_fallthru
      _
    // Predicated region
    $region58: #{tpu_custom_call.1} parent=1 // pred_check
      _
    $region59: #{tpu_custom_call.1} parent=1 // pred_check_branch
      %132 = sbr.rel (0) target = $region61
    $region60: #{tpu_custom_call.1} parent=1 // pred_region
      %134 = dma.done [#allocation9], 6144
    $region61: #{tpu_custom_call.1} parent=1 // pred_fallthru
      _
    // Predicated region
    $region62: #{tpu_custom_call.1} parent=1 // pred_check
      _
    $region63: #{tpu_custom_call.1} parent=1 // pred_check_branch
      %136 = sbr.rel (0) target = $region65
    $region64: #{tpu_custom_call.1} parent=1 // pred_region
      %138 = dma.done [#allocation12], 512
    $region65: #{tpu_custom_call.1} parent=1 // pred_fallthru
      _
    // Predicated region
    $region66: #{tpu_custom_call.1} parent=1 // pred_check
      _
    $region67: #{tpu_custom_call.1} parent=1 // pred_check_branch
      %140 = sbr.rel (0) target = $region69
    $region68: #{tpu_custom_call.1} parent=1 // pred_region
      %142 = dma.done [#allocation12], 512
    $region69: #{tpu_custom_call.1} parent=1 // pred_fallthru
      _
    %v143 = vld [vmem:[#allocation2] sm:$0xff]
    %v144 = vld [vmem:[#allocation2 + $0x8] sm:$0xff]
    %v145 = vld [vmem:[#allocation2 + $0x10] sm:$0xff]
    %v146 = vld [vmem:[#allocation2 + $0x18] sm:$0xff]
    %v147 = vld [vmem:[#allocation7] sm:$0xff]
    %v148 = vld [vmem:[#allocation7 + $0x8] sm:$0xff]
    %v149 = vld [vmem:[#allocation7 + $0x10] sm:$0xff]
    %v150 = vld [vmem:[#allocation7 + $0x18] sm:$0xff]
    %v151 = vld [vmem:[#allocation7 + $0x20] sm:$0xff]
    %v152 = vld [vmem:[#allocation7 + $0x28] sm:$0xff]
    %v153 = vld [vmem:[#allocation7 + $0x30] sm:$0xff]
    %v154 = vld [vmem:[#allocation7 + $0x38] sm:$0xff]
    %v155 = vld [vmem:[#allocation7 + $0x40] sm:$0xff]
    %v156 = vld [vmem:[#allocation7 + $0x48] sm:$0xff]
    %v157 = vld [vmem:[#allocation7 + $0x50] sm:$0xff]
    %v158 = vld [vmem:[#allocation7 + $0x58] sm:$0xff]
    %v159 = vld [vmem:[#allocation7 + $0x60] sm:$0xff]
    %v160 = vld [vmem:[#allocation7 + $0x68] sm:$0xff]
    %v161 = vld [vmem:[#allocation7 + $0x70] sm:$0xff]
    %v162 = vld [vmem:[#allocation7 + $0x78] sm:$0xff]
    %v163 = vld [vmem:[#allocation5] sm:$0x1]
    %v164 = vld [vmem:[%s2] sm:$0x1]
    %v165 = vadd.f32 %v143, %v144
    %v166 = vadd.f32 %v165, %v145
    %v167 = vadd.f32 %v166, %v146
    %v168 = vrot.slane %v167, 4
    %v169 = vadd.f32 %v167, %v168
    %v170 = vrot.slane %v169, 2
    %v171 = vadd.f32 %v169, %v170
    %v172 = vrot.slane %v171, 1
    %v173 = vadd.f32 %v171, %v172
    %v174 = vmul.f32 %v143, %v143
    %v175 = vmul.f32 %v144, %v144
    %v176 = vmul.f32 %v145, %v145
    %v177 = vmul.f32 %v146, %v146
    %v178 = vadd.f32 %v174, %v175
    %v179 = vadd.f32 %v178, %v176
    %v180 = vadd.f32 %v179, %v177
    %v181 = vrot.slane %v180, 4
    %v182 = vadd.f32 %v180, %v181
    %v183 = vrot.slane %v182, 2
    %v184 = vadd.f32 %v182, %v183
    %v185 = vrot.slane %v184, 1
    %v186 = vadd.f32 %v184, %v185
    %v187 = vand.u32 %v162, 4294901760
    %188 = vmatpush.msra.mxu0 %v187
    %v189 = vand.u32 %v161, 4294901760
    %190 = vmatpush.msra.mxu0 %v189
    %v191 = vand.u32 %v160, 4294901760
    %192 = vmatpush.msra.mxu0 %v191
    %v193 = vand.u32 %v159, 4294901760
    %194 = vmatpush.msra.mxu0 %v193
    %v195 = vand.u32 %v158, 4294901760
    %196 = vmatpush.msra.mxu0 %v195
    %v197 = vand.u32 %v157, 4294901760
    %198 = vmatpush.msra.mxu0 %v197
    %v199 = vand.u32 %v156, 4294901760
    %200 = vmatpush.msra.mxu0 %v199
    %v201 = vand.u32 %v155, 4294901760
    %202 = vmatpush.msra.mxu0 %v201
    %v203 = vand.u32 %v154, 4294901760
    %204 = vmatpush.msra.mxu0 %v203
    %v205 = vand.u32 %v153, 4294901760
    %206 = vmatpush.msra.mxu0 %v205
    %v207 = vand.u32 %v152, 4294901760
    %208 = vmatpush.msra.mxu0 %v207
    %v209 = vand.u32 %v151, 4294901760
    %210 = vmatpush.msra.mxu0 %v209
    %v211 = vand.u32 %v150, 4294901760
    %212 = vmatpush.msra.mxu0 %v211
    %v213 = vand.u32 %v149, 4294901760
    %214 = vmatpush.msra.mxu0 %v213
    %v215 = vand.u32 %v148, 4294901760
    %216 = vmatpush.msra.mxu0 %v215
    %v217 = vand.u32 %v147, 4294901760
    %218 = vmatpush.msra.mxu0 %v217
    %v219 = vand.u32 %v173, 4294901760
    %v220 = vsub.f32 %v173, %v219
    %v221 = vand.u32 %v220, 4294901760
    %v222 = vsub.f32 %v220, %v221
    %v223 = vand.u32 %v222, 4294901760
    %224 = vmatmul.f32.gmra.mxu0 %v223
    %v225 = vpop.f32.mrf.mxu0
    %v226 = vadd.f32 0.0, %v225
    %227 = vdwg.mxu0
    %v228 = vand.u32 %v162, 4294901760
    %v229 = vsub.f32 %v162, %v228
    %v230 = vand.u32 %v229, 4294901760
    %v231 = vsub.f32 %v229, %v230
    %v232 = vand.u32 %v231, 4294901760
    %233 = vmatpush.msra.mxu0 %v232
    %v234 = vand.u32 %v161, 4294901760
    %v235 = vsub.f32 %v161, %v234
    %v236 = vand.u32 %v235, 4294901760
    %v237 = vsub.f32 %v235, %v236
    %v238 = vand.u32 %v237, 4294901760
    %239 = vmatpush.msra.mxu0 %v238
    %v240 = vand.u32 %v160, 4294901760
    %v241 = vsub.f32 %v160, %v240
    %v242 = vand.u32 %v241, 4294901760
    %v243 = vsub.f32 %v241, %v242
    %v244 = vand.u32 %v243, 4294901760
    %245 = vmatpush.msra.mxu0 %v244
    %v246 = vand.u32 %v159, 4294901760
    %v247 = vsub.f32 %v159, %v246
    %v248 = vand.u32 %v247, 4294901760
    %v249 = vsub.f32 %v247, %v248
    %v250 = vand.u32 %v249, 4294901760
    %251 = vmatpush.msra.mxu0 %v250
    %v252 = vand.u32 %v158, 4294901760
    %v253 = vsub.f32 %v158, %v252
    %v254 = vand.u32 %v253, 4294901760
    %v255 = vsub.f32 %v253, %v254
    %v256 = vand.u32 %v255, 4294901760
    %257 = vmatpush.msra.mxu0 %v256
    %v258 = vand.u32 %v157, 4294901760
    %v259 = vsub.f32 %v157, %v258
    %v260 = vand.u32 %v259, 4294901760
    %v261 = vsub.f32 %v259, %v260
    %v262 = vand.u32 %v261, 4294901760
    %263 = vmatpush.msra.mxu0 %v262
    %v264 = vand.u32 %v156, 4294901760
    %v265 = vsub.f32 %v156, %v264
    %v266 = vand.u32 %v265, 4294901760
    %v267 = vsub.f32 %v265, %v266
    %v268 = vand.u32 %v267, 4294901760
    %269 = vmatpush.msra.mxu0 %v268
    %v270 = vand.u32 %v155, 4294901760
    %v271 = vsub.f32 %v155, %v270
    %v272 = vand.u32 %v271, 4294901760
    %v273 = vsub.f32 %v271, %v272
    %v274 = vand.u32 %v273, 4294901760
    %275 = vmatpush.msra.mxu0 %v274
    %v276 = vand.u32 %v154, 4294901760
    %v277 = vsub.f32 %v154, %v276
    %v278 = vand.u32 %v277, 4294901760
    %v279 = vsub.f32 %v277, %v278
    %v280 = vand.u32 %v279, 4294901760
    %281 = vmatpush.msra.mxu0 %v280
    %v282 = vand.u32 %v153, 4294901760
    %v283 = vsub.f32 %v153, %v282
    %v284 = vand.u32 %v283, 4294901760
    %v285 = vsub.f32 %v283, %v284
    %v286 = vand.u32 %v285, 4294901760
    %287 = vmatpush.msra.mxu0 %v286
    %v288 = vand.u32 %v152, 4294901760
    %v289 = vsub.f32 %v152, %v288
    %v290 = vand.u32 %v289, 4294901760
    %v291 = vsub.f32 %v289, %v290
    %v292 = vand.u32 %v291, 4294901760
    %293 = vmatpush.msra.mxu0 %v292
    %v294 = vand.u32 %v151, 4294901760
    %v295 = vsub.f32 %v151, %v294
    %v296 = vand.u32 %v295, 4294901760
    %v297 = vsub.f32 %v295, %v296
    %v298 = vand.u32 %v297, 4294901760
    %299 = vmatpush.msra.mxu0 %v298
    %v300 = vand.u32 %v150, 4294901760
    %v301 = vsub.f32 %v150, %v300
    %v302 = vand.u32 %v301, 4294901760
    %v303 = vsub.f32 %v301, %v302
    %v304 = vand.u32 %v303, 4294901760
    %305 = vmatpush.msra.mxu0 %v304
    %v306 = vand.u32 %v149, 4294901760
    %v307 = vsub.f32 %v149, %v306
    %v308 = vand.u32 %v307, 4294901760
    %v309 = vsub.f32 %v307, %v308
    %v310 = vand.u32 %v309, 4294901760
    %311 = vmatpush.msra.mxu0 %v310
    %v312 = vand.u32 %v148, 4294901760
    %v313 = vsub.f32 %v148, %v312
    %v314 = vand.u32 %v313, 4294901760
    %v315 = vsub.f32 %v313, %v314
    %v316 = vand.u32 %v315, 4294901760
    %317 = vmatpush.msra.mxu0 %v316
    %v318 = vand.u32 %v147, 4294901760
    %v319 = vsub.f32 %v147, %v318
    %v320 = vand.u32 %v319, 4294901760
    %v321 = vsub.f32 %v319, %v320
    %v322 = vand.u32 %v321, 4294901760
    %323 = vmatpush.msra.mxu0 %v322
    %v324 = vand.u32 %v173, 4294901760
    %325 = vmatmul.f32.gmra.mxu0 %v324
    %v326 = vpop.f32.mrf.mxu0
    %v327 = vadd.f32 %v226, %v326
    %328 = vdwg.mxu0
    %v329 = vand.u32 %v162, 4294901760
    %v330 = vsub.f32 %v162, %v329
    %331 = vmatpush.msra.mxu0 %v330
    %v332 = vand.u32 %v161, 4294901760
    %v333 = vsub.f32 %v161, %v332
    %334 = vmatpush.msra.mxu0 %v333
    %v335 = vand.u32 %v160, 4294901760
    %v336 = vsub.f32 %v160, %v335
    %337 = vmatpush.msra.mxu0 %v336
    %v338 = vand.u32 %v159, 4294901760
    %v339 = vsub.f32 %v159, %v338
    %340 = vmatpush.msra.mxu0 %v339
    %v341 = vand.u32 %v158, 4294901760
    %v342 = vsub.f32 %v158, %v341
    %343 = vmatpush.msra.mxu0 %v342
    %v344 = vand.u32 %v157, 4294901760
    %v345 = vsub.f32 %v157, %v344
    %346 = vmatpush.msra.mxu0 %v345
    %v347 = vand.u32 %v156, 4294901760
    %v348 = vsub.f32 %v156, %v347
    %349 = vmatpush.msra.mxu0 %v348
    %v350 = vand.u32 %v155, 4294901760
    %v351 = vsub.f32 %v155, %v350
    %352 = vmatpush.msra.mxu0 %v351
    %v353 = vand.u32 %v154, 4294901760
    %v354 = vsub.f32 %v154, %v353
    %355 = vmatpush.msra.mxu0 %v354
    %v356 = vand.u32 %v153, 4294901760
    %v357 = vsub.f32 %v153, %v356
    %358 = vmatpush.msra.mxu0 %v357
    %v359 = vand.u32 %v152, 4294901760
    %v360 = vsub.f32 %v152, %v359
    %361 = vmatpush.msra.mxu0 %v360
    %v362 = vand.u32 %v151, 4294901760
    %v363 = vsub.f32 %v151, %v362
    %364 = vmatpush.msra.mxu0 %v363
    %v365 = vand.u32 %v150, 4294901760
    %v366 = vsub.f32 %v150, %v365
    %367 = vmatpush.msra.mxu0 %v366
    %v368 = vand.u32 %v149, 4294901760
    %v369 = vsub.f32 %v149, %v368
    %370 = vmatpush.msra.mxu0 %v369
    %v371 = vand.u32 %v148, 4294901760
    %v372 = vsub.f32 %v148, %v371
    %373 = vmatpush.msra.mxu0 %v372
    %v374 = vand.u32 %v147, 4294901760
    %v375 = vsub.f32 %v147, %v374
    %376 = vmatpush.msra.mxu0 %v375
    %v377 = vand.u32 %v173, 4294901760
    %v378 = vsub.f32 %v173, %v377
    %379 = vmatmul.f32.gmra.mxu0 %v378
    %v380 = vpop.f32.mrf.mxu0
    %v381 = vadd.f32 %v327, %v380
    %382 = vdwg.mxu0
    %v383 = vand.u32 %v162, 4294901760
    %384 = vmatpush.msra.mxu0 %v383
    %v385 = vand.u32 %v161, 4294901760
    %386 = vmatpush.msra.mxu0 %v385
    %v387 = vand.u32 %v160, 4294901760
    %388 = vmatpush.msra.mxu0 %v387
    %v389 = vand.u32 %v159, 4294901760
    %390 = vmatpush.msra.mxu0 %v389
    %v391 = vand.u32 %v158, 4294901760
    %392 = vmatpush.msra.mxu0 %v391
    %v393 = vand.u32 %v157, 4294901760
    %394 = vmatpush.msra.mxu0 %v393
    %v395 = vand.u32 %v156, 4294901760
    %396 = vmatpush.msra.mxu0 %v395
    %v397 = vand.u32 %v155, 4294901760
    %398 = vmatpush.msra.mxu0 %v397
    %v399 = vand.u32 %v154, 4294901760
    %400 = vmatpush.msra.mxu0 %v399
    %v401 = vand.u32 %v153, 4294901760
    %402 = vmatpush.msra.mxu0 %v401
    %v403 = vand.u32 %v152, 4294901760
    %404 = vmatpush.msra.mxu0 %v403
    %v405 = vand.u32 %v151, 4294901760
    %406 = vmatpush.msra.mxu0 %v405
    %v407 = vand.u32 %v150, 4294901760
    %408 = vmatpush.msra.mxu0 %v407
    %v409 = vand.u32 %v149, 4294901760
    %410 = vmatpush.msra.mxu0 %v409
    %v411 = vand.u32 %v148, 4294901760
    %412 = vmatpush.msra.mxu0 %v411
    %v413 = vand.u32 %v147, 4294901760
    %414 = vmatpush.msra.mxu0 %v413
    %v415 = vand.u32 %v173, 4294901760
    %v416 = vsub.f32 %v173, %v415
    %v417 = vand.u32 %v416, 4294901760
    %418 = vmatmul.f32.gmra.mxu0 %v417
    %v419 = vpop.f32.mrf.mxu0
    %v420 = vadd.f32 %v381, %v419
    %421 = vdwg.mxu0
    %v422 = vand.u32 %v162, 4294901760
    %v423 = vsub.f32 %v162, %v422
    %v424 = vand.u32 %v423, 4294901760
    %425 = vmatpush.msra.mxu0 %v424
    %v426 = vand.u32 %v161, 4294901760
    %v427 = vsub.f32 %v161, %v426
    %v428 = vand.u32 %v427, 4294901760
    %429 = vmatpush.msra.mxu0 %v428
    %v430 = vand.u32 %v160, 4294901760
    %v431 = vsub.f32 %v160, %v430
    %v432 = vand.u32 %v431, 4294901760
    %433 = vmatpush.msra.mxu0 %v432
    %v434 = vand.u32 %v159, 4294901760
    %v435 = vsub.f32 %v159, %v434
    %v436 = vand.u32 %v435, 4294901760
    %437 = vmatpush.msra.mxu0 %v436
    %v438 = vand.u32 %v158, 4294901760
    %v439 = vsub.f32 %v158, %v438
    %v440 = vand.u32 %v439, 4294901760
    %441 = vmatpush.msra.mxu0 %v440
    %v442 = vand.u32 %v157, 4294901760
    %v443 = vsub.f32 %v157, %v442
    %v444 = vand.u32 %v443, 4294901760
    %445 = vmatpush.msra.mxu0 %v444
    %v446 = vand.u32 %v156, 4294901760
    %v447 = vsub.f32 %v156, %v446
    %v448 = vand.u32 %v447, 4294901760
    %449 = vmatpush.msra.mxu0 %v448
    %v450 = vand.u32 %v155, 4294901760
    %v451 = vsub.f32 %v155, %v450
    %v452 = vand.u32 %v451, 4294901760
    %453 = vmatpush.msra.mxu0 %v452
    %v454 = vand.u32 %v154, 4294901760
    %v455 = vsub.f32 %v154, %v454
    %v456 = vand.u32 %v455, 4294901760
    %457 = vmatpush.msra.mxu0 %v456
    %v458 = vand.u32 %v153, 4294901760
    %v459 = vsub.f32 %v153, %v458
    %v460 = vand.u32 %v459, 4294901760
    %461 = vmatpush.msra.mxu0 %v460
    %v462 = vand.u32 %v152, 4294901760
    %v463 = vsub.f32 %v152, %v462
    %v464 = vand.u32 %v463, 4294901760
    %465 = vmatpush.msra.mxu0 %v464
    %v466 = vand.u32 %v151, 4294901760
    %v467 = vsub.f32 %v151, %v466
    %v468 = vand.u32 %v467, 4294901760
    %469 = vmatpush.msra.mxu0 %v468
    %v470 = vand.u32 %v150, 4294901760
    %v471 = vsub.f32 %v150, %v470
    %v472 = vand.u32 %v471, 4294901760
    %473 = vmatpush.msra.mxu0 %v472
    %v474 = vand.u32 %v149, 4294901760
    %v475 = vsub.f32 %v149, %v474
    %v476 = vand.u32 %v475, 4294901760
    %477 = vmatpush.msra.mxu0 %v476
    %v478 = vand.u32 %v148, 4294901760
    %v479 = vsub.f32 %v148, %v478
    %v480 = vand.u32 %v479, 4294901760
    %481 = vmatpush.msra.mxu0 %v480
    %v482 = vand.u32 %v147, 4294901760
    %v483 = vsub.f32 %v147, %v482
    %v484 = vand.u32 %v483, 4294901760
    %485 = vmatpush.msra.mxu0 %v484
    %v486 = vand.u32 %v173, 4294901760
    %487 = vmatmul.f32.gmra.mxu0 %v486
    %v488 = vpop.f32.mrf.mxu0
    %v489 = vadd.f32 %v420, %v488
    %490 = vdwg.mxu0
    %v491 = vand.u32 %v162, 4294901760
    %492 = vmatpush.msra.mxu0 %v491
    %v493 = vand.u32 %v161, 4294901760
    %494 = vmatpush.msra.mxu0 %v493
    %v495 = vand.u32 %v160, 4294901760
    %496 = vmatpush.msra.mxu0 %v495
    %v497 = vand.u32 %v159, 4294901760
    %498 = vmatpush.msra.mxu0 %v497
    %v499 = vand.u32 %v158, 4294901760
    %500 = vmatpush.msra.mxu0 %v499
    %v501 = vand.u32 %v157, 4294901760
    %502 = vmatpush.msra.mxu0 %v501
    %v503 = vand.u32 %v156, 4294901760
    %504 = vmatpush.msra.mxu0 %v503
    %v505 = vand.u32 %v155, 4294901760
    %506 = vmatpush.msra.mxu0 %v505
    %v507 = vand.u32 %v154, 4294901760
    %508 = vmatpush.msra.mxu0 %v507
    %v509 = vand.u32 %v153, 4294901760
    %510 = vmatpush.msra.mxu0 %v509
    %v511 = vand.u32 %v152, 4294901760
    %512 = vmatpush.msra.mxu0 %v511
    %v513 = vand.u32 %v151, 4294901760
    %514 = vmatpush.msra.mxu0 %v513
    %v515 = vand.u32 %v150, 4294901760
    %516 = vmatpush.msra.mxu0 %v515
    %v517 = vand.u32 %v149, 4294901760
    %518 = vmatpush.msra.mxu0 %v517
    %v519 = vand.u32 %v148, 4294901760
    %520 = vmatpush.msra.mxu0 %v519
    %v521 = vand.u32 %v147, 4294901760
    %522 = vmatpush.msra.mxu0 %v521
    %v523 = vand.u32 %v173, 4294901760
    %524 = vmatmul.f32.gmra.mxu0 %v523
    %v525 = vpop.f32.mrf.mxu0
    %v526 = vadd.f32 %v489, %v525
    %527 = vdwg.mxu0
    %v528 = vand.u32 %v162, 4294901760
    %529 = vmatpush.msra.mxu0 %v528
    %v530 = vand.u32 %v161, 4294901760
    %531 = vmatpush.msra.mxu0 %v530
    %v532 = vand.u32 %v160, 4294901760
    %533 = vmatpush.msra.mxu0 %v532
    %v534 = vand.u32 %v159, 4294901760
    %535 = vmatpush.msra.mxu0 %v534
    %v536 = vand.u32 %v158, 4294901760
    %537 = vmatpush.msra.mxu0 %v536
    %v538 = vand.u32 %v157, 4294901760
    %539 = vmatpush.msra.mxu0 %v538
    %v540 = vand.u32 %v156, 4294901760
    %541 = vmatpush.msra.mxu0 %v540
    %v542 = vand.u32 %v155, 4294901760
    %543 = vmatpush.msra.mxu0 %v542
    %v544 = vand.u32 %v154, 4294901760
    %545 = vmatpush.msra.mxu0 %v544
    %v546 = vand.u32 %v153, 4294901760
    %547 = vmatpush.msra.mxu0 %v546
    %v548 = vand.u32 %v152, 4294901760
    %549 = vmatpush.msra.mxu0 %v548
    %v550 = vand.u32 %v151, 4294901760
    %551 = vmatpush.msra.mxu0 %v550
    %v552 = vand.u32 %v150, 4294901760
    %553 = vmatpush.msra.mxu0 %v552
    %v554 = vand.u32 %v149, 4294901760
    %555 = vmatpush.msra.mxu0 %v554
    %v556 = vand.u32 %v148, 4294901760
    %557 = vmatpush.msra.mxu0 %v556
    %v558 = vand.u32 %v147, 4294901760
    %559 = vmatpush.msra.mxu0 %v558
    %v560 = vand.u32 %v186, 4294901760
    %v561 = vsub.f32 %v186, %v560
    %v562 = vand.u32 %v561, 4294901760
    %v563 = vsub.f32 %v561, %v562
    %v564 = vand.u32 %v563, 4294901760
    %565 = vmatmul.f32.gmra.mxu0 %v564
    %v566 = vpop.f32.mrf.mxu0
    %v567 = vadd.f32 0.0, %v566
    %568 = vdwg.mxu0
    %v569 = vand.u32 %v162, 4294901760
    %v570 = vsub.f32 %v162, %v569
    %v571 = vand.u32 %v570, 4294901760
    %v572 = vsub.f32 %v570, %v571
    %v573 = vand.u32 %v572, 4294901760
    %574 = vmatpush.msra.mxu0 %v573
    %v575 = vand.u32 %v161, 4294901760
    %v576 = vsub.f32 %v161, %v575
    %v577 = vand.u32 %v576, 4294901760
    %v578 = vsub.f32 %v576, %v577
    %v579 = vand.u32 %v578, 4294901760
    %580 = vmatpush.msra.mxu0 %v579
    %v581 = vand.u32 %v160, 4294901760
    %v582 = vsub.f32 %v160, %v581
    %v583 = vand.u32 %v582, 4294901760
    %v584 = vsub.f32 %v582, %v583
    %v585 = vand.u32 %v584, 4294901760
    %586 = vmatpush.msra.mxu0 %v585
    %v587 = vand.u32 %v159, 4294901760
    %v588 = vsub.f32 %v159, %v587
    %v589 = vand.u32 %v588, 4294901760
    %v590 = vsub.f32 %v588, %v589
    %v591 = vand.u32 %v590, 4294901760
    %592 = vmatpush.msra.mxu0 %v591
    %v593 = vand.u32 %v158, 4294901760
    %v594 = vsub.f32 %v158, %v593
    %v595 = vand.u32 %v594, 4294901760
    %v596 = vsub.f32 %v594, %v595
    %v597 = vand.u32 %v596, 4294901760
    %598 = vmatpush.msra.mxu0 %v597
    %v599 = vand.u32 %v157, 4294901760
    %v600 = vsub.f32 %v157, %v599
    %v601 = vand.u32 %v600, 4294901760
    %v602 = vsub.f32 %v600, %v601
    %v603 = vand.u32 %v602, 4294901760
    %604 = vmatpush.msra.mxu0 %v603
    %v605 = vand.u32 %v156, 4294901760
    %v606 = vsub.f32 %v156, %v605
    %v607 = vand.u32 %v606, 4294901760
    %v608 = vsub.f32 %v606, %v607
    %v609 = vand.u32 %v608, 4294901760
    %610 = vmatpush.msra.mxu0 %v609
    %v611 = vand.u32 %v155, 4294901760
    %v612 = vsub.f32 %v155, %v611
    %v613 = vand.u32 %v612, 4294901760
    %v614 = vsub.f32 %v612, %v613
    %v615 = vand.u32 %v614, 4294901760
    %616 = vmatpush.msra.mxu0 %v615
    %v617 = vand.u32 %v154, 4294901760
    %v618 = vsub.f32 %v154, %v617
    %v619 = vand.u32 %v618, 4294901760
    %v620 = vsub.f32 %v618, %v619
    %v621 = vand.u32 %v620, 4294901760
    %622 = vmatpush.msra.mxu0 %v621
    %v623 = vand.u32 %v153, 4294901760
    %v624 = vsub.f32 %v153, %v623
    %v625 = vand.u32 %v624, 4294901760
    %v626 = vsub.f32 %v624, %v625
    %v627 = vand.u32 %v626, 4294901760
    %628 = vmatpush.msra.mxu0 %v627
    %v629 = vand.u32 %v152, 4294901760
    %v630 = vsub.f32 %v152, %v629
    %v631 = vand.u32 %v630, 4294901760
    %v632 = vsub.f32 %v630, %v631
    %v633 = vand.u32 %v632, 4294901760
    %634 = vmatpush.msra.mxu0 %v633
    %v635 = vand.u32 %v151, 4294901760
    %v636 = vsub.f32 %v151, %v635
    %v637 = vand.u32 %v636, 4294901760
    %v638 = vsub.f32 %v636, %v637
    %v639 = vand.u32 %v638, 4294901760
    %640 = vmatpush.msra.mxu0 %v639
    %v641 = vand.u32 %v150, 4294901760
    %v642 = vsub.f32 %v150, %v641
    %v643 = vand.u32 %v642, 4294901760
    %v644 = vsub.f32 %v642, %v643
    %v645 = vand.u32 %v644, 4294901760
    %646 = vmatpush.msra.mxu0 %v645
    %v647 = vand.u32 %v149, 4294901760
    %v648 = vsub.f32 %v149, %v647
    %v649 = vand.u32 %v648, 4294901760
    %v650 = vsub.f32 %v648, %v649
    %v651 = vand.u32 %v650, 4294901760
    %652 = vmatpush.msra.mxu0 %v651
    %v653 = vand.u32 %v148, 4294901760
    %v654 = vsub.f32 %v148, %v653
    %v655 = vand.u32 %v654, 4294901760
    %v656 = vsub.f32 %v654, %v655
    %v657 = vand.u32 %v656, 4294901760
    %658 = vmatpush.msra.mxu0 %v657
    %v659 = vand.u32 %v147, 4294901760
    %v660 = vsub.f32 %v147, %v659
    %v661 = vand.u32 %v660, 4294901760
    %v662 = vsub.f32 %v660, %v661
    %v663 = vand.u32 %v662, 4294901760
    %664 = vmatpush.msra.mxu0 %v663
    %v665 = vand.u32 %v186, 4294901760
    %666 = vmatmul.f32.gmra.mxu0 %v665
    %v667 = vpop.f32.mrf.mxu0
    %v668 = vadd.f32 %v567, %v667
    %669 = vdwg.mxu0
    %v670 = vand.u32 %v162, 4294901760
    %v671 = vsub.f32 %v162, %v670
    %672 = vmatpush.msra.mxu0 %v671
    %v673 = vand.u32 %v161, 4294901760
    %v674 = vsub.f32 %v161, %v673
    %675 = vmatpush.msra.mxu0 %v674
    %v676 = vand.u32 %v160, 4294901760
    %v677 = vsub.f32 %v160, %v676
    %678 = vmatpush.msra.mxu0 %v677
    %v679 = vand.u32 %v159, 4294901760
    %v680 = vsub.f32 %v159, %v679
    %681 = vmatpush.msra.mxu0 %v680
    %v682 = vand.u32 %v158, 4294901760
    %v683 = vsub.f32 %v158, %v682
    %684 = vmatpush.msra.mxu0 %v683
    %v685 = vand.u32 %v157, 4294901760
    %v686 = vsub.f32 %v157, %v685
    %687 = vmatpush.msra.mxu0 %v686
    %v688 = vand.u32 %v156, 4294901760
    %v689 = vsub.f32 %v156, %v688
    %690 = vmatpush.msra.mxu0 %v689
    %v691 = vand.u32 %v155, 4294901760
    %v692 = vsub.f32 %v155, %v691
    %693 = vmatpush.msra.mxu0 %v692
    %v694 = vand.u32 %v154, 4294901760
    %v695 = vsub.f32 %v154, %v694
    %696 = vmatpush.msra.mxu0 %v695
    %v697 = vand.u32 %v153, 4294901760
    %v698 = vsub.f32 %v153, %v697
    %699 = vmatpush.msra.mxu0 %v698
    %v700 = vand.u32 %v152, 4294901760
    %v701 = vsub.f32 %v152, %v700
    %702 = vmatpush.msra.mxu0 %v701
    %v703 = vand.u32 %v151, 4294901760
    %v704 = vsub.f32 %v151, %v703
    %705 = vmatpush.msra.mxu0 %v704
    %v706 = vand.u32 %v150, 4294901760
    %v707 = vsub.f32 %v150, %v706
    %708 = vmatpush.msra.mxu0 %v707
    %v709 = vand.u32 %v149, 4294901760
    %v710 = vsub.f32 %v149, %v709
    %711 = vmatpush.msra.mxu0 %v710
    %v712 = vand.u32 %v148, 4294901760
    %v713 = vsub.f32 %v148, %v712
    %714 = vmatpush.msra.mxu0 %v713
    %v715 = vand.u32 %v147, 4294901760
    %v716 = vsub.f32 %v147, %v715
    %717 = vmatpush.msra.mxu0 %v716
    %v718 = vand.u32 %v186, 4294901760
    %v719 = vsub.f32 %v186, %v718
    %720 = vmatmul.f32.gmra.mxu0 %v719
    %v721 = vpop.f32.mrf.mxu0
    %v722 = vadd.f32 %v668, %v721
    %723 = vdwg.mxu0
    %v724 = vand.u32 %v162, 4294901760
    %725 = vmatpush.msra.mxu0 %v724
    %v726 = vand.u32 %v161, 4294901760
    %727 = vmatpush.msra.mxu0 %v726
    %v728 = vand.u32 %v160, 4294901760
    %729 = vmatpush.msra.mxu0 %v728
    %v730 = vand.u32 %v159, 4294901760
    %731 = vmatpush.msra.mxu0 %v730
    %v732 = vand.u32 %v158, 4294901760
    %733 = vmatpush.msra.mxu0 %v732
    %v734 = vand.u32 %v157, 4294901760
    %735 = vmatpush.msra.mxu0 %v734
    %v736 = vand.u32 %v156, 4294901760
    %737 = vmatpush.msra.mxu0 %v736
    %v738 = vand.u32 %v155, 4294901760
    %739 = vmatpush.msra.mxu0 %v738
    %v740 = vand.u32 %v154, 4294901760
    %741 = vmatpush.msra.mxu0 %v740
    %v742 = vand.u32 %v153, 4294901760
    %743 = vmatpush.msra.mxu0 %v742
    %v744 = vand.u32 %v152, 4294901760
    %745 = vmatpush.msra.mxu0 %v744
    %v746 = vand.u32 %v151, 4294901760
    %747 = vmatpush.msra.mxu0 %v746
    %v748 = vand.u32 %v150, 4294901760
    %749 = vmatpush.msra.mxu0 %v748
    %v750 = vand.u32 %v149, 4294901760
    %751 = vmatpush.msra.mxu0 %v750
    %v752 = vand.u32 %v148, 4294901760
    %753 = vmatpush.msra.mxu0 %v752
    %v754 = vand.u32 %v147, 4294901760
    %755 = vmatpush.msra.mxu0 %v754
    %v756 = vand.u32 %v186, 4294901760
    %v757 = vsub.f32 %v186, %v756
    %v758 = vand.u32 %v757, 4294901760
    %759 = vmatmul.f32.gmra.mxu0 %v758
    %v760 = vpop.f32.mrf.mxu0
    %v761 = vadd.f32 %v722, %v760
    %762 = vdwg.mxu0
    %v763 = vand.u32 %v162, 4294901760
    %v764 = vsub.f32 %v162, %v763
    %v765 = vand.u32 %v764, 4294901760
    %766 = vmatpush.msra.mxu0 %v765
    %v767 = vand.u32 %v161, 4294901760
    %v768 = vsub.f32 %v161, %v767
    %v769 = vand.u32 %v768, 4294901760
    %770 = vmatpush.msra.mxu0 %v769
    %v771 = vand.u32 %v160, 4294901760
    %v772 = vsub.f32 %v160, %v771
    %v773 = vand.u32 %v772, 4294901760
    %774 = vmatpush.msra.mxu0 %v773
    %v775 = vand.u32 %v159, 4294901760
    %v776 = vsub.f32 %v159, %v775
    %v777 = vand.u32 %v776, 4294901760
    %778 = vmatpush.msra.mxu0 %v777
    %v779 = vand.u32 %v158, 4294901760
    %v780 = vsub.f32 %v158, %v779
    %v781 = vand.u32 %v780, 4294901760
    %782 = vmatpush.msra.mxu0 %v781
    %v783 = vand.u32 %v157, 4294901760
    %v784 = vsub.f32 %v157, %v783
    %v785 = vand.u32 %v784, 4294901760
    %786 = vmatpush.msra.mxu0 %v785
    %v787 = vand.u32 %v156, 4294901760
    %v788 = vsub.f32 %v156, %v787
    %v789 = vand.u32 %v788, 4294901760
    %790 = vmatpush.msra.mxu0 %v789
    %v791 = vand.u32 %v155, 4294901760
    %v792 = vsub.f32 %v155, %v791
    %v793 = vand.u32 %v792, 4294901760
    %794 = vmatpush.msra.mxu0 %v793
    %v795 = vand.u32 %v154, 4294901760
    %v796 = vsub.f32 %v154, %v795
    %v797 = vand.u32 %v796, 4294901760
    %798 = vmatpush.msra.mxu0 %v797
    %v799 = vand.u32 %v153, 4294901760
    %v800 = vsub.f32 %v153, %v799
    %v801 = vand.u32 %v800, 4294901760
    %802 = vmatpush.msra.mxu0 %v801
    %v803 = vand.u32 %v152, 4294901760
    %v804 = vsub.f32 %v152, %v803
    %v805 = vand.u32 %v804, 4294901760
    %806 = vmatpush.msra.mxu0 %v805
    %v807 = vand.u32 %v151, 4294901760
    %v808 = vsub.f32 %v151, %v807
    %v809 = vand.u32 %v808, 4294901760
    %810 = vmatpush.msra.mxu0 %v809
    %v811 = vand.u32 %v150, 4294901760
    %v812 = vsub.f32 %v150, %v811
    %v813 = vand.u32 %v812, 4294901760
    %814 = vmatpush.msra.mxu0 %v813
    %v815 = vand.u32 %v149, 4294901760
    %v816 = vsub.f32 %v149, %v815
    %v817 = vand.u32 %v816, 4294901760
    %818 = vmatpush.msra.mxu0 %v817
    %v819 = vand.u32 %v148, 4294901760
    %v820 = vsub.f32 %v148, %v819
    %v821 = vand.u32 %v820, 4294901760
    %822 = vmatpush.msra.mxu0 %v821
    %v823 = vand.u32 %v147, 4294901760
    %v824 = vsub.f32 %v147, %v823
    %v825 = vand.u32 %v824, 4294901760
    %826 = vmatpush.msra.mxu0 %v825
    %v827 = vand.u32 %v186, 4294901760
    %828 = vmatmul.f32.gmra.mxu0 %v827
    %v829 = vpop.f32.mrf.mxu0
    %v830 = vadd.f32 %v761, %v829
    %831 = vdwg.mxu0
    %v832 = vand.u32 %v162, 4294901760
    %833 = vmatpush.msra.mxu0 %v832
    %v834 = vand.u32 %v161, 4294901760
    %835 = vmatpush.msra.mxu0 %v834
    %v836 = vand.u32 %v160, 4294901760
    %837 = vmatpush.msra.mxu0 %v836
    %v838 = vand.u32 %v159, 4294901760
    %839 = vmatpush.msra.mxu0 %v838
    %v840 = vand.u32 %v158, 4294901760
    %841 = vmatpush.msra.mxu0 %v840
    %v842 = vand.u32 %v157, 4294901760
    %843 = vmatpush.msra.mxu0 %v842
    %v844 = vand.u32 %v156, 4294901760
    %845 = vmatpush.msra.mxu0 %v844
    %v846 = vand.u32 %v155, 4294901760
    %847 = vmatpush.msra.mxu0 %v846
    %v848 = vand.u32 %v154, 4294901760
    %849 = vmatpush.msra.mxu0 %v848
    %v850 = vand.u32 %v153, 4294901760
    %851 = vmatpush.msra.mxu0 %v850
    %v852 = vand.u32 %v152, 4294901760
    %853 = vmatpush.msra.mxu0 %v852
    %v854 = vand.u32 %v151, 4294901760
    %855 = vmatpush.msra.mxu0 %v854
    %v856 = vand.u32 %v150, 4294901760
    %857 = vmatpush.msra.mxu0 %v856
    %v858 = vand.u32 %v149, 4294901760
    %859 = vmatpush.msra.mxu0 %v858
    %v860 = vand.u32 %v148, 4294901760
    %861 = vmatpush.msra.mxu0 %v860
    %v862 = vand.u32 %v147, 4294901760
    %863 = vmatpush.msra.mxu0 %v862
    %v864 = vand.u32 %v186, 4294901760
    %865 = vmatmul.f32.gmra.mxu0 %v864
    %v866 = vpop.f32.mrf.mxu0
    %v867 = vadd.f32 %v830, %v866
    %868 = vdwg.mxu0
    %v869 = vmul.f32 %v526, %v526
    %v870 = vsub.f32 %v867, %v869
    %v871 = vadd.f32 %v870, 1e-05
    %v872 = vrsqrt.pop %v871
    %v873 = vmul.f32 %v872, %v871
    %v874 = vmul.f32 %v873, %v872
    %v875 = vmul.f32 0.5, %v874
    %v876 = vsub.f32 1.5, %v875
    %v877 = vmul.f32 %v872, %v876
    %vm878 = vweird.f32 %v871
    %vm879 = vweird.f32 %v872
    %vm880 = vmor %vm878, %vm879
    %v881 = vsel %vm880, %v872, %v877
    %v882 = vmul.f32 %v163, %v881
    %v883 = vmul.f32 %v526, %v882
    %v884 = vsub.f32 %v164, %v883
    %v886 = vperm.slane %v882, 0
    %v888 = vmul.f32 %v143, %v886
    %v889 = vmul.f32 %v144, %v886
    %v890 = vmul.f32 %v145, %v886
    %v891 = vmul.f32 %v146, %v886
    %v893 = vperm.slane %v884, 0
    %v895 = vadd.f32 %v888, %v893
    %v896 = vadd.f32 %v889, %v893
    %v897 = vadd.f32 %v890, %v893
    %v898 = vadd.f32 %v891, %v893
    %v899 = vmax.f32 %v895, 0.0
    %v900 = vmax.f32 %v896, 0.0
    %v901 = vmax.f32 %v897, 0.0
    %v902 = vmax.f32 %v898, 0.0
    %v903 = vld [vmem:[#allocation11] sm:$0xff]
    %v904 = vld [vmem:[#allocation11 + $0x8] sm:$0xff]
    %v905 = vld [vmem:[#allocation11 + $0x10] sm:$0xff]
    %v906 = vld [vmem:[#allocation11 + $0x18] sm:$0xff]
    %vm907 = vcmask 261120
    %v909 = vsel %vm907, %v903, 0
    %v912 = vsel %vm907, %v904, 0
    %v915 = vsel %vm907, %v905, 0
    %v918 = vsel %vm907, %v906, 0
    %920 = vmatpush.msra.mxu0 0.0
    %921 = vmatpush.msra.mxu0 0.0
    %922 = vmatpush.msra.mxu0 0.0
    %923 = vmatpush.msra.mxu0 0.0
    %924 = vmatpush.msra.mxu0 0.0
    %925 = vmatpush.msra.mxu0 0.0
    %926 = vmatpush.msra.mxu0 0.0
    %927 = vmatpush.msra.mxu0 0.0
    %928 = vmatpush.msra.mxu0 0.0
    %929 = vmatpush.msra.mxu0 0.0
    %930 = vmatpush.msra.mxu0 0.0
    %931 = vmatpush.msra.mxu0 0.0
    %v932 = vand.u32 %v902, 4294901760
    %933 = vmatpush.msra.mxu0 %v932
    %v934 = vand.u32 %v901, 4294901760
    %935 = vmatpush.msra.mxu0 %v934
    %v936 = vand.u32 %v900, 4294901760
    %937 = vmatpush.msra.mxu0 %v936
    %v938 = vand.u32 %v899, 4294901760
    %939 = vmatpush.msra.mxu0 %v938
    %v940 = vand.u32 %v909, 4294901760
    %v941 = vsub.f32 %v909, %v940
    %v942 = vand.u32 %v941, 4294901760
    %v943 = vsub.f32 %v941, %v942
    %v944 = vand.u32 %v943, 4294901760
    %945 = vmatmul.f32.gmra.mxu0 %v944
    %v946 = vpop.f32.mrf.mxu0
    %v947 = vadd.f32 0.0, %v946
    %v948 = vand.u32 %v912, 4294901760
    %v949 = vsub.f32 %v912, %v948
    %v950 = vand.u32 %v949, 4294901760
    %v951 = vsub.f32 %v949, %v950
    %v952 = vand.u32 %v951, 4294901760
    %953 = vmatmul.f32.gmra.mxu0 %v952
    %v954 = vpop.f32.mrf.mxu0
    %v955 = vadd.f32 0.0, %v954
    %v956 = vand.u32 %v915, 4294901760
    %v957 = vsub.f32 %v915, %v956
    %v958 = vand.u32 %v957, 4294901760
    %v959 = vsub.f32 %v957, %v958
    %v960 = vand.u32 %v959, 4294901760
    %961 = vmatmul.f32.gmra.mxu0 %v960
    %v962 = vpop.f32.mrf.mxu0
    %v963 = vadd.f32 0.0, %v962
    %v964 = vand.u32 %v918, 4294901760
    %v965 = vsub.f32 %v918, %v964
    %v966 = vand.u32 %v965, 4294901760
    %v967 = vsub.f32 %v965, %v966
    %v968 = vand.u32 %v967, 4294901760
    %969 = vmatmul.f32.gmra.mxu0 %v968
    %v970 = vpop.f32.mrf.mxu0
    %v971 = vadd.f32 0.0, %v970
    %972 = vdwg.mxu0
    %973 = vmatpush.msra.mxu0 0.0
    %974 = vmatpush.msra.mxu0 0.0
    %975 = vmatpush.msra.mxu0 0.0
    %976 = vmatpush.msra.mxu0 0.0
    %977 = vmatpush.msra.mxu0 0.0
    %978 = vmatpush.msra.mxu0 0.0
    %979 = vmatpush.msra.mxu0 0.0
    %980 = vmatpush.msra.mxu0 0.0
    %981 = vmatpush.msra.mxu0 0.0
    %982 = vmatpush.msra.mxu0 0.0
    %983 = vmatpush.msra.mxu0 0.0
    %984 = vmatpush.msra.mxu0 0.0
    %v985 = vand.u32 %v902, 4294901760
    %v986 = vsub.f32 %v902, %v985
    %v987 = vand.u32 %v986, 4294901760
    %v988 = vsub.f32 %v986, %v987
    %v989 = vand.u32 %v988, 4294901760
    %990 = vmatpush.msra.mxu0 %v989
    %v991 = vand.u32 %v901, 4294901760
    %v992 = vsub.f32 %v901, %v991
    %v993 = vand.u32 %v992, 4294901760
    %v994 = vsub.f32 %v992, %v993
    %v995 = vand.u32 %v994, 4294901760
    %996 = vmatpush.msra.mxu0 %v995
    %v997 = vand.u32 %v900, 4294901760
    %v998 = vsub.f32 %v900, %v997
    %v999 = vand.u32 %v998, 4294901760
    %v1000 = vsub.f32 %v998, %v999
    %v1001 = vand.u32 %v1000, 4294901760
    %1002 = vmatpush.msra.mxu0 %v1001
    %v1003 = vand.u32 %v899, 4294901760
    %v1004 = vsub.f32 %v899, %v1003
    %v1005 = vand.u32 %v1004, 4294901760
    %v1006 = vsub.f32 %v1004, %v1005
    %v1007 = vand.u32 %v1006, 4294901760
    %1008 = vmatpush.msra.mxu0 %v1007
    %v1009 = vand.u32 %v909, 4294901760
    %1010 = vmatmul.f32.gmra.mxu0 %v1009
    %v1011 = vpop.f32.mrf.mxu0
    %v1012 = vadd.f32 %v947, %v1011
    %v1013 = vand.u32 %v912, 4294901760
    %1014 = vmatmul.f32.gmra.mxu0 %v1013
    %v1015 = vpop.f32.mrf.mxu0
    %v1016 = vadd.f32 %v955, %v1015
    %v1017 = vand.u32 %v915, 4294901760
    %1018 = vmatmul.f32.gmra.mxu0 %v1017
    %v1019 = vpop.f32.mrf.mxu0
    %v1020 = vadd.f32 %v963, %v1019
    %v1021 = vand.u32 %v918, 4294901760
    %1022 = vmatmul.f32.gmra.mxu0 %v1021
    %v1023 = vpop.f32.mrf.mxu0
    %v1024 = vadd.f32 %v971, %v1023
    %1025 = vdwg.mxu0
    %1026 = vmatpush.msra.mxu0 0.0
    %1027 = vmatpush.msra.mxu0 0.0
    %1028 = vmatpush.msra.mxu0 0.0
    %1029 = vmatpush.msra.mxu0 0.0
    %1030 = vmatpush.msra.mxu0 0.0
    %1031 = vmatpush.msra.mxu0 0.0
    %1032 = vmatpush.msra.mxu0 0.0
    %1033 = vmatpush.msra.mxu0 0.0
    %1034 = vmatpush.msra.mxu0 0.0
    %1035 = vmatpush.msra.mxu0 0.0
    %1036 = vmatpush.msra.mxu0 0.0
    %1037 = vmatpush.msra.mxu0 0.0
    %v1038 = vand.u32 %v902, 4294901760
    %v1039 = vsub.f32 %v902, %v1038
    %1040 = vmatpush.msra.mxu0 %v1039
    %v1041 = vand.u32 %v901, 4294901760
    %v1042 = vsub.f32 %v901, %v1041
    %1043 = vmatpush.msra.mxu0 %v1042
    %v1044 = vand.u32 %v900, 4294901760
    %v1045 = vsub.f32 %v900, %v1044
    %1046 = vmatpush.msra.mxu0 %v1045
    %v1047 = vand.u32 %v899, 4294901760
    %v1048 = vsub.f32 %v899, %v1047
    %1049 = vmatpush.msra.mxu0 %v1048
    %v1050 = vand.u32 %v909, 4294901760
    %v1051 = vsub.f32 %v909, %v1050
    %1052 = vmatmul.f32.gmra.mxu0 %v1051
    %v1053 = vpop.f32.mrf.mxu0
    %v1054 = vadd.f32 %v1012, %v1053
    %v1055 = vand.u32 %v912, 4294901760
    %v1056 = vsub.f32 %v912, %v1055
    %1057 = vmatmul.f32.gmra.mxu0 %v1056
    %v1058 = vpop.f32.mrf.mxu0
    %v1059 = vadd.f32 %v1016, %v1058
    %v1060 = vand.u32 %v915, 4294901760
    %v1061 = vsub.f32 %v915, %v1060
    %1062 = vmatmul.f32.gmra.mxu0 %v1061
    %v1063 = vpop.f32.mrf.mxu0
    %v1064 = vadd.f32 %v1020, %v1063
    %v1065 = vand.u32 %v918, 4294901760
    %v1066 = vsub.f32 %v918, %v1065
    %1067 = vmatmul.f32.gmra.mxu0 %v1066
    %v1068 = vpop.f32.mrf.mxu0
    %v1069 = vadd.f32 %v1024, %v1068
    %1070 = vdwg.mxu0
    %1071 = vmatpush.msra.mxu0 0.0
    %1072 = vmatpush.msra.mxu0 0.0
    %1073 = vmatpush.msra.mxu0 0.0
    %1074 = vmatpush.msra.mxu0 0.0
    %1075 = vmatpush.msra.mxu0 0.0
    %1076 = vmatpush.msra.mxu0 0.0
    %1077 = vmatpush.msra.mxu0 0.0
    %1078 = vmatpush.msra.mxu0 0.0
    %1079 = vmatpush.msra.mxu0 0.0
    %1080 = vmatpush.msra.mxu0 0.0
    %1081 = vmatpush.msra.mxu0 0.0
    %1082 = vmatpush.msra.mxu0 0.0
    %v1083 = vand.u32 %v902, 4294901760
    %1084 = vmatpush.msra.mxu0 %v1083
    %v1085 = vand.u32 %v901, 4294901760
    %1086 = vmatpush.msra.mxu0 %v1085
    %v1087 = vand.u32 %v900, 4294901760
    %1088 = vmatpush.msra.mxu0 %v1087
    %v1089 = vand.u32 %v899, 4294901760
    %1090 = vmatpush.msra.mxu0 %v1089
    %v1091 = vand.u32 %v909, 4294901760
    %v1092 = vsub.f32 %v909, %v1091
    %v1093 = vand.u32 %v1092, 4294901760
    %1094 = vmatmul.f32.gmra.mxu0 %v1093
    %v1095 = vpop.f32.mrf.mxu0
    %v1096 = vadd.f32 %v1054, %v1095
    %v1097 = vand.u32 %v912, 4294901760
    %v1098 = vsub.f32 %v912, %v1097
    %v1099 = vand.u32 %v1098, 4294901760
    %1100 = vmatmul.f32.gmra.mxu0 %v1099
    %v1101 = vpop.f32.mrf.mxu0
    %v1102 = vadd.f32 %v1059, %v1101
    %v1103 = vand.u32 %v915, 4294901760
    %v1104 = vsub.f32 %v915, %v1103
    %v1105 = vand.u32 %v1104, 4294901760
    %1106 = vmatmul.f32.gmra.mxu0 %v1105
    %v1107 = vpop.f32.mrf.mxu0
    %v1108 = vadd.f32 %v1064, %v1107
    %v1109 = vand.u32 %v918, 4294901760
    %v1110 = vsub.f32 %v918, %v1109
    %v1111 = vand.u32 %v1110, 4294901760
    %1112 = vmatmul.f32.gmra.mxu0 %v1111
    %v1113 = vpop.f32.mrf.mxu0
    %v1114 = vadd.f32 %v1069, %v1113
    %1115 = vdwg.mxu0
    %1116 = vmatpush.msra.mxu0 0.0
    %1117 = vmatpush.msra.mxu0 0.0
    %1118 = vmatpush.msra.mxu0 0.0
    %1119 = vmatpush.msra.mxu0 0.0
    %1120 = vmatpush.msra.mxu0 0.0
    %1121 = vmatpush.msra.mxu0 0.0
    %1122 = vmatpush.msra.mxu0 0.0
    %1123 = vmatpush.msra.mxu0 0.0
    %1124 = vmatpush.msra.mxu0 0.0
    %1125 = vmatpush.msra.mxu0 0.0
    %1126 = vmatpush.msra.mxu0 0.0
    %1127 = vmatpush.msra.mxu0 0.0
    %v1128 = vand.u32 %v902, 4294901760
    %v1129 = vsub.f32 %v902, %v1128
    %v1130 = vand.u32 %v1129, 4294901760
    %1131 = vmatpush.msra.mxu0 %v1130
    %v1132 = vand.u32 %v901, 4294901760
    %v1133 = vsub.f32 %v901, %v1132
    %v1134 = vand.u32 %v1133, 4294901760
    %1135 = vmatpush.msra.mxu0 %v1134
    %v1136 = vand.u32 %v900, 4294901760
    %v1137 = vsub.f32 %v900, %v1136
    %v1138 = vand.u32 %v1137, 4294901760
    %1139 = vmatpush.msra.mxu0 %v1138
    %v1140 = vand.u32 %v899, 4294901760
    %v1141 = vsub.f32 %v899, %v1140
    %v1142 = vand.u32 %v1141, 4294901760
    %1143 = vmatpush.msra.mxu0 %v1142
    %v1144 = vand.u32 %v909, 4294901760
    %1145 = vmatmul.f32.gmra.mxu0 %v1144
    %v1146 = vpop.f32.mrf.mxu0
    %v1147 = vadd.f32 %v1096, %v1146
    %v1148 = vand.u32 %v912, 4294901760
    %1149 = vmatmul.f32.gmra.mxu0 %v1148
    %v1150 = vpop.f32.mrf.mxu0
    %v1151 = vadd.f32 %v1102, %v1150
    %v1152 = vand.u32 %v915, 4294901760
    %1153 = vmatmul.f32.gmra.mxu0 %v1152
    %v1154 = vpop.f32.mrf.mxu0
    %v1155 = vadd.f32 %v1108, %v1154
    %v1156 = vand.u32 %v918, 4294901760
    %1157 = vmatmul.f32.gmra.mxu0 %v1156
    %v1158 = vpop.f32.mrf.mxu0
    %v1159 = vadd.f32 %v1114, %v1158
    %1160 = vdwg.mxu0
    %1161 = vmatpush.msra.mxu0 0.0
    %1162 = vmatpush.msra.mxu0 0.0
    %1163 = vmatpush.msra.mxu0 0.0
    %1164 = vmatpush.msra.mxu0 0.0
    %1165 = vmatpush.msra.mxu0 0.0
    %1166 = vmatpush.msra.mxu0 0.0
    %1167 = vmatpush.msra.mxu0 0.0
    %1168 = vmatpush.msra.mxu0 0.0
    %1169 = vmatpush.msra.mxu0 0.0
    %1170 = vmatpush.msra.mxu0 0.0
    %1171 = vmatpush.msra.mxu0 0.0
    %1172 = vmatpush.msra.mxu0 0.0
    %v1173 = vand.u32 %v902, 4294901760
    %1174 = vmatpush.msra.mxu0 %v1173
    %v1175 = vand.u32 %v901, 4294901760
    %1176 = vmatpush.msra.mxu0 %v1175
    %v1177 = vand.u32 %v900, 4294901760
    %1178 = vmatpush.msra.mxu0 %v1177
    %v1179 = vand.u32 %v899, 4294901760
    %1180 = vmatpush.msra.mxu0 %v1179
    %v1181 = vand.u32 %v909, 4294901760
    %1182 = vmatmul.f32.gmra.mxu0 %v1181
    %v1183 = vpop.f32.mrf.mxu0
    %v1184 = vadd.f32 %v1147, %v1183
    %v1185 = vand.u32 %v912, 4294901760
    %1186 = vmatmul.f32.gmra.mxu0 %v1185
    %v1187 = vpop.f32.mrf.mxu0
    %v1188 = vadd.f32 %v1151, %v1187
    %v1189 = vand.u32 %v915, 4294901760
    %1190 = vmatmul.f32.gmra.mxu0 %v1189
    %v1191 = vpop.f32.mrf.mxu0
    %v1192 = vadd.f32 %v1155, %v1191
    %v1193 = vand.u32 %v918, 4294901760
    %1194 = vmatmul.f32.gmra.mxu0 %v1193
    %v1195 = vpop.f32.mrf.mxu0
    %v1196 = vadd.f32 %v1159, %v1195
    %1197 = vdwg.mxu0
    %v1198 = vld [vmem:[#allocation13] sm:$0xff]
    %v1199 = vld [vmem:[#allocation13 + $0x8] sm:$0xff]
    %v1200 = vld [vmem:[#allocation13 + $0x10] sm:$0xff]
    %v1201 = vld [vmem:[#allocation13 + $0x18] sm:$0xff]
    %v1203 = vsel %vm907, %v1198, 0
    %v1206 = vsel %vm907, %v1199, 0
    %v1209 = vsel %vm907, %v1200, 0
    %v1212 = vsel %vm907, %v1201, 0
    %1214 = vmatpush.msra.mxu0 0.0
    %1215 = vmatpush.msra.mxu0 0.0
    %1216 = vmatpush.msra.mxu0 0.0
    %1217 = vmatpush.msra.mxu0 0.0
    %1218 = vmatpush.msra.mxu0 0.0
    %1219 = vmatpush.msra.mxu0 0.0
    %1220 = vmatpush.msra.mxu0 0.0
    %1221 = vmatpush.msra.mxu0 0.0
    %1222 = vmatpush.msra.mxu0 0.0
    %1223 = vmatpush.msra.mxu0 0.0
    %1224 = vmatpush.msra.mxu0 0.0
    %1225 = vmatpush.msra.mxu0 0.0
    %v1226 = vand.u32 %v902, 4294901760
    %1227 = vmatpush.msra.mxu0 %v1226
    %v1228 = vand.u32 %v901, 4294901760
    %1229 = vmatpush.msra.mxu0 %v1228
    %v1230 = vand.u32 %v900, 4294901760
    %1231 = vmatpush.msra.mxu0 %v1230
    %v1232 = vand.u32 %v899, 4294901760
    %1233 = vmatpush.msra.mxu0 %v1232
    %v1234 = vand.u32 %v1203, 4294901760
    %v1235 = vsub.f32 %v1203, %v1234
    %v1236 = vand.u32 %v1235, 4294901760
    %v1237 = vsub.f32 %v1235, %v1236
    %v1238 = vand.u32 %v1237, 4294901760
    %1239 = vmatmul.f32.gmra.mxu0 %v1238
    %v1240 = vpop.f32.mrf.mxu0
    %v1241 = vadd.f32 0.0, %v1240
    %v1242 = vand.u32 %v1206, 4294901760
    %v1243 = vsub.f32 %v1206, %v1242
    %v1244 = vand.u32 %v1243, 4294901760
    %v1245 = vsub.f32 %v1243, %v1244
    %v1246 = vand.u32 %v1245, 4294901760
    %1247 = vmatmul.f32.gmra.mxu0 %v1246
    %v1248 = vpop.f32.mrf.mxu0
    %v1249 = vadd.f32 0.0, %v1248
    %v1250 = vand.u32 %v1209, 4294901760
    %v1251 = vsub.f32 %v1209, %v1250
    %v1252 = vand.u32 %v1251, 4294901760
    %v1253 = vsub.f32 %v1251, %v1252
    %v1254 = vand.u32 %v1253, 4294901760
    %1255 = vmatmul.f32.gmra.mxu0 %v1254
    %v1256 = vpop.f32.mrf.mxu0
    %v1257 = vadd.f32 0.0, %v1256
    %v1258 = vand.u32 %v1212, 4294901760
    %v1259 = vsub.f32 %v1212, %v1258
    %v1260 = vand.u32 %v1259, 4294901760
    %v1261 = vsub.f32 %v1259, %v1260
    %v1262 = vand.u32 %v1261, 4294901760
    %1263 = vmatmul.f32.gmra.mxu0 %v1262
    %v1264 = vpop.f32.mrf.mxu0
    %v1265 = vadd.f32 0.0, %v1264
    %1266 = vdwg.mxu0
    %1267 = vmatpush.msra.mxu0 0.0
    %1268 = vmatpush.msra.mxu0 0.0
    %1269 = vmatpush.msra.mxu0 0.0
    %1270 = vmatpush.msra.mxu0 0.0
    %1271 = vmatpush.msra.mxu0 0.0
    %1272 = vmatpush.msra.mxu0 0.0
    %1273 = vmatpush.msra.mxu0 0.0
    %1274 = vmatpush.msra.mxu0 0.0
    %1275 = vmatpush.msra.mxu0 0.0
    %1276 = vmatpush.msra.mxu0 0.0
    %1277 = vmatpush.msra.mxu0 0.0
    %1278 = vmatpush.msra.mxu0 0.0
    %v1279 = vand.u32 %v902, 4294901760
    %v1280 = vsub.f32 %v902, %v1279
    %v1281 = vand.u32 %v1280, 4294901760
    %v1282 = vsub.f32 %v1280, %v1281
    %v1283 = vand.u32 %v1282, 4294901760
    %1284 = vmatpush.msra.mxu0 %v1283
    %v1285 = vand.u32 %v901, 4294901760
    %v1286 = vsub.f32 %v901, %v1285
    %v1287 = vand.u32 %v1286, 4294901760
    %v1288 = vsub.f32 %v1286, %v1287
    %v1289 = vand.u32 %v1288, 4294901760
    %1290 = vmatpush.msra.mxu0 %v1289
    %v1291 = vand.u32 %v900, 4294901760
    %v1292 = vsub.f32 %v900, %v1291
    %v1293 = vand.u32 %v1292, 4294901760
    %v1294 = vsub.f32 %v1292, %v1293
    %v1295 = vand.u32 %v1294, 4294901760
    %1296 = vmatpush.msra.mxu0 %v1295
    %v1297 = vand.u32 %v899, 4294901760
    %v1298 = vsub.f32 %v899, %v1297
    %v1299 = vand.u32 %v1298, 4294901760
    %v1300 = vsub.f32 %v1298, %v1299
    %v1301 = vand.u32 %v1300, 4294901760
    %1302 = vmatpush.msra.mxu0 %v1301
    %v1303 = vand.u32 %v1203, 4294901760
    %1304 = vmatmul.f32.gmra.mxu0 %v1303
    %v1305 = vpop.f32.mrf.mxu0
    %v1306 = vadd.f32 %v1241, %v1305
    %v1307 = vand.u32 %v1206, 4294901760
    %1308 = vmatmul.f32.gmra.mxu0 %v1307
    %v1309 = vpop.f32.mrf.mxu0
    %v1310 = vadd.f32 %v1249, %v1309
    %v1311 = vand.u32 %v1209, 4294901760
    %1312 = vmatmul.f32.gmra.mxu0 %v1311
    %v1313 = vpop.f32.mrf.mxu0
    %v1314 = vadd.f32 %v1257, %v1313
    %v1315 = vand.u32 %v1212, 4294901760
    %1316 = vmatmul.f32.gmra.mxu0 %v1315
    %v1317 = vpop.f32.mrf.mxu0
    %v1318 = vadd.f32 %v1265, %v1317
    %1319 = vdwg.mxu0
    %1320 = vmatpush.msra.mxu0 0.0
    %1321 = vmatpush.msra.mxu0 0.0
    %1322 = vmatpush.msra.mxu0 0.0
    %1323 = vmatpush.msra.mxu0 0.0
    %1324 = vmatpush.msra.mxu0 0.0
    %1325 = vmatpush.msra.mxu0 0.0
    %1326 = vmatpush.msra.mxu0 0.0
    %1327 = vmatpush.msra.mxu0 0.0
    %1328 = vmatpush.msra.mxu0 0.0
    %1329 = vmatpush.msra.mxu0 0.0
    %1330 = vmatpush.msra.mxu0 0.0
    %1331 = vmatpush.msra.mxu0 0.0
    %v1332 = vand.u32 %v902, 4294901760
    %v1333 = vsub.f32 %v902, %v1332
    %1334 = vmatpush.msra.mxu0 %v1333
    %v1335 = vand.u32 %v901, 4294901760
    %v1336 = vsub.f32 %v901, %v1335
    %1337 = vmatpush.msra.mxu0 %v1336
    %v1338 = vand.u32 %v900, 4294901760
    %v1339 = vsub.f32 %v900, %v1338
    %1340 = vmatpush.msra.mxu0 %v1339
    %v1341 = vand.u32 %v899, 4294901760
    %v1342 = vsub.f32 %v899, %v1341
    %1343 = vmatpush.msra.mxu0 %v1342
    %v1344 = vand.u32 %v1203, 4294901760
    %v1345 = vsub.f32 %v1203, %v1344
    %1346 = vmatmul.f32.gmra.mxu0 %v1345
    %v1347 = vpop.f32.mrf.mxu0
    %v1348 = vadd.f32 %v1306, %v1347
    %v1349 = vand.u32 %v1206, 4294901760
    %v1350 = vsub.f32 %v1206, %v1349
    %1351 = vmatmul.f32.gmra.mxu0 %v1350
    %v1352 = vpop.f32.mrf.mxu0
    %v1353 = vadd.f32 %v1310, %v1352
    %v1354 = vand.u32 %v1209, 4294901760
    %v1355 = vsub.f32 %v1209, %v1354
    %1356 = vmatmul.f32.gmra.mxu0 %v1355
    %v1357 = vpop.f32.mrf.mxu0
    %v1358 = vadd.f32 %v1314, %v1357
    %v1359 = vand.u32 %v1212, 4294901760
    %v1360 = vsub.f32 %v1212, %v1359
    %1361 = vmatmul.f32.gmra.mxu0 %v1360
    %v1362 = vpop.f32.mrf.mxu0
    %v1363 = vadd.f32 %v1318, %v1362
    %1364 = vdwg.mxu0
    %1365 = vmatpush.msra.mxu0 0.0
    %1366 = vmatpush.msra.mxu0 0.0
    %1367 = vmatpush.msra.mxu0 0.0
    %1368 = vmatpush.msra.mxu0 0.0
    %1369 = vmatpush.msra.mxu0 0.0
    %1370 = vmatpush.msra.mxu0 0.0
    %1371 = vmatpush.msra.mxu0 0.0
    %1372 = vmatpush.msra.mxu0 0.0
    %1373 = vmatpush.msra.mxu0 0.0
    %1374 = vmatpush.msra.mxu0 0.0
    %1375 = vmatpush.msra.mxu0 0.0
    %1376 = vmatpush.msra.mxu0 0.0
    %v1377 = vand.u32 %v902, 4294901760
    %1378 = vmatpush.msra.mxu0 %v1377
    %v1379 = vand.u32 %v901, 4294901760
    %1380 = vmatpush.msra.mxu0 %v1379
    %v1381 = vand.u32 %v900, 4294901760
    %1382 = vmatpush.msra.mxu0 %v1381
    %v1383 = vand.u32 %v899, 4294901760
    %1384 = vmatpush.msra.mxu0 %v1383
    %v1385 = vand.u32 %v1203, 4294901760
    %v1386 = vsub.f32 %v1203, %v1385
    %v1387 = vand.u32 %v1386, 4294901760
    %1388 = vmatmul.f32.gmra.mxu0 %v1387
    %v1389 = vpop.f32.mrf.mxu0
    %v1390 = vadd.f32 %v1348, %v1389
    %v1391 = vand.u32 %v1206, 4294901760
    %v1392 = vsub.f32 %v1206, %v1391
    %v1393 = vand.u32 %v1392, 4294901760
    %1394 = vmatmul.f32.gmra.mxu0 %v1393
    %v1395 = vpop.f32.mrf.mxu0
    %v1396 = vadd.f32 %v1353, %v1395
    %v1397 = vand.u32 %v1209, 4294901760
    %v1398 = vsub.f32 %v1209, %v1397
    %v1399 = vand.u32 %v1398, 4294901760
    %1400 = vmatmul.f32.gmra.mxu0 %v1399
    %v1401 = vpop.f32.mrf.mxu0
    %v1402 = vadd.f32 %v1358, %v1401
    %v1403 = vand.u32 %v1212, 4294901760
    %v1404 = vsub.f32 %v1212, %v1403
    %v1405 = vand.u32 %v1404, 4294901760
    %1406 = vmatmul.f32.gmra.mxu0 %v1405
    %v1407 = vpop.f32.mrf.mxu0
    %v1408 = vadd.f32 %v1363, %v1407
    %1409 = vdwg.mxu0
    %1410 = vmatpush.msra.mxu0 0.0
    %1411 = vmatpush.msra.mxu0 0.0
    %1412 = vmatpush.msra.mxu0 0.0
    %1413 = vmatpush.msra.mxu0 0.0
    %1414 = vmatpush.msra.mxu0 0.0
    %1415 = vmatpush.msra.mxu0 0.0
    %1416 = vmatpush.msra.mxu0 0.0
    %1417 = vmatpush.msra.mxu0 0.0
    %1418 = vmatpush.msra.mxu0 0.0
    %1419 = vmatpush.msra.mxu0 0.0
    %1420 = vmatpush.msra.mxu0 0.0
    %1421 = vmatpush.msra.mxu0 0.0
    %v1422 = vand.u32 %v902, 4294901760
    %v1423 = vsub.f32 %v902, %v1422
    %v1424 = vand.u32 %v1423, 4294901760
    %1425 = vmatpush.msra.mxu0 %v1424
    %v1426 = vand.u32 %v901, 4294901760
    %v1427 = vsub.f32 %v901, %v1426
    %v1428 = vand.u32 %v1427, 4294901760
    %1429 = vmatpush.msra.mxu0 %v1428
    %v1430 = vand.u32 %v900, 4294901760
    %v1431 = vsub.f32 %v900, %v1430
    %v1432 = vand.u32 %v1431, 4294901760
    %1433 = vmatpush.msra.mxu0 %v1432
    %v1434 = vand.u32 %v899, 4294901760
    %v1435 = vsub.f32 %v899, %v1434
    %v1436 = vand.u32 %v1435, 4294901760
    %1437 = vmatpush.msra.mxu0 %v1436
    %v1438 = vand.u32 %v1203, 4294901760
    %1439 = vmatmul.f32.gmra.mxu0 %v1438
    %v1440 = vpop.f32.mrf.mxu0
    %v1441 = vadd.f32 %v1390, %v1440
    %v1442 = vand.u32 %v1206, 4294901760
    %1443 = vmatmul.f32.gmra.mxu0 %v1442
    %v1444 = vpop.f32.mrf.mxu0
    %v1445 = vadd.f32 %v1396, %v1444
    %v1446 = vand.u32 %v1209, 4294901760
    %1447 = vmatmul.f32.gmra.mxu0 %v1446
    %v1448 = vpop.f32.mrf.mxu0
    %v1449 = vadd.f32 %v1402, %v1448
    %v1450 = vand.u32 %v1212, 4294901760
    %1451 = vmatmul.f32.gmra.mxu0 %v1450
    %v1452 = vpop.f32.mrf.mxu0
    %v1453 = vadd.f32 %v1408, %v1452
    %1454 = vdwg.mxu0
    %1455 = vmatpush.msra.mxu0 0.0
    %1456 = vmatpush.msra.mxu0 0.0
    %1457 = vmatpush.msra.mxu0 0.0
    %1458 = vmatpush.msra.mxu0 0.0
    %1459 = vmatpush.msra.mxu0 0.0
    %1460 = vmatpush.msra.mxu0 0.0
    %1461 = vmatpush.msra.mxu0 0.0
    %1462 = vmatpush.msra.mxu0 0.0
    %1463 = vmatpush.msra.mxu0 0.0
    %1464 = vmatpush.msra.mxu0 0.0
    %1465 = vmatpush.msra.mxu0 0.0
    %1466 = vmatpush.msra.mxu0 0.0
    %v1467 = vand.u32 %v902, 4294901760
    %1468 = vmatpush.msra.mxu0 %v1467
    %v1469 = vand.u32 %v901, 4294901760
    %1470 = vmatpush.msra.mxu0 %v1469
    %v1471 = vand.u32 %v900, 4294901760
    %1472 = vmatpush.msra.mxu0 %v1471
    %v1473 = vand.u32 %v899, 4294901760
    %1474 = vmatpush.msra.mxu0 %v1473
    %v1475 = vand.u32 %v1203, 4294901760
    %1476 = vmatmul.f32.gmra.mxu0 %v1475
    %v1477 = vpop.f32.mrf.mxu0
    %v1478 = vadd.f32 %v1441, %v1477
    %v1479 = vand.u32 %v1206, 4294901760
    %1480 = vmatmul.f32.gmra.mxu0 %v1479
    %v1481 = vpop.f32.mrf.mxu0
    %v1482 = vadd.f32 %v1445, %v1481
    %v1483 = vand.u32 %v1209, 4294901760
    %1484 = vmatmul.f32.gmra.mxu0 %v1483
    %v1485 = vpop.f32.mrf.mxu0
    %v1486 = vadd.f32 %v1449, %v1485
    %v1487 = vand.u32 %v1212, 4294901760
    %1488 = vmatmul.f32.gmra.mxu0 %v1487
    %v1489 = vpop.f32.mrf.mxu0
    %v1490 = vadd.f32 %v1453, %v1489
    %1491 = vdwg.mxu0
    %v1492 = vld [vmem:[#allocation8] sm:$0xff]
    %v1493 = vld [vmem:[#allocation8 + $0x8] sm:$0xff]
    %v1494 = vld [vmem:[#allocation8 + $0x10] sm:$0xff]
    %v1495 = vld [vmem:[#allocation8 + $0x18] sm:$0xff]
    %v1496 = vld [vmem:[#allocation8 + $0x20] sm:$0xff]
    %v1497 = vld [vmem:[#allocation8 + $0x28] sm:$0xff]
    %v1498 = vld [vmem:[#allocation8 + $0x30] sm:$0xff]
    %v1499 = vld [vmem:[#allocation8 + $0x38] sm:$0xff]
    %v1500 = vld [vmem:[#allocation8 + $0x40] sm:$0xff]
    %v1501 = vld [vmem:[#allocation8 + $0x48] sm:$0xff]
    %v1502 = vld [vmem:[#allocation8 + $0x50] sm:$0xff]
    %v1503 = vld [vmem:[#allocation8 + $0x58] sm:$0xff]
    %v1504 = vld [vmem:[#allocation8 + $0x60] sm:$0xff]
    %v1505 = vld [vmem:[#allocation8 + $0x68] sm:$0xff]
    %v1506 = vld [vmem:[#allocation8 + $0x70] sm:$0xff]
    %v1507 = vld [vmem:[#allocation8 + $0x78] sm:$0xff]
    %s1508 = scalar_lea.vmem [#allocation8], 128
    %v1509 = vld [vmem:[%s1508] sm:$0xff]
    %v1510 = vld [vmem:[%s1508 + $0x8] sm:$0xff]
    %v1511 = vld [vmem:[%s1508 + $0x10] sm:$0xff]
    %v1512 = vld [vmem:[%s1508 + $0x18] sm:$0xff]
    %v1513 = vld [vmem:[%s1508 + $0x20] sm:$0xff]
    %v1514 = vld [vmem:[%s1508 + $0x28] sm:$0xff]
    %v1515 = vld [vmem:[%s1508 + $0x30] sm:$0xff]
    %v1516 = vld [vmem:[%s1508 + $0x38] sm:$0xff]
    %v1517 = vld [vmem:[%s1508 + $0x40] sm:$0xff]
    %v1518 = vld [vmem:[%s1508 + $0x48] sm:$0xff]
    %v1519 = vld [vmem:[%s1508 + $0x50] sm:$0xff]
    %v1520 = vld [vmem:[%s1508 + $0x58] sm:$0xff]
    %v1521 = vld [vmem:[%s1508 + $0x60] sm:$0xff]
    %v1522 = vld [vmem:[%s1508 + $0x68] sm:$0xff]
    %v1523 = vld [vmem:[%s1508 + $0x70] sm:$0xff]
    %v1524 = vld [vmem:[%s1508 + $0x78] sm:$0xff]
    %v1525 = vand.u32 %v1524, 4294901760
    %1526 = vmatpush.msra.mxu0 %v1525
    %v1527 = vand.u32 %v1523, 4294901760
    %1528 = vmatpush.msra.mxu0 %v1527
    %v1529 = vand.u32 %v1522, 4294901760
    %1530 = vmatpush.msra.mxu0 %v1529
    %v1531 = vand.u32 %v1521, 4294901760
    %1532 = vmatpush.msra.mxu0 %v1531
    %v1533 = vand.u32 %v1520, 4294901760
    %1534 = vmatpush.msra.mxu0 %v1533
    %v1535 = vand.u32 %v1519, 4294901760
    %1536 = vmatpush.msra.mxu0 %v1535
    %v1537 = vand.u32 %v1518, 4294901760
    %1538 = vmatpush.msra.mxu0 %v1537
    %v1539 = vand.u32 %v1517, 4294901760
    %1540 = vmatpush.msra.mxu0 %v1539
    %v1541 = vand.u32 %v1516, 4294901760
    %1542 = vmatpush.msra.mxu0 %v1541
    %v1543 = vand.u32 %v1515, 4294901760
    %1544 = vmatpush.msra.mxu0 %v1543
    %v1545 = vand.u32 %v1514, 4294901760
    %1546 = vmatpush.msra.mxu0 %v1545
    %v1547 = vand.u32 %v1513, 4294901760
    %1548 = vmatpush.msra.mxu0 %v1547
    %v1549 = vand.u32 %v1512, 4294901760
    %1550 = vmatpush.msra.mxu0 %v1549
    %v1551 = vand.u32 %v1511, 4294901760
    %1552 = vmatpush.msra.mxu0 %v1551
    %v1553 = vand.u32 %v1510, 4294901760
    %1554 = vmatpush.msra.mxu0 %v1553
    %v1555 = vand.u32 %v1509, 4294901760
    %1556 = vmatpush.msra.mxu0 %v1555
    %v1557 = vand.u32 %v899, 4294901760
    %v1558 = vsub.f32 %v899, %v1557
    %v1559 = vand.u32 %v1558, 4294901760
    %v1560 = vsub.f32 %v1558, %v1559
    %v1561 = vand.u32 %v1560, 4294901760
    %1562 = vmatmul.f32.gmra.mxu0 %v1561
    %v1563 = vpop.f32.mrf.mxu0
    %v1564 = vadd.f32 0.0, %v1563
    %v1565 = vand.u32 %v900, 4294901760
    %v1566 = vsub.f32 %v900, %v1565
    %v1567 = vand.u32 %v1566, 4294901760
    %v1568 = vsub.f32 %v1566, %v1567
    %v1569 = vand.u32 %v1568, 4294901760
    %1570 = vmatmul.f32.gmra.mxu0 %v1569
    %v1571 = vpop.f32.mrf.mxu0
    %v1572 = vadd.f32 0.0, %v1571
    %v1573 = vand.u32 %v901, 4294901760
    %v1574 = vsub.f32 %v901, %v1573
    %v1575 = vand.u32 %v1574, 4294901760
    %v1576 = vsub.f32 %v1574, %v1575
    %v1577 = vand.u32 %v1576, 4294901760
    %1578 = vmatmul.f32.gmra.mxu0 %v1577
    %v1579 = vpop.f32.mrf.mxu0
    %v1580 = vadd.f32 0.0, %v1579
    %v1581 = vand.u32 %v902, 4294901760
    %v1582 = vsub.f32 %v902, %v1581
    %v1583 = vand.u32 %v1582, 4294901760
    %v1584 = vsub.f32 %v1582, %v1583
    %v1585 = vand.u32 %v1584, 4294901760
    %1586 = vmatmul.f32.gmra.mxu0 %v1585
    %v1587 = vpop.f32.mrf.mxu0
    %v1588 = vadd.f32 0.0, %v1587
    %1589 = vdwg.mxu0
    %v1590 = vand.u32 %v1524, 4294901760
    %v1591 = vsub.f32 %v1524, %v1590
    %v1592 = vand.u32 %v1591, 4294901760
    %v1593 = vsub.f32 %v1591, %v1592
    %v1594 = vand.u32 %v1593, 4294901760
    %1595 = vmatpush.msra.mxu0 %v1594
    %v1596 = vand.u32 %v1523, 4294901760
    %v1597 = vsub.f32 %v1523, %v1596
    %v1598 = vand.u32 %v1597, 4294901760
    %v1599 = vsub.f32 %v1597, %v1598
    %v1600 = vand.u32 %v1599, 4294901760
    %1601 = vmatpush.msra.mxu0 %v1600
    %v1602 = vand.u32 %v1522, 4294901760
    %v1603 = vsub.f32 %v1522, %v1602
    %v1604 = vand.u32 %v1603, 4294901760
    %v1605 = vsub.f32 %v1603, %v1604
    %v1606 = vand.u32 %v1605, 4294901760
    %1607 = vmatpush.msra.mxu0 %v1606
    %v1608 = vand.u32 %v1521, 4294901760
    %v1609 = vsub.f32 %v1521, %v1608
    %v1610 = vand.u32 %v1609, 4294901760
    %v1611 = vsub.f32 %v1609, %v1610
    %v1612 = vand.u32 %v1611, 4294901760
    %1613 = vmatpush.msra.mxu0 %v1612
    %v1614 = vand.u32 %v1520, 4294901760
    %v1615 = vsub.f32 %v1520, %v1614
    %v1616 = vand.u32 %v1615, 4294901760
    %v1617 = vsub.f32 %v1615, %v1616
    %v1618 = vand.u32 %v1617, 4294901760
    %1619 = vmatpush.msra.mxu0 %v1618
    %v1620 = vand.u32 %v1519, 4294901760
    %v1621 = vsub.f32 %v1519, %v1620
    %v1622 = vand.u32 %v1621, 4294901760
    %v1623 = vsub.f32 %v1621, %v1622
    %v1624 = vand.u32 %v1623, 4294901760
    %1625 = vmatpush.msra.mxu0 %v1624
    %v1626 = vand.u32 %v1518, 4294901760
    %v1627 = vsub.f32 %v1518, %v1626
    %v1628 = vand.u32 %v1627, 4294901760
    %v1629 = vsub.f32 %v1627, %v1628
    %v1630 = vand.u32 %v1629, 4294901760
    %1631 = vmatpush.msra.mxu0 %v1630
    %v1632 = vand.u32 %v1517, 4294901760
    %v1633 = vsub.f32 %v1517, %v1632
    %v1634 = vand.u32 %v1633, 4294901760
    %v1635 = vsub.f32 %v1633, %v1634
    %v1636 = vand.u32 %v1635, 4294901760
    %1637 = vmatpush.msra.mxu0 %v1636
    %v1638 = vand.u32 %v1516, 4294901760
    %v1639 = vsub.f32 %v1516, %v1638
    %v1640 = vand.u32 %v1639, 4294901760
    %v1641 = vsub.f32 %v1639, %v1640
    %v1642 = vand.u32 %v1641, 4294901760
    %1643 = vmatpush.msra.mxu0 %v1642
    %v1644 = vand.u32 %v1515, 4294901760
    %v1645 = vsub.f32 %v1515, %v1644
    %v1646 = vand.u32 %v1645, 4294901760
    %v1647 = vsub.f32 %v1645, %v1646
    %v1648 = vand.u32 %v1647, 4294901760
    %1649 = vmatpush.msra.mxu0 %v1648
    %v1650 = vand.u32 %v1514, 4294901760
    %v1651 = vsub.f32 %v1514, %v1650
    %v1652 = vand.u32 %v1651, 4294901760
    %v1653 = vsub.f32 %v1651, %v1652
    %v1654 = vand.u32 %v1653, 4294901760
    %1655 = vmatpush.msra.mxu0 %v1654
    %v1656 = vand.u32 %v1513, 4294901760
    %v1657 = vsub.f32 %v1513, %v1656
    %v1658 = vand.u32 %v1657, 4294901760
    %v1659 = vsub.f32 %v1657, %v1658
    %v1660 = vand.u32 %v1659, 4294901760
    %1661 = vmatpush.msra.mxu0 %v1660
    %v1662 = vand.u32 %v1512, 4294901760
    %v1663 = vsub.f32 %v1512, %v1662
    %v1664 = vand.u32 %v1663, 4294901760
    %v1665 = vsub.f32 %v1663, %v1664
    %v1666 = vand.u32 %v1665, 4294901760
    %1667 = vmatpush.msra.mxu0 %v1666
    %v1668 = vand.u32 %v1511, 4294901760
    %v1669 = vsub.f32 %v1511, %v1668
    %v1670 = vand.u32 %v1669, 4294901760
    %v1671 = vsub.f32 %v1669, %v1670
    %v1672 = vand.u32 %v1671, 4294901760
    %1673 = vmatpush.msra.mxu0 %v1672
    %v1674 = vand.u32 %v1510, 4294901760
    %v1675 = vsub.f32 %v1510, %v1674
    %v1676 = vand.u32 %v1675, 4294901760
    %v1677 = vsub.f32 %v1675, %v1676
    %v1678 = vand.u32 %v1677, 4294901760
    %1679 = vmatpush.msra.mxu0 %v1678
    %v1680 = vand.u32 %v1509, 4294901760
    %v1681 = vsub.f32 %v1509, %v1680
    %v1682 = vand.u32 %v1681, 4294901760
    %v1683 = vsub.f32 %v1681, %v1682
    %v1684 = vand.u32 %v1683, 4294901760
    %1685 = vmatpush.msra.mxu0 %v1684
    %v1686 = vand.u32 %v899, 4294901760
    %1687 = vmatmul.f32.gmra.mxu0 %v1686
    %v1688 = vpop.f32.mrf.mxu0
    %v1689 = vadd.f32 %v1564, %v1688
    %v1690 = vand.u32 %v900, 4294901760
    %1691 = vmatmul.f32.gmra.mxu0 %v1690
    %v1692 = vpop.f32.mrf.mxu0
    %v1693 = vadd.f32 %v1572, %v1692
    %v1694 = vand.u32 %v901, 4294901760
    %1695 = vmatmul.f32.gmra.mxu0 %v1694
    %v1696 = vpop.f32.mrf.mxu0
    %v1697 = vadd.f32 %v1580, %v1696
    %v1698 = vand.u32 %v902, 4294901760
    %1699 = vmatmul.f32.gmra.mxu0 %v1698
    %v1700 = vpop.f32.mrf.mxu0
    %v1701 = vadd.f32 %v1588, %v1700
    %1702 = vdwg.mxu0
    %v1703 = vand.u32 %v1524, 4294901760
    %v1704 = vsub.f32 %v1524, %v1703
    %1705 = vmatpush.msra.mxu0 %v1704
    %v1706 = vand.u32 %v1523, 4294901760
    %v1707 = vsub.f32 %v1523, %v1706
    %1708 = vmatpush.msra.mxu0 %v1707
    %v1709 = vand.u32 %v1522, 4294901760
    %v1710 = vsub.f32 %v1522, %v1709
    %1711 = vmatpush.msra.mxu0 %v1710
    %v1712 = vand.u32 %v1521, 4294901760
    %v1713 = vsub.f32 %v1521, %v1712
    %1714 = vmatpush.msra.mxu0 %v1713
    %v1715 = vand.u32 %v1520, 4294901760
    %v1716 = vsub.f32 %v1520, %v1715
    %1717 = vmatpush.msra.mxu0 %v1716
    %v1718 = vand.u32 %v1519, 4294901760
    %v1719 = vsub.f32 %v1519, %v1718
    %1720 = vmatpush.msra.mxu0 %v1719
    %v1721 = vand.u32 %v1518, 4294901760
    %v1722 = vsub.f32 %v1518, %v1721
    %1723 = vmatpush.msra.mxu0 %v1722
    %v1724 = vand.u32 %v1517, 4294901760
    %v1725 = vsub.f32 %v1517, %v1724
    %1726 = vmatpush.msra.mxu0 %v1725
    %v1727 = vand.u32 %v1516, 4294901760
    %v1728 = vsub.f32 %v1516, %v1727
    %1729 = vmatpush.msra.mxu0 %v1728
    %v1730 = vand.u32 %v1515, 4294901760
    %v1731 = vsub.f32 %v1515, %v1730
    %1732 = vmatpush.msra.mxu0 %v1731
    %v1733 = vand.u32 %v1514, 4294901760
    %v1734 = vsub.f32 %v1514, %v1733
    %1735 = vmatpush.msra.mxu0 %v1734
    %v1736 = vand.u32 %v1513, 4294901760
    %v1737 = vsub.f32 %v1513, %v1736
    %1738 = vmatpush.msra.mxu0 %v1737
    %v1739 = vand.u32 %v1512, 4294901760
    %v1740 = vsub.f32 %v1512, %v1739
    %1741 = vmatpush.msra.mxu0 %v1740
    %v1742 = vand.u32 %v1511, 4294901760
    %v1743 = vsub.f32 %v1511, %v1742
    %1744 = vmatpush.msra.mxu0 %v1743
    %v1745 = vand.u32 %v1510, 4294901760
    %v1746 = vsub.f32 %v1510, %v1745
    %1747 = vmatpush.msra.mxu0 %v1746
    %v1748 = vand.u32 %v1509, 4294901760
    %v1749 = vsub.f32 %v1509, %v1748
    %1750 = vmatpush.msra.mxu0 %v1749
    %v1751 = vand.u32 %v899, 4294901760
    %v1752 = vsub.f32 %v899, %v1751
    %1753 = vmatmul.f32.gmra.mxu0 %v1752
    %v1754 = vpop.f32.mrf.mxu0
    %v1755 = vadd.f32 %v1689, %v1754
    %v1756 = vand.u32 %v900, 4294901760
    %v1757 = vsub.f32 %v900, %v1756
    %1758 = vmatmul.f32.gmra.mxu0 %v1757
    %v1759 = vpop.f32.mrf.mxu0
    %v1760 = vadd.f32 %v1693, %v1759
    %v1761 = vand.u32 %v901, 4294901760
    %v1762 = vsub.f32 %v901, %v1761
    %1763 = vmatmul.f32.gmra.mxu0 %v1762
    %v1764 = vpop.f32.mrf.mxu0
    %v1765 = vadd.f32 %v1697, %v1764
    %v1766 = vand.u32 %v902, 4294901760
    %v1767 = vsub.f32 %v902, %v1766
    %1768 = vmatmul.f32.gmra.mxu0 %v1767
    %v1769 = vpop.f32.mrf.mxu0
    %v1770 = vadd.f32 %v1701, %v1769
    %1771 = vdwg.mxu0
    %v1772 = vand.u32 %v1524, 4294901760
    %1773 = vmatpush.msra.mxu0 %v1772
    %v1774 = vand.u32 %v1523, 4294901760
    %1775 = vmatpush.msra.mxu0 %v1774
    %v1776 = vand.u32 %v1522, 4294901760
    %1777 = vmatpush.msra.mxu0 %v1776
    %v1778 = vand.u32 %v1521, 4294901760
    %1779 = vmatpush.msra.mxu0 %v1778
    %v1780 = vand.u32 %v1520, 4294901760
    %1781 = vmatpush.msra.mxu0 %v1780
    %v1782 = vand.u32 %v1519, 4294901760
    %1783 = vmatpush.msra.mxu0 %v1782
    %v1784 = vand.u32 %v1518, 4294901760
    %1785 = vmatpush.msra.mxu0 %v1784
    %v1786 = vand.u32 %v1517, 4294901760
    %1787 = vmatpush.msra.mxu0 %v1786
    %v1788 = vand.u32 %v1516, 4294901760
    %1789 = vmatpush.msra.mxu0 %v1788
    %v1790 = vand.u32 %v1515, 4294901760
    %1791 = vmatpush.msra.mxu0 %v1790
    %v1792 = vand.u32 %v1514, 4294901760
    %1793 = vmatpush.msra.mxu0 %v1792
    %v1794 = vand.u32 %v1513, 4294901760
    %1795 = vmatpush.msra.mxu0 %v1794
    %v1796 = vand.u32 %v1512, 4294901760
    %1797 = vmatpush.msra.mxu0 %v1796
    %v1798 = vand.u32 %v1511, 4294901760
    %1799 = vmatpush.msra.mxu0 %v1798
    %v1800 = vand.u32 %v1510, 4294901760
    %1801 = vmatpush.msra.mxu0 %v1800
    %v1802 = vand.u32 %v1509, 4294901760
    %1803 = vmatpush.msra.mxu0 %v1802
    %v1804 = vand.u32 %v899, 4294901760
    %v1805 = vsub.f32 %v899, %v1804
    %v1806 = vand.u32 %v1805, 4294901760
    %1807 = vmatmul.f32.gmra.mxu0 %v1806
    %v1808 = vpop.f32.mrf.mxu0
    %v1809 = vadd.f32 %v1755, %v1808
    %v1810 = vand.u32 %v900, 4294901760
    %v1811 = vsub.f32 %v900, %v1810
    %v1812 = vand.u32 %v1811, 4294901760
    %1813 = vmatmul.f32.gmra.mxu0 %v1812
    %v1814 = vpop.f32.mrf.mxu0
    %v1815 = vadd.f32 %v1760, %v1814
    %v1816 = vand.u32 %v901, 4294901760
    %v1817 = vsub.f32 %v901, %v1816
    %v1818 = vand.u32 %v1817, 4294901760
    %1819 = vmatmul.f32.gmra.mxu0 %v1818
    %v1820 = vpop.f32.mrf.mxu0
    %v1821 = vadd.f32 %v1765, %v1820
    %v1822 = vand.u32 %v902, 4294901760
    %v1823 = vsub.f32 %v902, %v1822
    %v1824 = vand.u32 %v1823, 4294901760
    %1825 = vmatmul.f32.gmra.mxu0 %v1824
    %v1826 = vpop.f32.mrf.mxu0
    %v1827 = vadd.f32 %v1770, %v1826
    %1828 = vdwg.mxu0
    %v1829 = vand.u32 %v1524, 4294901760
    %v1830 = vsub.f32 %v1524, %v1829
    %v1831 = vand.u32 %v1830, 4294901760
    %1832 = vmatpush.msra.mxu0 %v1831
    %v1833 = vand.u32 %v1523, 4294901760
    %v1834 = vsub.f32 %v1523, %v1833
    %v1835 = vand.u32 %v1834, 4294901760
    %1836 = vmatpush.msra.mxu0 %v1835
    %v1837 = vand.u32 %v1522, 4294901760
    %v1838 = vsub.f32 %v1522, %v1837
    %v1839 = vand.u32 %v1838, 4294901760
    %1840 = vmatpush.msra.mxu0 %v1839
    %v1841 = vand.u32 %v1521, 4294901760
    %v1842 = vsub.f32 %v1521, %v1841
    %v1843 = vand.u32 %v1842, 4294901760
    %1844 = vmatpush.msra.mxu0 %v1843
    %v1845 = vand.u32 %v1520, 4294901760
    %v1846 = vsub.f32 %v1520, %v1845
    %v1847 = vand.u32 %v1846, 4294901760
    %1848 = vmatpush.msra.mxu0 %v1847
    %v1849 = vand.u32 %v1519, 4294901760
    %v1850 = vsub.f32 %v1519, %v1849
    %v1851 = vand.u32 %v1850, 4294901760
    %1852 = vmatpush.msra.mxu0 %v1851
    %v1853 = vand.u32 %v1518, 4294901760
    %v1854 = vsub.f32 %v1518, %v1853
    %v1855 = vand.u32 %v1854, 4294901760
    %1856 = vmatpush.msra.mxu0 %v1855
    %v1857 = vand.u32 %v1517, 4294901760
    %v1858 = vsub.f32 %v1517, %v1857
    %v1859 = vand.u32 %v1858, 4294901760
    %1860 = vmatpush.msra.mxu0 %v1859
    %v1861 = vand.u32 %v1516, 4294901760
    %v1862 = vsub.f32 %v1516, %v1861
    %v1863 = vand.u32 %v1862, 4294901760
    %1864 = vmatpush.msra.mxu0 %v1863
    %v1865 = vand.u32 %v1515, 4294901760
    %v1866 = vsub.f32 %v1515, %v1865
    %v1867 = vand.u32 %v1866, 4294901760
    %1868 = vmatpush.msra.mxu0 %v1867
    %v1869 = vand.u32 %v1514, 4294901760
    %v1870 = vsub.f32 %v1514, %v1869
    %v1871 = vand.u32 %v1870, 4294901760
    %1872 = vmatpush.msra.mxu0 %v1871
    %v1873 = vand.u32 %v1513, 4294901760
    %v1874 = vsub.f32 %v1513, %v1873
    %v1875 = vand.u32 %v1874, 4294901760
    %1876 = vmatpush.msra.mxu0 %v1875
    %v1877 = vand.u32 %v1512, 4294901760
    %v1878 = vsub.f32 %v1512, %v1877
    %v1879 = vand.u32 %v1878, 4294901760
    %1880 = vmatpush.msra.mxu0 %v1879
    %v1881 = vand.u32 %v1511, 4294901760
    %v1882 = vsub.f32 %v1511, %v1881
    %v1883 = vand.u32 %v1882, 4294901760
    %1884 = vmatpush.msra.mxu0 %v1883
    %v1885 = vand.u32 %v1510, 4294901760
    %v1886 = vsub.f32 %v1510, %v1885
    %v1887 = vand.u32 %v1886, 4294901760
    %1888 = vmatpush.msra.mxu0 %v1887
    %v1889 = vand.u32 %v1509, 4294901760
    %v1890 = vsub.f32 %v1509, %v1889
    %v1891 = vand.u32 %v1890, 4294901760
    %1892 = vmatpush.msra.mxu0 %v1891
    %v1893 = vand.u32 %v899, 4294901760
    %1894 = vmatmul.f32.gmra.mxu0 %v1893
    %v1895 = vpop.f32.mrf.mxu0
    %v1896 = vadd.f32 %v1809, %v1895
    %v1897 = vand.u32 %v900, 4294901760
    %1898 = vmatmul.f32.gmra.mxu0 %v1897
    %v1899 = vpop.f32.mrf.mxu0
    %v1900 = vadd.f32 %v1815, %v1899
    %v1901 = vand.u32 %v901, 4294901760
    %1902 = vmatmul.f32.gmra.mxu0 %v1901
    %v1903 = vpop.f32.mrf.mxu0
    %v1904 = vadd.f32 %v1821, %v1903
    %v1905 = vand.u32 %v902, 4294901760
    %1906 = vmatmul.f32.gmra.mxu0 %v1905
    %v1907 = vpop.f32.mrf.mxu0
    %v1908 = vadd.f32 %v1827, %v1907
    %1909 = vdwg.mxu0
    %v1910 = vand.u32 %v1524, 4294901760
    %1911 = vmatpush.msra.mxu0 %v1910
    %v1912 = vand.u32 %v1523, 4294901760
    %1913 = vmatpush.msra.mxu0 %v1912
    %v1914 = vand.u32 %v1522, 4294901760
    %1915 = vmatpush.msra.mxu0 %v1914
    %v1916 = vand.u32 %v1521, 4294901760
    %1917 = vmatpush.msra.mxu0 %v1916
    %v1918 = vand.u32 %v1520, 4294901760
    %1919 = vmatpush.msra.mxu0 %v1918
    %v1920 = vand.u32 %v1519, 4294901760
    %1921 = vmatpush.msra.mxu0 %v1920
    %v1922 = vand.u32 %v1518, 4294901760
    %1923 = vmatpush.msra.mxu0 %v1922
    %v1924 = vand.u32 %v1517, 4294901760
    %1925 = vmatpush.msra.mxu0 %v1924
    %v1926 = vand.u32 %v1516, 4294901760
    %1927 = vmatpush.msra.mxu0 %v1926
    %v1928 = vand.u32 %v1515, 4294901760
    %1929 = vmatpush.msra.mxu0 %v1928
    %v1930 = vand.u32 %v1514, 4294901760
    %1931 = vmatpush.msra.mxu0 %v1930
    %v1932 = vand.u32 %v1513, 4294901760
    %1933 = vmatpush.msra.mxu0 %v1932
    %v1934 = vand.u32 %v1512, 4294901760
    %1935 = vmatpush.msra.mxu0 %v1934
    %v1936 = vand.u32 %v1511, 4294901760
    %1937 = vmatpush.msra.mxu0 %v1936
    %v1938 = vand.u32 %v1510, 4294901760
    %1939 = vmatpush.msra.mxu0 %v1938
    %v1940 = vand.u32 %v1509, 4294901760
    %1941 = vmatpush.msra.mxu0 %v1940
    %v1942 = vand.u32 %v899, 4294901760
    %1943 = vmatmul.f32.gmra.mxu0 %v1942
    %v1944 = vpop.f32.mrf.mxu0
    %v1945 = vadd.f32 %v1896, %v1944
    %v1946 = vand.u32 %v900, 4294901760
    %1947 = vmatmul.f32.gmra.mxu0 %v1946
    %v1948 = vpop.f32.mrf.mxu0
    %v1949 = vadd.f32 %v1900, %v1948
    %v1950 = vand.u32 %v901, 4294901760
    %1951 = vmatmul.f32.gmra.mxu0 %v1950
    %v1952 = vpop.f32.mrf.mxu0
    %v1953 = vadd.f32 %v1904, %v1952
    %v1954 = vand.u32 %v902, 4294901760
    %1955 = vmatmul.f32.gmra.mxu0 %v1954
    %v1956 = vpop.f32.mrf.mxu0
    %v1957 = vadd.f32 %v1908, %v1956
    %1958 = vdwg.mxu0
    %v1959 = vand.u32 %v1507, 4294901760
    %1960 = vmatpush.msra.mxu0 %v1959
    %v1961 = vand.u32 %v1506, 4294901760
    %1962 = vmatpush.msra.mxu0 %v1961
    %v1963 = vand.u32 %v1505, 4294901760
    %1964 = vmatpush.msra.mxu0 %v1963
    %v1965 = vand.u32 %v1504, 4294901760
    %1966 = vmatpush.msra.mxu0 %v1965
    %v1967 = vand.u32 %v1503, 4294901760
    %1968 = vmatpush.msra.mxu0 %v1967
    %v1969 = vand.u32 %v1502, 4294901760
    %1970 = vmatpush.msra.mxu0 %v1969
    %v1971 = vand.u32 %v1501, 4294901760
    %1972 = vmatpush.msra.mxu0 %v1971
    %v1973 = vand.u32 %v1500, 4294901760
    %1974 = vmatpush.msra.mxu0 %v1973
    %v1975 = vand.u32 %v1499, 4294901760
    %1976 = vmatpush.msra.mxu0 %v1975
    %v1977 = vand.u32 %v1498, 4294901760
    %1978 = vmatpush.msra.mxu0 %v1977
    %v1979 = vand.u32 %v1497, 4294901760
    %1980 = vmatpush.msra.mxu0 %v1979
    %v1981 = vand.u32 %v1496, 4294901760
    %1982 = vmatpush.msra.mxu0 %v1981
    %v1983 = vand.u32 %v1495, 4294901760
    %1984 = vmatpush.msra.mxu0 %v1983
    %v1985 = vand.u32 %v1494, 4294901760
    %1986 = vmatpush.msra.mxu0 %v1985
    %v1987 = vand.u32 %v1493, 4294901760
    %1988 = vmatpush.msra.mxu0 %v1987
    %v1989 = vand.u32 %v1492, 4294901760
    %1990 = vmatpush.msra.mxu0 %v1989
    %v1991 = vand.u32 %v1184, 4294901760
    %v1992 = vsub.f32 %v1184, %v1991
    %v1993 = vand.u32 %v1992, 4294901760
    %v1994 = vsub.f32 %v1992, %v1993
    %v1995 = vand.u32 %v1994, 4294901760
    %1996 = vmatmul.f32.gmra.mxu0 %v1995
    %v1997 = vpop.f32.mrf.mxu0
    %v1998 = vadd.f32 %v1945, %v1997
    %v1999 = vand.u32 %v1188, 4294901760
    %v2000 = vsub.f32 %v1188, %v1999
    %v2001 = vand.u32 %v2000, 4294901760
    %v2002 = vsub.f32 %v2000, %v2001
    %v2003 = vand.u32 %v2002, 4294901760
    %2004 = vmatmul.f32.gmra.mxu0 %v2003
    %v2005 = vpop.f32.mrf.mxu0
    %v2006 = vadd.f32 %v1949, %v2005
    %v2007 = vand.u32 %v1192, 4294901760
    %v2008 = vsub.f32 %v1192, %v2007
    %v2009 = vand.u32 %v2008, 4294901760
    %v2010 = vsub.f32 %v2008, %v2009
    %v2011 = vand.u32 %v2010, 4294901760
    %2012 = vmatmul.f32.gmra.mxu0 %v2011
    %v2013 = vpop.f32.mrf.mxu0
    %v2014 = vadd.f32 %v1953, %v2013
    %v2015 = vand.u32 %v1196, 4294901760
    %v2016 = vsub.f32 %v1196, %v2015
    %v2017 = vand.u32 %v2016, 4294901760
    %v2018 = vsub.f32 %v2016, %v2017
    %v2019 = vand.u32 %v2018, 4294901760
    %2020 = vmatmul.f32.gmra.mxu0 %v2019
    %v2021 = vpop.f32.mrf.mxu0
    %v2022 = vadd.f32 %v1957, %v2021
    %2023 = vdwg.mxu0
    %v2024 = vand.u32 %v1507, 4294901760
    %v2025 = vsub.f32 %v1507, %v2024
    %v2026 = vand.u32 %v2025, 4294901760
    %v2027 = vsub.f32 %v2025, %v2026
    %v2028 = vand.u32 %v2027, 4294901760
    %2029 = vmatpush.msra.mxu0 %v2028
    %v2030 = vand.u32 %v1506, 4294901760
    %v2031 = vsub.f32 %v1506, %v2030
    %v2032 = vand.u32 %v2031, 4294901760
    %v2033 = vsub.f32 %v2031, %v2032
    %v2034 = vand.u32 %v2033, 4294901760
    %2035 = vmatpush.msra.mxu0 %v2034
    %v2036 = vand.u32 %v1505, 4294901760
    %v2037 = vsub.f32 %v1505, %v2036
    %v2038 = vand.u32 %v2037, 4294901760
    %v2039 = vsub.f32 %v2037, %v2038
    %v2040 = vand.u32 %v2039, 4294901760
    %2041 = vmatpush.msra.mxu0 %v2040
    %v2042 = vand.u32 %v1504, 4294901760
    %v2043 = vsub.f32 %v1504, %v2042
    %v2044 = vand.u32 %v2043, 4294901760
    %v2045 = vsub.f32 %v2043, %v2044
    %v2046 = vand.u32 %v2045, 4294901760
    %2047 = vmatpush.msra.mxu0 %v2046
    %v2048 = vand.u32 %v1503, 4294901760
    %v2049 = vsub.f32 %v1503, %v2048
    %v2050 = vand.u32 %v2049, 4294901760
    %v2051 = vsub.f32 %v2049, %v2050
    %v2052 = vand.u32 %v2051, 4294901760
    %2053 = vmatpush.msra.mxu0 %v2052
    %v2054 = vand.u32 %v1502, 4294901760
    %v2055 = vsub.f32 %v1502, %v2054
    %v2056 = vand.u32 %v2055, 4294901760
    %v2057 = vsub.f32 %v2055, %v2056
    %v2058 = vand.u32 %v2057, 4294901760
    %2059 = vmatpush.msra.mxu0 %v2058
    %v2060 = vand.u32 %v1501, 4294901760
    %v2061 = vsub.f32 %v1501, %v2060
    %v2062 = vand.u32 %v2061, 4294901760
    %v2063 = vsub.f32 %v2061, %v2062
    %v2064 = vand.u32 %v2063, 4294901760
    %2065 = vmatpush.msra.mxu0 %v2064
    %v2066 = vand.u32 %v1500, 4294901760
    %v2067 = vsub.f32 %v1500, %v2066
    %v2068 = vand.u32 %v2067, 4294901760
    %v2069 = vsub.f32 %v2067, %v2068
    %v2070 = vand.u32 %v2069, 4294901760
    %2071 = vmatpush.msra.mxu0 %v2070
    %v2072 = vand.u32 %v1499, 4294901760
    %v2073 = vsub.f32 %v1499, %v2072
    %v2074 = vand.u32 %v2073, 4294901760
    %v2075 = vsub.f32 %v2073, %v2074
    %v2076 = vand.u32 %v2075, 4294901760
    %2077 = vmatpush.msra.mxu0 %v2076
    %v2078 = vand.u32 %v1498, 4294901760
    %v2079 = vsub.f32 %v1498, %v2078
    %v2080 = vand.u32 %v2079, 4294901760
    %v2081 = vsub.f32 %v2079, %v2080
    %v2082 = vand.u32 %v2081, 4294901760
    %2083 = vmatpush.msra.mxu0 %v2082
    %v2084 = vand.u32 %v1497, 4294901760
    %v2085 = vsub.f32 %v1497, %v2084
    %v2086 = vand.u32 %v2085, 4294901760
    %v2087 = vsub.f32 %v2085, %v2086
    %v2088 = vand.u32 %v2087, 4294901760
    %2089 = vmatpush.msra.mxu0 %v2088
    %v2090 = vand.u32 %v1496, 4294901760
    %v2091 = vsub.f32 %v1496, %v2090
    %v2092 = vand.u32 %v2091, 4294901760
    %v2093 = vsub.f32 %v2091, %v2092
    %v2094 = vand.u32 %v2093, 4294901760
    %2095 = vmatpush.msra.mxu0 %v2094
    %v2096 = vand.u32 %v1495, 4294901760
    %v2097 = vsub.f32 %v1495, %v2096
    %v2098 = vand.u32 %v2097, 4294901760
    %v2099 = vsub.f32 %v2097, %v2098
    %v2100 = vand.u32 %v2099, 4294901760
    %2101 = vmatpush.msra.mxu0 %v2100
    %v2102 = vand.u32 %v1494, 4294901760
    %v2103 = vsub.f32 %v1494, %v2102
    %v2104 = vand.u32 %v2103, 4294901760
    %v2105 = vsub.f32 %v2103, %v2104
    %v2106 = vand.u32 %v2105, 4294901760
    %2107 = vmatpush.msra.mxu0 %v2106
    %v2108 = vand.u32 %v1493, 4294901760
    %v2109 = vsub.f32 %v1493, %v2108
    %v2110 = vand.u32 %v2109, 4294901760
    %v2111 = vsub.f32 %v2109, %v2110
    %v2112 = vand.u32 %v2111, 4294901760
    %2113 = vmatpush.msra.mxu0 %v2112
    %v2114 = vand.u32 %v1492, 4294901760
    %v2115 = vsub.f32 %v1492, %v2114
    %v2116 = vand.u32 %v2115, 4294901760
    %v2117 = vsub.f32 %v2115, %v2116
    %v2118 = vand.u32 %v2117, 4294901760
    %2119 = vmatpush.msra.mxu0 %v2118
    %v2120 = vand.u32 %v1184, 4294901760
    %2121 = vmatmul.f32.gmra.mxu0 %v2120
    %v2122 = vpop.f32.mrf.mxu0
    %v2123 = vadd.f32 %v1998, %v2122
    %v2124 = vand.u32 %v1188, 4294901760
    %2125 = vmatmul.f32.gmra.mxu0 %v2124
    %v2126 = vpop.f32.mrf.mxu0
    %v2127 = vadd.f32 %v2006, %v2126
    %v2128 = vand.u32 %v1192, 4294901760
    %2129 = vmatmul.f32.gmra.mxu0 %v2128
    %v2130 = vpop.f32.mrf.mxu0
    %v2131 = vadd.f32 %v2014, %v2130
    %v2132 = vand.u32 %v1196, 4294901760
    %2133 = vmatmul.f32.gmra.mxu0 %v2132
    %v2134 = vpop.f32.mrf.mxu0
    %v2135 = vadd.f32 %v2022, %v2134
    %2136 = vdwg.mxu0
    %v2137 = vand.u32 %v1507, 4294901760
    %v2138 = vsub.f32 %v1507, %v2137
    %2139 = vmatpush.msra.mxu0 %v2138
    %v2140 = vand.u32 %v1506, 4294901760
    %v2141 = vsub.f32 %v1506, %v2140
    %2142 = vmatpush.msra.mxu0 %v2141
    %v2143 = vand.u32 %v1505, 4294901760
    %v2144 = vsub.f32 %v1505, %v2143
    %2145 = vmatpush.msra.mxu0 %v2144
    %v2146 = vand.u32 %v1504, 4294901760
    %v2147 = vsub.f32 %v1504, %v2146
    %2148 = vmatpush.msra.mxu0 %v2147
    %v2149 = vand.u32 %v1503, 4294901760
    %v2150 = vsub.f32 %v1503, %v2149
    %2151 = vmatpush.msra.mxu0 %v2150
    %v2152 = vand.u32 %v1502, 4294901760
    %v2153 = vsub.f32 %v1502, %v2152
    %2154 = vmatpush.msra.mxu0 %v2153
    %v2155 = vand.u32 %v1501, 4294901760
    %v2156 = vsub.f32 %v1501, %v2155
    %2157 = vmatpush.msra.mxu0 %v2156
    %v2158 = vand.u32 %v1500, 4294901760
    %v2159 = vsub.f32 %v1500, %v2158
    %2160 = vmatpush.msra.mxu0 %v2159
    %v2161 = vand.u32 %v1499, 4294901760
    %v2162 = vsub.f32 %v1499, %v2161
    %2163 = vmatpush.msra.mxu0 %v2162
    %v2164 = vand.u32 %v1498, 4294901760
    %v2165 = vsub.f32 %v1498, %v2164
    %2166 = vmatpush.msra.mxu0 %v2165
    %v2167 = vand.u32 %v1497, 4294901760
    %v2168 = vsub.f32 %v1497, %v2167
    %2169 = vmatpush.msra.mxu0 %v2168
    %v2170 = vand.u32 %v1496, 4294901760
    %v2171 = vsub.f32 %v1496, %v2170
    %2172 = vmatpush.msra.mxu0 %v2171
    %v2173 = vand.u32 %v1495, 4294901760
    %v2174 = vsub.f32 %v1495, %v2173
    %2175 = vmatpush.msra.mxu0 %v2174
    %v2176 = vand.u32 %v1494, 4294901760
    %v2177 = vsub.f32 %v1494, %v2176
    %2178 = vmatpush.msra.mxu0 %v2177
    %v2179 = vand.u32 %v1493, 4294901760
    %v2180 = vsub.f32 %v1493, %v2179
    %2181 = vmatpush.msra.mxu0 %v2180
    %v2182 = vand.u32 %v1492, 4294901760
    %v2183 = vsub.f32 %v1492, %v2182
    %2184 = vmatpush.msra.mxu0 %v2183
    %v2185 = vand.u32 %v1184, 4294901760
    %v2186 = vsub.f32 %v1184, %v2185
    %2187 = vmatmul.f32.gmra.mxu0 %v2186
    %v2188 = vpop.f32.mrf.mxu0
    %v2189 = vadd.f32 %v2123, %v2188
    %v2190 = vand.u32 %v1188, 4294901760
    %v2191 = vsub.f32 %v1188, %v2190
    %2192 = vmatmul.f32.gmra.mxu0 %v2191
    %v2193 = vpop.f32.mrf.mxu0
    %v2194 = vadd.f32 %v2127, %v2193
    %v2195 = vand.u32 %v1192, 4294901760
    %v2196 = vsub.f32 %v1192, %v2195
    %2197 = vmatmul.f32.gmra.mxu0 %v2196
    %v2198 = vpop.f32.mrf.mxu0
    %v2199 = vadd.f32 %v2131, %v2198
    %v2200 = vand.u32 %v1196, 4294901760
    %v2201 = vsub.f32 %v1196, %v2200
    %2202 = vmatmul.f32.gmra.mxu0 %v2201
    %v2203 = vpop.f32.mrf.mxu0
    %v2204 = vadd.f32 %v2135, %v2203
    %2205 = vdwg.mxu0
    %v2206 = vand.u32 %v1507, 4294901760
    %2207 = vmatpush.msra.mxu0 %v2206
    %v2208 = vand.u32 %v1506, 4294901760
    %2209 = vmatpush.msra.mxu0 %v2208
    %v2210 = vand.u32 %v1505, 4294901760
    %2211 = vmatpush.msra.mxu0 %v2210
    %v2212 = vand.u32 %v1504, 4294901760
    %2213 = vmatpush.msra.mxu0 %v2212
    %v2214 = vand.u32 %v1503, 4294901760
    %2215 = vmatpush.msra.mxu0 %v2214
    %v2216 = vand.u32 %v1502, 4294901760
    %2217 = vmatpush.msra.mxu0 %v2216
    %v2218 = vand.u32 %v1501, 4294901760
    %2219 = vmatpush.msra.mxu0 %v2218
    %v2220 = vand.u32 %v1500, 4294901760
    %2221 = vmatpush.msra.mxu0 %v2220
    %v2222 = vand.u32 %v1499, 4294901760
    %2223 = vmatpush.msra.mxu0 %v2222
    %v2224 = vand.u32 %v1498, 4294901760
    %2225 = vmatpush.msra.mxu0 %v2224
    %v2226 = vand.u32 %v1497, 4294901760
    %2227 = vmatpush.msra.mxu0 %v2226
    %v2228 = vand.u32 %v1496, 4294901760
    %2229 = vmatpush.msra.mxu0 %v2228
    %v2230 = vand.u32 %v1495, 4294901760
    %2231 = vmatpush.msra.mxu0 %v2230
    %v2232 = vand.u32 %v1494, 4294901760
    %2233 = vmatpush.msra.mxu0 %v2232
    %v2234 = vand.u32 %v1493, 4294901760
    %2235 = vmatpush.msra.mxu0 %v2234
    %v2236 = vand.u32 %v1492, 4294901760
    %2237 = vmatpush.msra.mxu0 %v2236
    %v2238 = vand.u32 %v1184, 4294901760
    %v2239 = vsub.f32 %v1184, %v2238
    %v2240 = vand.u32 %v2239, 4294901760
    %2241 = vmatmul.f32.gmra.mxu0 %v2240
    %v2242 = vpop.f32.mrf.mxu0
    %v2243 = vadd.f32 %v2189, %v2242
    %v2244 = vand.u32 %v1188, 4294901760
    %v2245 = vsub.f32 %v1188, %v2244
    %v2246 = vand.u32 %v2245, 4294901760
    %2247 = vmatmul.f32.gmra.mxu0 %v2246
    %v2248 = vpop.f32.mrf.mxu0
    %v2249 = vadd.f32 %v2194, %v2248
    %v2250 = vand.u32 %v1192, 4294901760
    %v2251 = vsub.f32 %v1192, %v2250
    %v2252 = vand.u32 %v2251, 4294901760
    %2253 = vmatmul.f32.gmra.mxu0 %v2252
    %v2254 = vpop.f32.mrf.mxu0
    %v2255 = vadd.f32 %v2199, %v2254
    %v2256 = vand.u32 %v1196, 4294901760
    %v2257 = vsub.f32 %v1196, %v2256
    %v2258 = vand.u32 %v2257, 4294901760
    %2259 = vmatmul.f32.gmra.mxu0 %v2258
    %v2260 = vpop.f32.mrf.mxu0
    %v2261 = vadd.f32 %v2204, %v2260
    %2262 = vdwg.mxu0
    %v2263 = vand.u32 %v1507, 4294901760
    %v2264 = vsub.f32 %v1507, %v2263
    %v2265 = vand.u32 %v2264, 4294901760
    %2266 = vmatpush.msra.mxu0 %v2265
    %v2267 = vand.u32 %v1506, 4294901760
    %v2268 = vsub.f32 %v1506, %v2267
    %v2269 = vand.u32 %v2268, 4294901760
    %2270 = vmatpush.msra.mxu0 %v2269
    %v2271 = vand.u32 %v1505, 4294901760
    %v2272 = vsub.f32 %v1505, %v2271
    %v2273 = vand.u32 %v2272, 4294901760
    %2274 = vmatpush.msra.mxu0 %v2273
    %v2275 = vand.u32 %v1504, 4294901760
    %v2276 = vsub.f32 %v1504, %v2275
    %v2277 = vand.u32 %v2276, 4294901760
    %2278 = vmatpush.msra.mxu0 %v2277
    %v2279 = vand.u32 %v1503, 4294901760
    %v2280 = vsub.f32 %v1503, %v2279
    %v2281 = vand.u32 %v2280, 4294901760
    %2282 = vmatpush.msra.mxu0 %v2281
    %v2283 = vand.u32 %v1502, 4294901760
    %v2284 = vsub.f32 %v1502, %v2283
    %v2285 = vand.u32 %v2284, 4294901760
    %2286 = vmatpush.msra.mxu0 %v2285
    %v2287 = vand.u32 %v1501, 4294901760
    %v2288 = vsub.f32 %v1501, %v2287
    %v2289 = vand.u32 %v2288, 4294901760
    %2290 = vmatpush.msra.mxu0 %v2289
    %v2291 = vand.u32 %v1500, 4294901760
    %v2292 = vsub.f32 %v1500, %v2291
    %v2293 = vand.u32 %v2292, 4294901760
    %2294 = vmatpush.msra.mxu0 %v2293
    %v2295 = vand.u32 %v1499, 4294901760
    %v2296 = vsub.f32 %v1499, %v2295
    %v2297 = vand.u32 %v2296, 4294901760
    %2298 = vmatpush.msra.mxu0 %v2297
    %v2299 = vand.u32 %v1498, 4294901760
    %v2300 = vsub.f32 %v1498, %v2299
    %v2301 = vand.u32 %v2300, 4294901760
    %2302 = vmatpush.msra.mxu0 %v2301
    %v2303 = vand.u32 %v1497, 4294901760
    %v2304 = vsub.f32 %v1497, %v2303
    %v2305 = vand.u32 %v2304, 4294901760
    %2306 = vmatpush.msra.mxu0 %v2305
    %v2307 = vand.u32 %v1496, 4294901760
    %v2308 = vsub.f32 %v1496, %v2307
    %v2309 = vand.u32 %v2308, 4294901760
    %2310 = vmatpush.msra.mxu0 %v2309
    %v2311 = vand.u32 %v1495, 4294901760
    %v2312 = vsub.f32 %v1495, %v2311
    %v2313 = vand.u32 %v2312, 4294901760
    %2314 = vmatpush.msra.mxu0 %v2313
    %v2315 = vand.u32 %v1494, 4294901760
    %v2316 = vsub.f32 %v1494, %v2315
    %v2317 = vand.u32 %v2316, 4294901760
    %2318 = vmatpush.msra.mxu0 %v2317
    %v2319 = vand.u32 %v1493, 4294901760
    %v2320 = vsub.f32 %v1493, %v2319
    %v2321 = vand.u32 %v2320, 4294901760
    %2322 = vmatpush.msra.mxu0 %v2321
    %v2323 = vand.u32 %v1492, 4294901760
    %v2324 = vsub.f32 %v1492, %v2323
    %v2325 = vand.u32 %v2324, 4294901760
    %2326 = vmatpush.msra.mxu0 %v2325
    %v2327 = vand.u32 %v1184, 4294901760
    %2328 = vmatmul.f32.gmra.mxu0 %v2327
    %v2329 = vpop.f32.mrf.mxu0
    %v2330 = vadd.f32 %v2243, %v2329
    %v2331 = vand.u32 %v1188, 4294901760
    %2332 = vmatmul.f32.gmra.mxu0 %v2331
    %v2333 = vpop.f32.mrf.mxu0
    %v2334 = vadd.f32 %v2249, %v2333
    %v2335 = vand.u32 %v1192, 4294901760
    %2336 = vmatmul.f32.gmra.mxu0 %v2335
    %v2337 = vpop.f32.mrf.mxu0
    %v2338 = vadd.f32 %v2255, %v2337
    %v2339 = vand.u32 %v1196, 4294901760
    %2340 = vmatmul.f32.gmra.mxu0 %v2339
    %v2341 = vpop.f32.mrf.mxu0
    %v2342 = vadd.f32 %v2261, %v2341
    %2343 = vdwg.mxu0
    %v2344 = vand.u32 %v1507, 4294901760
    %2345 = vmatpush.msra.mxu0 %v2344
    %v2346 = vand.u32 %v1506, 4294901760
    %2347 = vmatpush.msra.mxu0 %v2346
    %v2348 = vand.u32 %v1505, 4294901760
    %2349 = vmatpush.msra.mxu0 %v2348
    %v2350 = vand.u32 %v1504, 4294901760
    %2351 = vmatpush.msra.mxu0 %v2350
    %v2352 = vand.u32 %v1503, 4294901760
    %2353 = vmatpush.msra.mxu0 %v2352
    %v2354 = vand.u32 %v1502, 4294901760
    %2355 = vmatpush.msra.mxu0 %v2354
    %v2356 = vand.u32 %v1501, 4294901760
    %2357 = vmatpush.msra.mxu0 %v2356
    %v2358 = vand.u32 %v1500, 4294901760
    %2359 = vmatpush.msra.mxu0 %v2358
    %v2360 = vand.u32 %v1499, 4294901760
    %2361 = vmatpush.msra.mxu0 %v2360
    %v2362 = vand.u32 %v1498, 4294901760
    %2363 = vmatpush.msra.mxu0 %v2362
    %v2364 = vand.u32 %v1497, 4294901760
    %2365 = vmatpush.msra.mxu0 %v2364
    %v2366 = vand.u32 %v1496, 4294901760
    %2367 = vmatpush.msra.mxu0 %v2366
    %v2368 = vand.u32 %v1495, 4294901760
    %2369 = vmatpush.msra.mxu0 %v2368
    %v2370 = vand.u32 %v1494, 4294901760
    %2371 = vmatpush.msra.mxu0 %v2370
    %v2372 = vand.u32 %v1493, 4294901760
    %2373 = vmatpush.msra.mxu0 %v2372
    %v2374 = vand.u32 %v1492, 4294901760
    %2375 = vmatpush.msra.mxu0 %v2374
    %v2376 = vand.u32 %v1184, 4294901760
    %2377 = vmatmul.f32.gmra.mxu0 %v2376
    %v2378 = vpop.f32.mrf.mxu0
    %v2379 = vadd.f32 %v2330, %v2378
    %v2380 = vand.u32 %v1188, 4294901760
    %2381 = vmatmul.f32.gmra.mxu0 %v2380
    %v2382 = vpop.f32.mrf.mxu0
    %v2383 = vadd.f32 %v2334, %v2382
    %v2384 = vand.u32 %v1192, 4294901760
    %2385 = vmatmul.f32.gmra.mxu0 %v2384
    %v2386 = vpop.f32.mrf.mxu0
    %v2387 = vadd.f32 %v2338, %v2386
    %v2388 = vand.u32 %v1196, 4294901760
    %2389 = vmatmul.f32.gmra.mxu0 %v2388
    %v2390 = vpop.f32.mrf.mxu0
    %v2391 = vadd.f32 %v2342, %v2390
    %2392 = vdwg.mxu0
    %s2393 = scalar_lea.vmem [#allocation8], 256
    %v2394 = vld [vmem:[%s2393] sm:$0xff]
    %v2395 = vld [vmem:[%s2393 + $0x8] sm:$0xff]
    %v2396 = vld [vmem:[%s2393 + $0x10] sm:$0xff]
    %v2397 = vld [vmem:[%s2393 + $0x18] sm:$0xff]
    %v2398 = vld [vmem:[%s2393 + $0x20] sm:$0xff]
    %v2399 = vld [vmem:[%s2393 + $0x28] sm:$0xff]
    %v2400 = vld [vmem:[%s2393 + $0x30] sm:$0xff]
    %v2401 = vld [vmem:[%s2393 + $0x38] sm:$0xff]
    %v2402 = vld [vmem:[%s2393 + $0x40] sm:$0xff]
    %v2403 = vld [vmem:[%s2393 + $0x48] sm:$0xff]
    %v2404 = vld [vmem:[%s2393 + $0x50] sm:$0xff]
    %v2405 = vld [vmem:[%s2393 + $0x58] sm:$0xff]
    %v2406 = vld [vmem:[%s2393 + $0x60] sm:$0xff]
    %v2407 = vld [vmem:[%s2393 + $0x68] sm:$0xff]
    %v2408 = vld [vmem:[%s2393 + $0x70] sm:$0xff]
    %v2409 = vld [vmem:[%s2393 + $0x78] sm:$0xff]
    %v2410 = vand.u32 %v2409, 4294901760
    %2411 = vmatpush.msra.mxu0 %v2410
    %v2412 = vand.u32 %v2408, 4294901760
    %2413 = vmatpush.msra.mxu0 %v2412
    %v2414 = vand.u32 %v2407, 4294901760
    %2415 = vmatpush.msra.mxu0 %v2414
    %v2416 = vand.u32 %v2406, 4294901760
    %2417 = vmatpush.msra.mxu0 %v2416
    %v2418 = vand.u32 %v2405, 4294901760
    %2419 = vmatpush.msra.mxu0 %v2418
    %v2420 = vand.u32 %v2404, 4294901760
    %2421 = vmatpush.msra.mxu0 %v2420
    %v2422 = vand.u32 %v2403, 4294901760
    %2423 = vmatpush.msra.mxu0 %v2422
    %v2424 = vand.u32 %v2402, 4294901760
    %2425 = vmatpush.msra.mxu0 %v2424
    %v2426 = vand.u32 %v2401, 4294901760
    %2427 = vmatpush.msra.mxu0 %v2426
    %v2428 = vand.u32 %v2400, 4294901760
    %2429 = vmatpush.msra.mxu0 %v2428
    %v2430 = vand.u32 %v2399, 4294901760
    %2431 = vmatpush.msra.mxu0 %v2430
    %v2432 = vand.u32 %v2398, 4294901760
    %2433 = vmatpush.msra.mxu0 %v2432
    %v2434 = vand.u32 %v2397, 4294901760
    %2435 = vmatpush.msra.mxu0 %v2434
    %v2436 = vand.u32 %v2396, 4294901760
    %2437 = vmatpush.msra.mxu0 %v2436
    %v2438 = vand.u32 %v2395, 4294901760
    %2439 = vmatpush.msra.mxu0 %v2438
    %v2440 = vand.u32 %v2394, 4294901760
    %2441 = vmatpush.msra.mxu0 %v2440
    %v2442 = vand.u32 %v1478, 4294901760
    %v2443 = vsub.f32 %v1478, %v2442
    %v2444 = vand.u32 %v2443, 4294901760
    %v2445 = vsub.f32 %v2443, %v2444
    %v2446 = vand.u32 %v2445, 4294901760
    %2447 = vmatmul.f32.gmra.mxu0 %v2446
    %v2448 = vpop.f32.mrf.mxu0
    %v2449 = vadd.f32 0.0, %v2448
    %v2450 = vand.u32 %v1482, 4294901760
    %v2451 = vsub.f32 %v1482, %v2450
    %v2452 = vand.u32 %v2451, 4294901760
    %v2453 = vsub.f32 %v2451, %v2452
    %v2454 = vand.u32 %v2453, 4294901760
    %2455 = vmatmul.f32.gmra.mxu0 %v2454
    %v2456 = vpop.f32.mrf.mxu0
    %v2457 = vadd.f32 0.0, %v2456
    %v2458 = vand.u32 %v1486, 4294901760
    %v2459 = vsub.f32 %v1486, %v2458
    %v2460 = vand.u32 %v2459, 4294901760
    %v2461 = vsub.f32 %v2459, %v2460
    %v2462 = vand.u32 %v2461, 4294901760
    %2463 = vmatmul.f32.gmra.mxu0 %v2462
    %v2464 = vpop.f32.mrf.mxu0
    %v2465 = vadd.f32 0.0, %v2464
    %v2466 = vand.u32 %v1490, 4294901760
    %v2467 = vsub.f32 %v1490, %v2466
    %v2468 = vand.u32 %v2467, 4294901760
    %v2469 = vsub.f32 %v2467, %v2468
    %v2470 = vand.u32 %v2469, 4294901760
    %2471 = vmatmul.f32.gmra.mxu0 %v2470
    %v2472 = vpop.f32.mrf.mxu0
    %v2473 = vadd.f32 0.0, %v2472
    %2474 = vdwg.mxu0
    %v2475 = vand.u32 %v2409, 4294901760
    %v2476 = vsub.f32 %v2409, %v2475
    %v2477 = vand.u32 %v2476, 4294901760
    %v2478 = vsub.f32 %v2476, %v2477
    %v2479 = vand.u32 %v2478, 4294901760
    %2480 = vmatpush.msra.mxu0 %v2479
    %v2481 = vand.u32 %v2408, 4294901760
    %v2482 = vsub.f32 %v2408, %v2481
    %v2483 = vand.u32 %v2482, 4294901760
    %v2484 = vsub.f32 %v2482, %v2483
    %v2485 = vand.u32 %v2484, 4294901760
    %2486 = vmatpush.msra.mxu0 %v2485
    %v2487 = vand.u32 %v2407, 4294901760
    %v2488 = vsub.f32 %v2407, %v2487
    %v2489 = vand.u32 %v2488, 4294901760
    %v2490 = vsub.f32 %v2488, %v2489
    %v2491 = vand.u32 %v2490, 4294901760
    %2492 = vmatpush.msra.mxu0 %v2491
    %v2493 = vand.u32 %v2406, 4294901760
    %v2494 = vsub.f32 %v2406, %v2493
    %v2495 = vand.u32 %v2494, 4294901760
    %v2496 = vsub.f32 %v2494, %v2495
    %v2497 = vand.u32 %v2496, 4294901760
    %2498 = vmatpush.msra.mxu0 %v2497
    %v2499 = vand.u32 %v2405, 4294901760
    %v2500 = vsub.f32 %v2405, %v2499
    %v2501 = vand.u32 %v2500, 4294901760
    %v2502 = vsub.f32 %v2500, %v2501
    %v2503 = vand.u32 %v2502, 4294901760
    %2504 = vmatpush.msra.mxu0 %v2503
    %v2505 = vand.u32 %v2404, 4294901760
    %v2506 = vsub.f32 %v2404, %v2505
    %v2507 = vand.u32 %v2506, 4294901760
    %v2508 = vsub.f32 %v2506, %v2507
    %v2509 = vand.u32 %v2508, 4294901760
    %2510 = vmatpush.msra.mxu0 %v2509
    %v2511 = vand.u32 %v2403, 4294901760
    %v2512 = vsub.f32 %v2403, %v2511
    %v2513 = vand.u32 %v2512, 4294901760
    %v2514 = vsub.f32 %v2512, %v2513
    %v2515 = vand.u32 %v2514, 4294901760
    %2516 = vmatpush.msra.mxu0 %v2515
    %v2517 = vand.u32 %v2402, 4294901760
    %v2518 = vsub.f32 %v2402, %v2517
    %v2519 = vand.u32 %v2518, 4294901760
    %v2520 = vsub.f32 %v2518, %v2519
    %v2521 = vand.u32 %v2520, 4294901760
    %2522 = vmatpush.msra.mxu0 %v2521
    %v2523 = vand.u32 %v2401, 4294901760
    %v2524 = vsub.f32 %v2401, %v2523
    %v2525 = vand.u32 %v2524, 4294901760
    %v2526 = vsub.f32 %v2524, %v2525
    %v2527 = vand.u32 %v2526, 4294901760
    %2528 = vmatpush.msra.mxu0 %v2527
    %v2529 = vand.u32 %v2400, 4294901760
    %v2530 = vsub.f32 %v2400, %v2529
    %v2531 = vand.u32 %v2530, 4294901760
    %v2532 = vsub.f32 %v2530, %v2531
    %v2533 = vand.u32 %v2532, 4294901760
    %2534 = vmatpush.msra.mxu0 %v2533
    %v2535 = vand.u32 %v2399, 4294901760
    %v2536 = vsub.f32 %v2399, %v2535
    %v2537 = vand.u32 %v2536, 4294901760
    %v2538 = vsub.f32 %v2536, %v2537
    %v2539 = vand.u32 %v2538, 4294901760
    %2540 = vmatpush.msra.mxu0 %v2539
    %v2541 = vand.u32 %v2398, 4294901760
    %v2542 = vsub.f32 %v2398, %v2541
    %v2543 = vand.u32 %v2542, 4294901760
    %v2544 = vsub.f32 %v2542, %v2543
    %v2545 = vand.u32 %v2544, 4294901760
    %2546 = vmatpush.msra.mxu0 %v2545
    %v2547 = vand.u32 %v2397, 4294901760
    %v2548 = vsub.f32 %v2397, %v2547
    %v2549 = vand.u32 %v2548, 4294901760
    %v2550 = vsub.f32 %v2548, %v2549
    %v2551 = vand.u32 %v2550, 4294901760
    %2552 = vmatpush.msra.mxu0 %v2551
    %v2553 = vand.u32 %v2396, 4294901760
    %v2554 = vsub.f32 %v2396, %v2553
    %v2555 = vand.u32 %v2554, 4294901760
    %v2556 = vsub.f32 %v2554, %v2555
    %v2557 = vand.u32 %v2556, 4294901760
    %2558 = vmatpush.msra.mxu0 %v2557
    %v2559 = vand.u32 %v2395, 4294901760
    %v2560 = vsub.f32 %v2395, %v2559
    %v2561 = vand.u32 %v2560, 4294901760
    %v2562 = vsub.f32 %v2560, %v2561
    %v2563 = vand.u32 %v2562, 4294901760
    %2564 = vmatpush.msra.mxu0 %v2563
    %v2565 = vand.u32 %v2394, 4294901760
    %v2566 = vsub.f32 %v2394, %v2565
    %v2567 = vand.u32 %v2566, 4294901760
    %v2568 = vsub.f32 %v2566, %v2567
    %v2569 = vand.u32 %v2568, 4294901760
    %2570 = vmatpush.msra.mxu0 %v2569
    %v2571 = vand.u32 %v1478, 4294901760
    %2572 = vmatmul.f32.gmra.mxu0 %v2571
    %v2573 = vpop.f32.mrf.mxu0
    %v2574 = vadd.f32 %v2449, %v2573
    %v2575 = vand.u32 %v1482, 4294901760
    %2576 = vmatmul.f32.gmra.mxu0 %v2575
    %v2577 = vpop.f32.mrf.mxu0
    %v2578 = vadd.f32 %v2457, %v2577
    %v2579 = vand.u32 %v1486, 4294901760
    %2580 = vmatmul.f32.gmra.mxu0 %v2579
    %v2581 = vpop.f32.mrf.mxu0
    %v2582 = vadd.f32 %v2465, %v2581
    %v2583 = vand.u32 %v1490, 4294901760
    %2584 = vmatmul.f32.gmra.mxu0 %v2583
    %v2585 = vpop.f32.mrf.mxu0
    %v2586 = vadd.f32 %v2473, %v2585
    %2587 = vdwg.mxu0
    %v2588 = vand.u32 %v2409, 4294901760
    %v2589 = vsub.f32 %v2409, %v2588
    %2590 = vmatpush.msra.mxu0 %v2589
    %v2591 = vand.u32 %v2408, 4294901760
    %v2592 = vsub.f32 %v2408, %v2591
    %2593 = vmatpush.msra.mxu0 %v2592
    %v2594 = vand.u32 %v2407, 4294901760
    %v2595 = vsub.f32 %v2407, %v2594
    %2596 = vmatpush.msra.mxu0 %v2595
    %v2597 = vand.u32 %v2406, 4294901760
    %v2598 = vsub.f32 %v2406, %v2597
    %2599 = vmatpush.msra.mxu0 %v2598
    %v2600 = vand.u32 %v2405, 4294901760
    %v2601 = vsub.f32 %v2405, %v2600
    %2602 = vmatpush.msra.mxu0 %v2601
    %v2603 = vand.u32 %v2404, 4294901760
    %v2604 = vsub.f32 %v2404, %v2603
    %2605 = vmatpush.msra.mxu0 %v2604
    %v2606 = vand.u32 %v2403, 4294901760
    %v2607 = vsub.f32 %v2403, %v2606
    %2608 = vmatpush.msra.mxu0 %v2607
    %v2609 = vand.u32 %v2402, 4294901760
    %v2610 = vsub.f32 %v2402, %v2609
    %2611 = vmatpush.msra.mxu0 %v2610
    %v2612 = vand.u32 %v2401, 4294901760
    %v2613 = vsub.f32 %v2401, %v2612
    %2614 = vmatpush.msra.mxu0 %v2613
    %v2615 = vand.u32 %v2400, 4294901760
    %v2616 = vsub.f32 %v2400, %v2615
    %2617 = vmatpush.msra.mxu0 %v2616
    %v2618 = vand.u32 %v2399, 4294901760
    %v2619 = vsub.f32 %v2399, %v2618
    %2620 = vmatpush.msra.mxu0 %v2619
    %v2621 = vand.u32 %v2398, 4294901760
    %v2622 = vsub.f32 %v2398, %v2621
    %2623 = vmatpush.msra.mxu0 %v2622
    %v2624 = vand.u32 %v2397, 4294901760
    %v2625 = vsub.f32 %v2397, %v2624
    %2626 = vmatpush.msra.mxu0 %v2625
    %v2627 = vand.u32 %v2396, 4294901760
    %v2628 = vsub.f32 %v2396, %v2627
    %2629 = vmatpush.msra.mxu0 %v2628
    %v2630 = vand.u32 %v2395, 4294901760
    %v2631 = vsub.f32 %v2395, %v2630
    %2632 = vmatpush.msra.mxu0 %v2631
    %v2633 = vand.u32 %v2394, 4294901760
    %v2634 = vsub.f32 %v2394, %v2633
    %2635 = vmatpush.msra.mxu0 %v2634
    %v2636 = vand.u32 %v1478, 4294901760
    %v2637 = vsub.f32 %v1478, %v2636
    %2638 = vmatmul.f32.gmra.mxu0 %v2637
    %v2639 = vpop.f32.mrf.mxu0
    %v2640 = vadd.f32 %v2574, %v2639
    %v2641 = vand.u32 %v1482, 4294901760
    %v2642 = vsub.f32 %v1482, %v2641
    %2643 = vmatmul.f32.gmra.mxu0 %v2642
    %v2644 = vpop.f32.mrf.mxu0
    %v2645 = vadd.f32 %v2578, %v2644
    %v2646 = vand.u32 %v1486, 4294901760
    %v2647 = vsub.f32 %v1486, %v2646
    %2648 = vmatmul.f32.gmra.mxu0 %v2647
    %v2649 = vpop.f32.mrf.mxu0
    %v2650 = vadd.f32 %v2582, %v2649
    %v2651 = vand.u32 %v1490, 4294901760
    %v2652 = vsub.f32 %v1490, %v2651
    %2653 = vmatmul.f32.gmra.mxu0 %v2652
    %v2654 = vpop.f32.mrf.mxu0
    %v2655 = vadd.f32 %v2586, %v2654
    %2656 = vdwg.mxu0
    %v2657 = vand.u32 %v2409, 4294901760
    %2658 = vmatpush.msra.mxu0 %v2657
    %v2659 = vand.u32 %v2408, 4294901760
    %2660 = vmatpush.msra.mxu0 %v2659
    %v2661 = vand.u32 %v2407, 4294901760
    %2662 = vmatpush.msra.mxu0 %v2661
    %v2663 = vand.u32 %v2406, 4294901760
    %2664 = vmatpush.msra.mxu0 %v2663
    %v2665 = vand.u32 %v2405, 4294901760
    %2666 = vmatpush.msra.mxu0 %v2665
    %v2667 = vand.u32 %v2404, 4294901760
    %2668 = vmatpush.msra.mxu0 %v2667
    %v2669 = vand.u32 %v2403, 4294901760
    %2670 = vmatpush.msra.mxu0 %v2669
    %v2671 = vand.u32 %v2402, 4294901760
    %2672 = vmatpush.msra.mxu0 %v2671
    %v2673 = vand.u32 %v2401, 4294901760
    %2674 = vmatpush.msra.mxu0 %v2673
    %v2675 = vand.u32 %v2400, 4294901760
    %2676 = vmatpush.msra.mxu0 %v2675
    %v2677 = vand.u32 %v2399, 4294901760
    %2678 = vmatpush.msra.mxu0 %v2677
    %v2679 = vand.u32 %v2398, 4294901760
    %2680 = vmatpush.msra.mxu0 %v2679
    %v2681 = vand.u32 %v2397, 4294901760
    %2682 = vmatpush.msra.mxu0 %v2681
    %v2683 = vand.u32 %v2396, 4294901760
    %2684 = vmatpush.msra.mxu0 %v2683
    %v2685 = vand.u32 %v2395, 4294901760
    %2686 = vmatpush.msra.mxu0 %v2685
    %v2687 = vand.u32 %v2394, 4294901760
    %2688 = vmatpush.msra.mxu0 %v2687
    %v2689 = vand.u32 %v1478, 4294901760
    %v2690 = vsub.f32 %v1478, %v2689
    %v2691 = vand.u32 %v2690, 4294901760
    %2692 = vmatmul.f32.gmra.mxu0 %v2691
    %v2693 = vpop.f32.mrf.mxu0
    %v2694 = vadd.f32 %v2640, %v2693
    %v2695 = vand.u32 %v1482, 4294901760
    %v2696 = vsub.f32 %v1482, %v2695
    %v2697 = vand.u32 %v2696, 4294901760
    %2698 = vmatmul.f32.gmra.mxu0 %v2697
    %v2699 = vpop.f32.mrf.mxu0
    %v2700 = vadd.f32 %v2645, %v2699
    %v2701 = vand.u32 %v1486, 4294901760
    %v2702 = vsub.f32 %v1486, %v2701
    %v2703 = vand.u32 %v2702, 4294901760
    %2704 = vmatmul.f32.gmra.mxu0 %v2703
    %v2705 = vpop.f32.mrf.mxu0
    %v2706 = vadd.f32 %v2650, %v2705
    %v2707 = vand.u32 %v1490, 4294901760
    %v2708 = vsub.f32 %v1490, %v2707
    %v2709 = vand.u32 %v2708, 4294901760
    %2710 = vmatmul.f32.gmra.mxu0 %v2709
    %v2711 = vpop.f32.mrf.mxu0
    %v2712 = vadd.f32 %v2655, %v2711
    %2713 = vdwg.mxu0
    %v2714 = vand.u32 %v2409, 4294901760
    %v2715 = vsub.f32 %v2409, %v2714
    %v2716 = vand.u32 %v2715, 4294901760
    %2717 = vmatpush.msra.mxu0 %v2716
    %v2718 = vand.u32 %v2408, 4294901760
    %v2719 = vsub.f32 %v2408, %v2718
    %v2720 = vand.u32 %v2719, 4294901760
    %2721 = vmatpush.msra.mxu0 %v2720
    %v2722 = vand.u32 %v2407, 4294901760
    %v2723 = vsub.f32 %v2407, %v2722
    %v2724 = vand.u32 %v2723, 4294901760
    %2725 = vmatpush.msra.mxu0 %v2724
    %v2726 = vand.u32 %v2406, 4294901760
    %v2727 = vsub.f32 %v2406, %v2726
    %v2728 = vand.u32 %v2727, 4294901760
    %2729 = vmatpush.msra.mxu0 %v2728
    %v2730 = vand.u32 %v2405, 4294901760
    %v2731 = vsub.f32 %v2405, %v2730
    %v2732 = vand.u32 %v2731, 4294901760
    %2733 = vmatpush.msra.mxu0 %v2732
    %v2734 = vand.u32 %v2404, 4294901760
    %v2735 = vsub.f32 %v2404, %v2734
    %v2736 = vand.u32 %v2735, 4294901760
    %2737 = vmatpush.msra.mxu0 %v2736
    %v2738 = vand.u32 %v2403, 4294901760
    %v2739 = vsub.f32 %v2403, %v2738
    %v2740 = vand.u32 %v2739, 4294901760
    %2741 = vmatpush.msra.mxu0 %v2740
    %v2742 = vand.u32 %v2402, 4294901760
    %v2743 = vsub.f32 %v2402, %v2742
    %v2744 = vand.u32 %v2743, 4294901760
    %2745 = vmatpush.msra.mxu0 %v2744
    %v2746 = vand.u32 %v2401, 4294901760
    %v2747 = vsub.f32 %v2401, %v2746
    %v2748 = vand.u32 %v2747, 4294901760
    %2749 = vmatpush.msra.mxu0 %v2748
    %v2750 = vand.u32 %v2400, 4294901760
    %v2751 = vsub.f32 %v2400, %v2750
    %v2752 = vand.u32 %v2751, 4294901760
    %2753 = vmatpush.msra.mxu0 %v2752
    %v2754 = vand.u32 %v2399, 4294901760
    %v2755 = vsub.f32 %v2399, %v2754
    %v2756 = vand.u32 %v2755, 4294901760
    %2757 = vmatpush.msra.mxu0 %v2756
    %v2758 = vand.u32 %v2398, 4294901760
    %v2759 = vsub.f32 %v2398, %v2758
    %v2760 = vand.u32 %v2759, 4294901760
    %2761 = vmatpush.msra.mxu0 %v2760
    %v2762 = vand.u32 %v2397, 4294901760
    %v2763 = vsub.f32 %v2397, %v2762
    %v2764 = vand.u32 %v2763, 4294901760
    %2765 = vmatpush.msra.mxu0 %v2764
    %v2766 = vand.u32 %v2396, 4294901760
    %v2767 = vsub.f32 %v2396, %v2766
    %v2768 = vand.u32 %v2767, 4294901760
    %2769 = vmatpush.msra.mxu0 %v2768
    %v2770 = vand.u32 %v2395, 4294901760
    %v2771 = vsub.f32 %v2395, %v2770
    %v2772 = vand.u32 %v2771, 4294901760
    %2773 = vmatpush.msra.mxu0 %v2772
    %v2774 = vand.u32 %v2394, 4294901760
    %v2775 = vsub.f32 %v2394, %v2774
    %v2776 = vand.u32 %v2775, 4294901760
    %2777 = vmatpush.msra.mxu0 %v2776
    %v2778 = vand.u32 %v1478, 4294901760
    %2779 = vmatmul.f32.gmra.mxu0 %v2778
    %v2780 = vpop.f32.mrf.mxu0
    %v2781 = vadd.f32 %v2694, %v2780
    %v2782 = vand.u32 %v1482, 4294901760
    %2783 = vmatmul.f32.gmra.mxu0 %v2782
    %v2784 = vpop.f32.mrf.mxu0
    %v2785 = vadd.f32 %v2700, %v2784
    %v2786 = vand.u32 %v1486, 4294901760
    %2787 = vmatmul.f32.gmra.mxu0 %v2786
    %v2788 = vpop.f32.mrf.mxu0
    %v2789 = vadd.f32 %v2706, %v2788
    %v2790 = vand.u32 %v1490, 4294901760
    %2791 = vmatmul.f32.gmra.mxu0 %v2790
    %v2792 = vpop.f32.mrf.mxu0
    %v2793 = vadd.f32 %v2712, %v2792
    %2794 = vdwg.mxu0
    %v2795 = vand.u32 %v2409, 4294901760
    %2796 = vmatpush.msra.mxu0 %v2795
    %v2797 = vand.u32 %v2408, 4294901760
    %2798 = vmatpush.msra.mxu0 %v2797
    %v2799 = vand.u32 %v2407, 4294901760
    %2800 = vmatpush.msra.mxu0 %v2799
    %v2801 = vand.u32 %v2406, 4294901760
    %2802 = vmatpush.msra.mxu0 %v2801
    %v2803 = vand.u32 %v2405, 4294901760
    %2804 = vmatpush.msra.mxu0 %v2803
    %v2805 = vand.u32 %v2404, 4294901760
    %2806 = vmatpush.msra.mxu0 %v2805
    %v2807 = vand.u32 %v2403, 4294901760
    %2808 = vmatpush.msra.mxu0 %v2807
    %v2809 = vand.u32 %v2402, 4294901760
    %2810 = vmatpush.msra.mxu0 %v2809
    %v2811 = vand.u32 %v2401, 4294901760
    %2812 = vmatpush.msra.mxu0 %v2811
    %v2813 = vand.u32 %v2400, 4294901760
    %2814 = vmatpush.msra.mxu0 %v2813
    %v2815 = vand.u32 %v2399, 4294901760
    %2816 = vmatpush.msra.mxu0 %v2815
    %v2817 = vand.u32 %v2398, 4294901760
    %2818 = vmatpush.msra.mxu0 %v2817
    %v2819 = vand.u32 %v2397, 4294901760
    %2820 = vmatpush.msra.mxu0 %v2819
    %v2821 = vand.u32 %v2396, 4294901760
    %2822 = vmatpush.msra.mxu0 %v2821
    %v2823 = vand.u32 %v2395, 4294901760
    %2824 = vmatpush.msra.mxu0 %v2823
    %v2825 = vand.u32 %v2394, 4294901760
    %2826 = vmatpush.msra.mxu0 %v2825
    %v2827 = vand.u32 %v1478, 4294901760
    %2828 = vmatmul.f32.gmra.mxu0 %v2827
    %v2829 = vpop.f32.mrf.mxu0
    %v2830 = vadd.f32 %v2781, %v2829
    %v2831 = vand.u32 %v1482, 4294901760
    %2832 = vmatmul.f32.gmra.mxu0 %v2831
    %v2833 = vpop.f32.mrf.mxu0
    %v2834 = vadd.f32 %v2785, %v2833
    %v2835 = vand.u32 %v1486, 4294901760
    %2836 = vmatmul.f32.gmra.mxu0 %v2835
    %v2837 = vpop.f32.mrf.mxu0
    %v2838 = vadd.f32 %v2789, %v2837
    %v2839 = vand.u32 %v1490, 4294901760
    %2840 = vmatmul.f32.gmra.mxu0 %v2839
    %v2841 = vpop.f32.mrf.mxu0
    %v2842 = vadd.f32 %v2793, %v2841
    %2843 = vdwg.mxu0
    %v2844 = vadd.f32 %v2379, %v2830
    %v2845 = vadd.f32 %v2383, %v2834
    %v2846 = vadd.f32 %v2387, %v2838
    %v2847 = vadd.f32 %v2391, %v2842
    %v2848 = vld [vmem:[%s3] sm:$0x1]
    %v2849 = vld [vmem:[%s4] sm:$0x1]
    %v2850 = vadd.f32 %v2844, %v2845
    %v2851 = vadd.f32 %v2850, %v2846
    %v2852 = vadd.f32 %v2851, %v2847
    %v2853 = vrot.slane %v2852, 4
    %v2854 = vadd.f32 %v2852, %v2853
    %v2855 = vrot.slane %v2854, 2
    %v2856 = vadd.f32 %v2854, %v2855
    %v2857 = vrot.slane %v2856, 1
    %v2858 = vadd.f32 %v2856, %v2857
    %v2859 = vmul.f32 %v2844, %v2844
    %v2860 = vmul.f32 %v2845, %v2845
    %v2861 = vmul.f32 %v2846, %v2846
    %v2862 = vmul.f32 %v2847, %v2847
    %v2863 = vadd.f32 %v2859, %v2860
    %v2864 = vadd.f32 %v2863, %v2861
    %v2865 = vadd.f32 %v2864, %v2862
    %v2866 = vrot.slane %v2865, 4
    %v2867 = vadd.f32 %v2865, %v2866
    %v2868 = vrot.slane %v2867, 2
    %v2869 = vadd.f32 %v2867, %v2868
    %v2870 = vrot.slane %v2869, 1
    %v2871 = vadd.f32 %v2869, %v2870
    %v2872 = vand.u32 %v162, 4294901760
    %2873 = vmatpush.msra.mxu0 %v2872
    %v2874 = vand.u32 %v161, 4294901760
    %2875 = vmatpush.msra.mxu0 %v2874
    %v2876 = vand.u32 %v160, 4294901760
    %2877 = vmatpush.msra.mxu0 %v2876
    %v2878 = vand.u32 %v159, 4294901760
    %2879 = vmatpush.msra.mxu0 %v2878
    %v2880 = vand.u32 %v158, 4294901760
    %2881 = vmatpush.msra.mxu0 %v2880
    %v2882 = vand.u32 %v157, 4294901760
    %2883 = vmatpush.msra.mxu0 %v2882
    %v2884 = vand.u32 %v156, 4294901760
    %2885 = vmatpush.msra.mxu0 %v2884
    %v2886 = vand.u32 %v155, 4294901760
    %2887 = vmatpush.msra.mxu0 %v2886
    %v2888 = vand.u32 %v154, 4294901760
    %2889 = vmatpush.msra.mxu0 %v2888
    %v2890 = vand.u32 %v153, 4294901760
    %2891 = vmatpush.msra.mxu0 %v2890
    %v2892 = vand.u32 %v152, 4294901760
    %2893 = vmatpush.msra.mxu0 %v2892
    %v2894 = vand.u32 %v151, 4294901760
    %2895 = vmatpush.msra.mxu0 %v2894
    %v2896 = vand.u32 %v150, 4294901760
    %2897 = vmatpush.msra.mxu0 %v2896
    %v2898 = vand.u32 %v149, 4294901760
    %2899 = vmatpush.msra.mxu0 %v2898
    %v2900 = vand.u32 %v148, 4294901760
    %2901 = vmatpush.msra.mxu0 %v2900
    %v2902 = vand.u32 %v147, 4294901760
    %2903 = vmatpush.msra.mxu0 %v2902
    %v2904 = vand.u32 %v2858, 4294901760
    %v2905 = vsub.f32 %v2858, %v2904
    %v2906 = vand.u32 %v2905, 4294901760
    %v2907 = vsub.f32 %v2905, %v2906
    %v2908 = vand.u32 %v2907, 4294901760
    %2909 = vmatmul.f32.gmra.mxu0 %v2908
    %v2910 = vpop.f32.mrf.mxu0
    %v2911 = vadd.f32 0.0, %v2910
    %2912 = vdwg.mxu0
    %v2913 = vand.u32 %v162, 4294901760
    %v2914 = vsub.f32 %v162, %v2913
    %v2915 = vand.u32 %v2914, 4294901760
    %v2916 = vsub.f32 %v2914, %v2915
    %v2917 = vand.u32 %v2916, 4294901760
    %2918 = vmatpush.msra.mxu0 %v2917
    %v2919 = vand.u32 %v161, 4294901760
    %v2920 = vsub.f32 %v161, %v2919
    %v2921 = vand.u32 %v2920, 4294901760
    %v2922 = vsub.f32 %v2920, %v2921
    %v2923 = vand.u32 %v2922, 4294901760
    %2924 = vmatpush.msra.mxu0 %v2923
    %v2925 = vand.u32 %v160, 4294901760
    %v2926 = vsub.f32 %v160, %v2925
    %v2927 = vand.u32 %v2926, 4294901760
    %v2928 = vsub.f32 %v2926, %v2927
    %v2929 = vand.u32 %v2928, 4294901760
    %2930 = vmatpush.msra.mxu0 %v2929
    %v2931 = vand.u32 %v159, 4294901760
    %v2932 = vsub.f32 %v159, %v2931
    %v2933 = vand.u32 %v2932, 4294901760
    %v2934 = vsub.f32 %v2932, %v2933
    %v2935 = vand.u32 %v2934, 4294901760
    %2936 = vmatpush.msra.mxu0 %v2935
    %v2937 = vand.u32 %v158, 4294901760
    %v2938 = vsub.f32 %v158, %v2937
    %v2939 = vand.u32 %v2938, 4294901760
    %v2940 = vsub.f32 %v2938, %v2939
    %v2941 = vand.u32 %v2940, 4294901760
    %2942 = vmatpush.msra.mxu0 %v2941
    %v2943 = vand.u32 %v157, 4294901760
    %v2944 = vsub.f32 %v157, %v2943
    %v2945 = vand.u32 %v2944, 4294901760
    %v2946 = vsub.f32 %v2944, %v2945
    %v2947 = vand.u32 %v2946, 4294901760
    %2948 = vmatpush.msra.mxu0 %v2947
    %v2949 = vand.u32 %v156, 4294901760
    %v2950 = vsub.f32 %v156, %v2949
    %v2951 = vand.u32 %v2950, 4294901760
    %v2952 = vsub.f32 %v2950, %v2951
    %v2953 = vand.u32 %v2952, 4294901760
    %2954 = vmatpush.msra.mxu0 %v2953
    %v2955 = vand.u32 %v155, 4294901760
    %v2956 = vsub.f32 %v155, %v2955
    %v2957 = vand.u32 %v2956, 4294901760
    %v2958 = vsub.f32 %v2956, %v2957
    %v2959 = vand.u32 %v2958, 4294901760
    %2960 = vmatpush.msra.mxu0 %v2959
    %v2961 = vand.u32 %v154, 4294901760
    %v2962 = vsub.f32 %v154, %v2961
    %v2963 = vand.u32 %v2962, 4294901760
    %v2964 = vsub.f32 %v2962, %v2963
    %v2965 = vand.u32 %v2964, 4294901760
    %2966 = vmatpush.msra.mxu0 %v2965
    %v2967 = vand.u32 %v153, 4294901760
    %v2968 = vsub.f32 %v153, %v2967
    %v2969 = vand.u32 %v2968, 4294901760
    %v2970 = vsub.f32 %v2968, %v2969
    %v2971 = vand.u32 %v2970, 4294901760
    %2972 = vmatpush.msra.mxu0 %v2971
    %v2973 = vand.u32 %v152, 4294901760
    %v2974 = vsub.f32 %v152, %v2973
    %v2975 = vand.u32 %v2974, 4294901760
    %v2976 = vsub.f32 %v2974, %v2975
    %v2977 = vand.u32 %v2976, 4294901760
    %2978 = vmatpush.msra.mxu0 %v2977
    %v2979 = vand.u32 %v151, 4294901760
    %v2980 = vsub.f32 %v151, %v2979
    %v2981 = vand.u32 %v2980, 4294901760
    %v2982 = vsub.f32 %v2980, %v2981
    %v2983 = vand.u32 %v2982, 4294901760
    %2984 = vmatpush.msra.mxu0 %v2983
    %v2985 = vand.u32 %v150, 4294901760
    %v2986 = vsub.f32 %v150, %v2985
    %v2987 = vand.u32 %v2986, 4294901760
    %v2988 = vsub.f32 %v2986, %v2987
    %v2989 = vand.u32 %v2988, 4294901760
    %2990 = vmatpush.msra.mxu0 %v2989
    %v2991 = vand.u32 %v149, 4294901760
    %v2992 = vsub.f32 %v149, %v2991
    %v2993 = vand.u32 %v2992, 4294901760
    %v2994 = vsub.f32 %v2992, %v2993
    %v2995 = vand.u32 %v2994, 4294901760
    %2996 = vmatpush.msra.mxu0 %v2995
    %v2997 = vand.u32 %v148, 4294901760
    %v2998 = vsub.f32 %v148, %v2997
    %v2999 = vand.u32 %v2998, 4294901760
    %v3000 = vsub.f32 %v2998, %v2999
    %v3001 = vand.u32 %v3000, 4294901760
    %3002 = vmatpush.msra.mxu0 %v3001
    %v3003 = vand.u32 %v147, 4294901760
    %v3004 = vsub.f32 %v147, %v3003
    %v3005 = vand.u32 %v3004, 4294901760
    %v3006 = vsub.f32 %v3004, %v3005
    %v3007 = vand.u32 %v3006, 4294901760
    %3008 = vmatpush.msra.mxu0 %v3007
    %v3009 = vand.u32 %v2858, 4294901760
    %3010 = vmatmul.f32.gmra.mxu0 %v3009
    %v3011 = vpop.f32.mrf.mxu0
    %v3012 = vadd.f32 %v2911, %v3011
    %3013 = vdwg.mxu0
    %v3014 = vand.u32 %v162, 4294901760
    %v3015 = vsub.f32 %v162, %v3014
    %3016 = vmatpush.msra.mxu0 %v3015
    %v3017 = vand.u32 %v161, 4294901760
    %v3018 = vsub.f32 %v161, %v3017
    %3019 = vmatpush.msra.mxu0 %v3018
    %v3020 = vand.u32 %v160, 4294901760
    %v3021 = vsub.f32 %v160, %v3020
    %3022 = vmatpush.msra.mxu0 %v3021
    %v3023 = vand.u32 %v159, 4294901760
    %v3024 = vsub.f32 %v159, %v3023
    %3025 = vmatpush.msra.mxu0 %v3024
    %v3026 = vand.u32 %v158, 4294901760
    %v3027 = vsub.f32 %v158, %v3026
    %3028 = vmatpush.msra.mxu0 %v3027
    %v3029 = vand.u32 %v157, 4294901760
    %v3030 = vsub.f32 %v157, %v3029
    %3031 = vmatpush.msra.mxu0 %v3030
    %v3032 = vand.u32 %v156, 4294901760
    %v3033 = vsub.f32 %v156, %v3032
    %3034 = vmatpush.msra.mxu0 %v3033
    %v3035 = vand.u32 %v155, 4294901760
    %v3036 = vsub.f32 %v155, %v3035
    %3037 = vmatpush.msra.mxu0 %v3036
    %v3038 = vand.u32 %v154, 4294901760
    %v3039 = vsub.f32 %v154, %v3038
    %3040 = vmatpush.msra.mxu0 %v3039
    %v3041 = vand.u32 %v153, 4294901760
    %v3042 = vsub.f32 %v153, %v3041
    %3043 = vmatpush.msra.mxu0 %v3042
    %v3044 = vand.u32 %v152, 4294901760
    %v3045 = vsub.f32 %v152, %v3044
    %3046 = vmatpush.msra.mxu0 %v3045
    %v3047 = vand.u32 %v151, 4294901760
    %v3048 = vsub.f32 %v151, %v3047
    %3049 = vmatpush.msra.mxu0 %v3048
    %v3050 = vand.u32 %v150, 4294901760
    %v3051 = vsub.f32 %v150, %v3050
    %3052 = vmatpush.msra.mxu0 %v3051
    %v3053 = vand.u32 %v149, 4294901760
    %v3054 = vsub.f32 %v149, %v3053
    %3055 = vmatpush.msra.mxu0 %v3054
    %v3056 = vand.u32 %v148, 4294901760
    %v3057 = vsub.f32 %v148, %v3056
    %3058 = vmatpush.msra.mxu0 %v3057
    %v3059 = vand.u32 %v147, 4294901760
    %v3060 = vsub.f32 %v147, %v3059
    %3061 = vmatpush.msra.mxu0 %v3060
    %v3062 = vand.u32 %v2858, 4294901760
    %v3063 = vsub.f32 %v2858, %v3062
    %3064 = vmatmul.f32.gmra.mxu0 %v3063
    %v3065 = vpop.f32.mrf.mxu0
    %v3066 = vadd.f32 %v3012, %v3065
    %3067 = vdwg.mxu0
    %v3068 = vand.u32 %v162, 4294901760
    %3069 = vmatpush.msra.mxu0 %v3068
    %v3070 = vand.u32 %v161, 4294901760
    %3071 = vmatpush.msra.mxu0 %v3070
    %v3072 = vand.u32 %v160, 4294901760
    %3073 = vmatpush.msra.mxu0 %v3072
    %v3074 = vand.u32 %v159, 4294901760
    %3075 = vmatpush.msra.mxu0 %v3074
    %v3076 = vand.u32 %v158, 4294901760
    %3077 = vmatpush.msra.mxu0 %v3076
    %v3078 = vand.u32 %v157, 4294901760
    %3079 = vmatpush.msra.mxu0 %v3078
    %v3080 = vand.u32 %v156, 4294901760
    %3081 = vmatpush.msra.mxu0 %v3080
    %v3082 = vand.u32 %v155, 4294901760
    %3083 = vmatpush.msra.mxu0 %v3082
    %v3084 = vand.u32 %v154, 4294901760
    %3085 = vmatpush.msra.mxu0 %v3084
    %v3086 = vand.u32 %v153, 4294901760
    %3087 = vmatpush.msra.mxu0 %v3086
    %v3088 = vand.u32 %v152, 4294901760
    %3089 = vmatpush.msra.mxu0 %v3088
    %v3090 = vand.u32 %v151, 4294901760
    %3091 = vmatpush.msra.mxu0 %v3090
    %v3092 = vand.u32 %v150, 4294901760
    %3093 = vmatpush.msra.mxu0 %v3092
    %v3094 = vand.u32 %v149, 4294901760
    %3095 = vmatpush.msra.mxu0 %v3094
    %v3096 = vand.u32 %v148, 4294901760
    %3097 = vmatpush.msra.mxu0 %v3096
    %v3098 = vand.u32 %v147, 4294901760
    %3099 = vmatpush.msra.mxu0 %v3098
    %v3100 = vand.u32 %v2858, 4294901760
    %v3101 = vsub.f32 %v2858, %v3100
    %v3102 = vand.u32 %v3101, 4294901760
    %3103 = vmatmul.f32.gmra.mxu0 %v3102
    %v3104 = vpop.f32.mrf.mxu0
    %v3105 = vadd.f32 %v3066, %v3104
    %3106 = vdwg.mxu0
    %v3107 = vand.u32 %v162, 4294901760
    %v3108 = vsub.f32 %v162, %v3107
    %v3109 = vand.u32 %v3108, 4294901760
    %3110 = vmatpush.msra.mxu0 %v3109
    %v3111 = vand.u32 %v161, 4294901760
    %v3112 = vsub.f32 %v161, %v3111
    %v3113 = vand.u32 %v3112, 4294901760
    %3114 = vmatpush.msra.mxu0 %v3113
    %v3115 = vand.u32 %v160, 4294901760
    %v3116 = vsub.f32 %v160, %v3115
    %v3117 = vand.u32 %v3116, 4294901760
    %3118 = vmatpush.msra.mxu0 %v3117
    %v3119 = vand.u32 %v159, 4294901760
    %v3120 = vsub.f32 %v159, %v3119
    %v3121 = vand.u32 %v3120, 4294901760
    %3122 = vmatpush.msra.mxu0 %v3121
    %v3123 = vand.u32 %v158, 4294901760
    %v3124 = vsub.f32 %v158, %v3123
    %v3125 = vand.u32 %v3124, 4294901760
    %3126 = vmatpush.msra.mxu0 %v3125
    %v3127 = vand.u32 %v157, 4294901760
    %v3128 = vsub.f32 %v157, %v3127
    %v3129 = vand.u32 %v3128, 4294901760
    %3130 = vmatpush.msra.mxu0 %v3129
    %v3131 = vand.u32 %v156, 4294901760
    %v3132 = vsub.f32 %v156, %v3131
    %v3133 = vand.u32 %v3132, 4294901760
    %3134 = vmatpush.msra.mxu0 %v3133
    %v3135 = vand.u32 %v155, 4294901760
    %v3136 = vsub.f32 %v155, %v3135
    %v3137 = vand.u32 %v3136, 4294901760
    %3138 = vmatpush.msra.mxu0 %v3137
    %v3139 = vand.u32 %v154, 4294901760
    %v3140 = vsub.f32 %v154, %v3139
    %v3141 = vand.u32 %v3140, 4294901760
    %3142 = vmatpush.msra.mxu0 %v3141
    %v3143 = vand.u32 %v153, 4294901760
    %v3144 = vsub.f32 %v153, %v3143
    %v3145 = vand.u32 %v3144, 4294901760
    %3146 = vmatpush.msra.mxu0 %v3145
    %v3147 = vand.u32 %v152, 4294901760
    %v3148 = vsub.f32 %v152, %v3147
    %v3149 = vand.u32 %v3148, 4294901760
    %3150 = vmatpush.msra.mxu0 %v3149
    %v3151 = vand.u32 %v151, 4294901760
    %v3152 = vsub.f32 %v151, %v3151
    %v3153 = vand.u32 %v3152, 4294901760
    %3154 = vmatpush.msra.mxu0 %v3153
    %v3155 = vand.u32 %v150, 4294901760
    %v3156 = vsub.f32 %v150, %v3155
    %v3157 = vand.u32 %v3156, 4294901760
    %3158 = vmatpush.msra.mxu0 %v3157
    %v3159 = vand.u32 %v149, 4294901760
    %v3160 = vsub.f32 %v149, %v3159
    %v3161 = vand.u32 %v3160, 4294901760
    %3162 = vmatpush.msra.mxu0 %v3161
    %v3163 = vand.u32 %v148, 4294901760
    %v3164 = vsub.f32 %v148, %v3163
    %v3165 = vand.u32 %v3164, 4294901760
    %3166 = vmatpush.msra.mxu0 %v3165
    %v3167 = vand.u32 %v147, 4294901760
    %v3168 = vsub.f32 %v147, %v3167
    %v3169 = vand.u32 %v3168, 4294901760
    %3170 = vmatpush.msra.mxu0 %v3169
    %v3171 = vand.u32 %v2858, 4294901760
    %3172 = vmatmul.f32.gmra.mxu0 %v3171
    %v3173 = vpop.f32.mrf.mxu0
    %v3174 = vadd.f32 %v3105, %v3173
    %3175 = vdwg.mxu0
    %v3176 = vand.u32 %v162, 4294901760
    %3177 = vmatpush.msra.mxu0 %v3176
    %v3178 = vand.u32 %v161, 4294901760
    %3179 = vmatpush.msra.mxu0 %v3178
    %v3180 = vand.u32 %v160, 4294901760
    %3181 = vmatpush.msra.mxu0 %v3180
    %v3182 = vand.u32 %v159, 4294901760
    %3183 = vmatpush.msra.mxu0 %v3182
    %v3184 = vand.u32 %v158, 4294901760
    %3185 = vmatpush.msra.mxu0 %v3184
    %v3186 = vand.u32 %v157, 4294901760
    %3187 = vmatpush.msra.mxu0 %v3186
    %v3188 = vand.u32 %v156, 4294901760
    %3189 = vmatpush.msra.mxu0 %v3188
    %v3190 = vand.u32 %v155, 4294901760
    %3191 = vmatpush.msra.mxu0 %v3190
    %v3192 = vand.u32 %v154, 4294901760
    %3193 = vmatpush.msra.mxu0 %v3192
    %v3194 = vand.u32 %v153, 4294901760
    %3195 = vmatpush.msra.mxu0 %v3194
    %v3196 = vand.u32 %v152, 4294901760
    %3197 = vmatpush.msra.mxu0 %v3196
    %v3198 = vand.u32 %v151, 4294901760
    %3199 = vmatpush.msra.mxu0 %v3198
    %v3200 = vand.u32 %v150, 4294901760
    %3201 = vmatpush.msra.mxu0 %v3200
    %v3202 = vand.u32 %v149, 4294901760
    %3203 = vmatpush.msra.mxu0 %v3202
    %v3204 = vand.u32 %v148, 4294901760
    %3205 = vmatpush.msra.mxu0 %v3204
    %v3206 = vand.u32 %v147, 4294901760
    %3207 = vmatpush.msra.mxu0 %v3206
    %v3208 = vand.u32 %v2858, 4294901760
    %3209 = vmatmul.f32.gmra.mxu0 %v3208
    %v3210 = vpop.f32.mrf.mxu0
    %v3211 = vadd.f32 %v3174, %v3210
    %3212 = vdwg.mxu0
    %v3213 = vand.u32 %v162, 4294901760
    %3214 = vmatpush.msra.mxu0 %v3213
    %v3215 = vand.u32 %v161, 4294901760
    %3216 = vmatpush.msra.mxu0 %v3215
    %v3217 = vand.u32 %v160, 4294901760
    %3218 = vmatpush.msra.mxu0 %v3217
    %v3219 = vand.u32 %v159, 4294901760
    %3220 = vmatpush.msra.mxu0 %v3219
    %v3221 = vand.u32 %v158, 4294901760
    %3222 = vmatpush.msra.mxu0 %v3221
    %v3223 = vand.u32 %v157, 4294901760
    %3224 = vmatpush.msra.mxu0 %v3223
    %v3225 = vand.u32 %v156, 4294901760
    %3226 = vmatpush.msra.mxu0 %v3225
    %v3227 = vand.u32 %v155, 4294901760
    %3228 = vmatpush.msra.mxu0 %v3227
    %v3229 = vand.u32 %v154, 4294901760
    %3230 = vmatpush.msra.mxu0 %v3229
    %v3231 = vand.u32 %v153, 4294901760
    %3232 = vmatpush.msra.mxu0 %v3231
    %v3233 = vand.u32 %v152, 4294901760
    %3234 = vmatpush.msra.mxu0 %v3233
    %v3235 = vand.u32 %v151, 4294901760
    %3236 = vmatpush.msra.mxu0 %v3235
    %v3237 = vand.u32 %v150, 4294901760
    %3238 = vmatpush.msra.mxu0 %v3237
    %v3239 = vand.u32 %v149, 4294901760
    %3240 = vmatpush.msra.mxu0 %v3239
    %v3241 = vand.u32 %v148, 4294901760
    %3242 = vmatpush.msra.mxu0 %v3241
    %v3243 = vand.u32 %v147, 4294901760
    %3244 = vmatpush.msra.mxu0 %v3243
    %v3245 = vand.u32 %v2871, 4294901760
    %v3246 = vsub.f32 %v2871, %v3245
    %v3247 = vand.u32 %v3246, 4294901760
    %v3248 = vsub.f32 %v3246, %v3247
    %v3249 = vand.u32 %v3248, 4294901760
    %3250 = vmatmul.f32.gmra.mxu0 %v3249
    %v3251 = vpop.f32.mrf.mxu0
    %v3252 = vadd.f32 0.0, %v3251
    %3253 = vdwg.mxu0
    %v3254 = vand.u32 %v162, 4294901760
    %v3255 = vsub.f32 %v162, %v3254
    %v3256 = vand.u32 %v3255, 4294901760
    %v3257 = vsub.f32 %v3255, %v3256
    %v3258 = vand.u32 %v3257, 4294901760
    %3259 = vmatpush.msra.mxu0 %v3258
    %v3260 = vand.u32 %v161, 4294901760
    %v3261 = vsub.f32 %v161, %v3260
    %v3262 = vand.u32 %v3261, 4294901760
    %v3263 = vsub.f32 %v3261, %v3262
    %v3264 = vand.u32 %v3263, 4294901760
    %3265 = vmatpush.msra.mxu0 %v3264
    %v3266 = vand.u32 %v160, 4294901760
    %v3267 = vsub.f32 %v160, %v3266
    %v3268 = vand.u32 %v3267, 4294901760
    %v3269 = vsub.f32 %v3267, %v3268
    %v3270 = vand.u32 %v3269, 4294901760
    %3271 = vmatpush.msra.mxu0 %v3270
    %v3272 = vand.u32 %v159, 4294901760
    %v3273 = vsub.f32 %v159, %v3272
    %v3274 = vand.u32 %v3273, 4294901760
    %v3275 = vsub.f32 %v3273, %v3274
    %v3276 = vand.u32 %v3275, 4294901760
    %3277 = vmatpush.msra.mxu0 %v3276
    %v3278 = vand.u32 %v158, 4294901760
    %v3279 = vsub.f32 %v158, %v3278
    %v3280 = vand.u32 %v3279, 4294901760
    %v3281 = vsub.f32 %v3279, %v3280
    %v3282 = vand.u32 %v3281, 4294901760
    %3283 = vmatpush.msra.mxu0 %v3282
    %v3284 = vand.u32 %v157, 4294901760
    %v3285 = vsub.f32 %v157, %v3284
    %v3286 = vand.u32 %v3285, 4294901760
    %v3287 = vsub.f32 %v3285, %v3286
    %v3288 = vand.u32 %v3287, 4294901760
    %3289 = vmatpush.msra.mxu0 %v3288
    %v3290 = vand.u32 %v156, 4294901760
    %v3291 = vsub.f32 %v156, %v3290
    %v3292 = vand.u32 %v3291, 4294901760
    %v3293 = vsub.f32 %v3291, %v3292
    %v3294 = vand.u32 %v3293, 4294901760
    %3295 = vmatpush.msra.mxu0 %v3294
    %v3296 = vand.u32 %v155, 4294901760
    %v3297 = vsub.f32 %v155, %v3296
    %v3298 = vand.u32 %v3297, 4294901760
    %v3299 = vsub.f32 %v3297, %v3298
    %v3300 = vand.u32 %v3299, 4294901760
    %3301 = vmatpush.msra.mxu0 %v3300
    %v3302 = vand.u32 %v154, 4294901760
    %v3303 = vsub.f32 %v154, %v3302
    %v3304 = vand.u32 %v3303, 4294901760
    %v3305 = vsub.f32 %v3303, %v3304
    %v3306 = vand.u32 %v3305, 4294901760
    %3307 = vmatpush.msra.mxu0 %v3306
    %v3308 = vand.u32 %v153, 4294901760
    %v3309 = vsub.f32 %v153, %v3308
    %v3310 = vand.u32 %v3309, 4294901760
    %v3311 = vsub.f32 %v3309, %v3310
    %v3312 = vand.u32 %v3311, 4294901760
    %3313 = vmatpush.msra.mxu0 %v3312
    %v3314 = vand.u32 %v152, 4294901760
    %v3315 = vsub.f32 %v152, %v3314
    %v3316 = vand.u32 %v3315, 4294901760
    %v3317 = vsub.f32 %v3315, %v3316
    %v3318 = vand.u32 %v3317, 4294901760
    %3319 = vmatpush.msra.mxu0 %v3318
    %v3320 = vand.u32 %v151, 4294901760
    %v3321 = vsub.f32 %v151, %v3320
    %v3322 = vand.u32 %v3321, 4294901760
    %v3323 = vsub.f32 %v3321, %v3322
    %v3324 = vand.u32 %v3323, 4294901760
    %3325 = vmatpush.msra.mxu0 %v3324
    %v3326 = vand.u32 %v150, 4294901760
    %v3327 = vsub.f32 %v150, %v3326
    %v3328 = vand.u32 %v3327, 4294901760
    %v3329 = vsub.f32 %v3327, %v3328
    %v3330 = vand.u32 %v3329, 4294901760
    %3331 = vmatpush.msra.mxu0 %v3330
    %v3332 = vand.u32 %v149, 4294901760
    %v3333 = vsub.f32 %v149, %v3332
    %v3334 = vand.u32 %v3333, 4294901760
    %v3335 = vsub.f32 %v3333, %v3334
    %v3336 = vand.u32 %v3335, 4294901760
    %3337 = vmatpush.msra.mxu0 %v3336
    %v3338 = vand.u32 %v148, 4294901760
    %v3339 = vsub.f32 %v148, %v3338
    %v3340 = vand.u32 %v3339, 4294901760
    %v3341 = vsub.f32 %v3339, %v3340
    %v3342 = vand.u32 %v3341, 4294901760
    %3343 = vmatpush.msra.mxu0 %v3342
    %v3344 = vand.u32 %v147, 4294901760
    %v3345 = vsub.f32 %v147, %v3344
    %v3346 = vand.u32 %v3345, 4294901760
    %v3347 = vsub.f32 %v3345, %v3346
    %v3348 = vand.u32 %v3347, 4294901760
    %3349 = vmatpush.msra.mxu0 %v3348
    %v3350 = vand.u32 %v2871, 4294901760
    %3351 = vmatmul.f32.gmra.mxu0 %v3350
    %v3352 = vpop.f32.mrf.mxu0
    %v3353 = vadd.f32 %v3252, %v3352
    %3354 = vdwg.mxu0
    %v3355 = vand.u32 %v162, 4294901760
    %v3356 = vsub.f32 %v162, %v3355
    %3357 = vmatpush.msra.mxu0 %v3356
    %v3358 = vand.u32 %v161, 4294901760
    %v3359 = vsub.f32 %v161, %v3358
    %3360 = vmatpush.msra.mxu0 %v3359
    %v3361 = vand.u32 %v160, 4294901760
    %v3362 = vsub.f32 %v160, %v3361
    %3363 = vmatpush.msra.mxu0 %v3362
    %v3364 = vand.u32 %v159, 4294901760
    %v3365 = vsub.f32 %v159, %v3364
    %3366 = vmatpush.msra.mxu0 %v3365
    %v3367 = vand.u32 %v158, 4294901760
    %v3368 = vsub.f32 %v158, %v3367
    %3369 = vmatpush.msra.mxu0 %v3368
    %v3370 = vand.u32 %v157, 4294901760
    %v3371 = vsub.f32 %v157, %v3370
    %3372 = vmatpush.msra.mxu0 %v3371
    %v3373 = vand.u32 %v156, 4294901760
    %v3374 = vsub.f32 %v156, %v3373
    %3375 = vmatpush.msra.mxu0 %v3374
    %v3376 = vand.u32 %v155, 4294901760
    %v3377 = vsub.f32 %v155, %v3376
    %3378 = vmatpush.msra.mxu0 %v3377
    %v3379 = vand.u32 %v154, 4294901760
    %v3380 = vsub.f32 %v154, %v3379
    %3381 = vmatpush.msra.mxu0 %v3380
    %v3382 = vand.u32 %v153, 4294901760
    %v3383 = vsub.f32 %v153, %v3382
    %3384 = vmatpush.msra.mxu0 %v3383
    %v3385 = vand.u32 %v152, 4294901760
    %v3386 = vsub.f32 %v152, %v3385
    %3387 = vmatpush.msra.mxu0 %v3386
    %v3388 = vand.u32 %v151, 4294901760
    %v3389 = vsub.f32 %v151, %v3388
    %3390 = vmatpush.msra.mxu0 %v3389
    %v3391 = vand.u32 %v150, 4294901760
    %v3392 = vsub.f32 %v150, %v3391
    %3393 = vmatpush.msra.mxu0 %v3392
    %v3394 = vand.u32 %v149, 4294901760
    %v3395 = vsub.f32 %v149, %v3394
    %3396 = vmatpush.msra.mxu0 %v3395
    %v3397 = vand.u32 %v148, 4294901760
    %v3398 = vsub.f32 %v148, %v3397
    %3399 = vmatpush.msra.mxu0 %v3398
    %v3400 = vand.u32 %v147, 4294901760
    %v3401 = vsub.f32 %v147, %v3400
    %3402 = vmatpush.msra.mxu0 %v3401
    %v3403 = vand.u32 %v2871, 4294901760
    %v3404 = vsub.f32 %v2871, %v3403
    %3405 = vmatmul.f32.gmra.mxu0 %v3404
    %v3406 = vpop.f32.mrf.mxu0
    %v3407 = vadd.f32 %v3353, %v3406
    %3408 = vdwg.mxu0
    %v3409 = vand.u32 %v162, 4294901760
    %3410 = vmatpush.msra.mxu0 %v3409
    %v3411 = vand.u32 %v161, 4294901760
    %3412 = vmatpush.msra.mxu0 %v3411
    %v3413 = vand.u32 %v160, 4294901760
    %3414 = vmatpush.msra.mxu0 %v3413
    %v3415 = vand.u32 %v159, 4294901760
    %3416 = vmatpush.msra.mxu0 %v3415
    %v3417 = vand.u32 %v158, 4294901760
    %3418 = vmatpush.msra.mxu0 %v3417
    %v3419 = vand.u32 %v157, 4294901760
    %3420 = vmatpush.msra.mxu0 %v3419
    %v3421 = vand.u32 %v156, 4294901760
    %3422 = vmatpush.msra.mxu0 %v3421
    %v3423 = vand.u32 %v155, 4294901760
    %3424 = vmatpush.msra.mxu0 %v3423
    %v3425 = vand.u32 %v154, 4294901760
    %3426 = vmatpush.msra.mxu0 %v3425
    %v3427 = vand.u32 %v153, 4294901760
    %3428 = vmatpush.msra.mxu0 %v3427
    %v3429 = vand.u32 %v152, 4294901760
    %3430 = vmatpush.msra.mxu0 %v3429
    %v3431 = vand.u32 %v151, 4294901760
    %3432 = vmatpush.msra.mxu0 %v3431
    %v3433 = vand.u32 %v150, 4294901760
    %3434 = vmatpush.msra.mxu0 %v3433
    %v3435 = vand.u32 %v149, 4294901760
    %3436 = vmatpush.msra.mxu0 %v3435
    %v3437 = vand.u32 %v148, 4294901760
    %3438 = vmatpush.msra.mxu0 %v3437
    %v3439 = vand.u32 %v147, 4294901760
    %3440 = vmatpush.msra.mxu0 %v3439
    %v3441 = vand.u32 %v2871, 4294901760
    %v3442 = vsub.f32 %v2871, %v3441
    %v3443 = vand.u32 %v3442, 4294901760
    %3444 = vmatmul.f32.gmra.mxu0 %v3443
    %v3445 = vpop.f32.mrf.mxu0
    %v3446 = vadd.f32 %v3407, %v3445
    %3447 = vdwg.mxu0
    %v3448 = vand.u32 %v162, 4294901760
    %v3449 = vsub.f32 %v162, %v3448
    %v3450 = vand.u32 %v3449, 4294901760
    %3451 = vmatpush.msra.mxu0 %v3450
    %v3452 = vand.u32 %v161, 4294901760
    %v3453 = vsub.f32 %v161, %v3452
    %v3454 = vand.u32 %v3453, 4294901760
    %3455 = vmatpush.msra.mxu0 %v3454
    %v3456 = vand.u32 %v160, 4294901760
    %v3457 = vsub.f32 %v160, %v3456
    %v3458 = vand.u32 %v3457, 4294901760
    %3459 = vmatpush.msra.mxu0 %v3458
    %v3460 = vand.u32 %v159, 4294901760
    %v3461 = vsub.f32 %v159, %v3460
    %v3462 = vand.u32 %v3461, 4294901760
    %3463 = vmatpush.msra.mxu0 %v3462
    %v3464 = vand.u32 %v158, 4294901760
    %v3465 = vsub.f32 %v158, %v3464
    %v3466 = vand.u32 %v3465, 4294901760
    %3467 = vmatpush.msra.mxu0 %v3466
    %v3468 = vand.u32 %v157, 4294901760
    %v3469 = vsub.f32 %v157, %v3468
    %v3470 = vand.u32 %v3469, 4294901760
    %3471 = vmatpush.msra.mxu0 %v3470
    %v3472 = vand.u32 %v156, 4294901760
    %v3473 = vsub.f32 %v156, %v3472
    %v3474 = vand.u32 %v3473, 4294901760
    %3475 = vmatpush.msra.mxu0 %v3474
    %v3476 = vand.u32 %v155, 4294901760
    %v3477 = vsub.f32 %v155, %v3476
    %v3478 = vand.u32 %v3477, 4294901760
    %3479 = vmatpush.msra.mxu0 %v3478
    %v3480 = vand.u32 %v154, 4294901760
    %v3481 = vsub.f32 %v154, %v3480
    %v3482 = vand.u32 %v3481, 4294901760
    %3483 = vmatpush.msra.mxu0 %v3482
    %v3484 = vand.u32 %v153, 4294901760
    %v3485 = vsub.f32 %v153, %v3484
    %v3486 = vand.u32 %v3485, 4294901760
    %3487 = vmatpush.msra.mxu0 %v3486
    %v3488 = vand.u32 %v152, 4294901760
    %v3489 = vsub.f32 %v152, %v3488
    %v3490 = vand.u32 %v3489, 4294901760
    %3491 = vmatpush.msra.mxu0 %v3490
    %v3492 = vand.u32 %v151, 4294901760
    %v3493 = vsub.f32 %v151, %v3492
    %v3494 = vand.u32 %v3493, 4294901760
    %3495 = vmatpush.msra.mxu0 %v3494
    %v3496 = vand.u32 %v150, 4294901760
    %v3497 = vsub.f32 %v150, %v3496
    %v3498 = vand.u32 %v3497, 4294901760
    %3499 = vmatpush.msra.mxu0 %v3498
    %v3500 = vand.u32 %v149, 4294901760
    %v3501 = vsub.f32 %v149, %v3500
    %v3502 = vand.u32 %v3501, 4294901760
    %3503 = vmatpush.msra.mxu0 %v3502
    %v3504 = vand.u32 %v148, 4294901760
    %v3505 = vsub.f32 %v148, %v3504
    %v3506 = vand.u32 %v3505, 4294901760
    %3507 = vmatpush.msra.mxu0 %v3506
    %v3508 = vand.u32 %v147, 4294901760
    %v3509 = vsub.f32 %v147, %v3508
    %v3510 = vand.u32 %v3509, 4294901760
    %3511 = vmatpush.msra.mxu0 %v3510
    %v3512 = vand.u32 %v2871, 4294901760
    %3513 = vmatmul.f32.gmra.mxu0 %v3512
    %v3514 = vpop.f32.mrf.mxu0
    %v3515 = vadd.f32 %v3446, %v3514
    %3516 = vdwg.mxu0
    %v3517 = vand.u32 %v162, 4294901760
    %3518 = vmatpush.msra.mxu0 %v3517
    %v3519 = vand.u32 %v161, 4294901760
    %3520 = vmatpush.msra.mxu0 %v3519
    %v3521 = vand.u32 %v160, 4294901760
    %3522 = vmatpush.msra.mxu0 %v3521
    %v3523 = vand.u32 %v159, 4294901760
    %3524 = vmatpush.msra.mxu0 %v3523
    %v3525 = vand.u32 %v158, 4294901760
    %3526 = vmatpush.msra.mxu0 %v3525
    %v3527 = vand.u32 %v157, 4294901760
    %3528 = vmatpush.msra.mxu0 %v3527
    %v3529 = vand.u32 %v156, 4294901760
    %3530 = vmatpush.msra.mxu0 %v3529
    %v3531 = vand.u32 %v155, 4294901760
    %3532 = vmatpush.msra.mxu0 %v3531
    %v3533 = vand.u32 %v154, 4294901760
    %3534 = vmatpush.msra.mxu0 %v3533
    %v3535 = vand.u32 %v153, 4294901760
    %3536 = vmatpush.msra.mxu0 %v3535
    %v3537 = vand.u32 %v152, 4294901760
    %3538 = vmatpush.msra.mxu0 %v3537
    %v3539 = vand.u32 %v151, 4294901760
    %3540 = vmatpush.msra.mxu0 %v3539
    %v3541 = vand.u32 %v150, 4294901760
    %3542 = vmatpush.msra.mxu0 %v3541
    %v3543 = vand.u32 %v149, 4294901760
    %3544 = vmatpush.msra.mxu0 %v3543
    %v3545 = vand.u32 %v148, 4294901760
    %3546 = vmatpush.msra.mxu0 %v3545
    %v3547 = vand.u32 %v147, 4294901760
    %3548 = vmatpush.msra.mxu0 %v3547
    %v3549 = vand.u32 %v2871, 4294901760
    %3550 = vmatmul.f32.gmra.mxu0 %v3549
    %v3551 = vpop.f32.mrf.mxu0
    %v3552 = vadd.f32 %v3515, %v3551
    %3553 = vdwg.mxu0
    %v3554 = vmul.f32 %v3211, %v3211
    %v3555 = vsub.f32 %v3552, %v3554
    %v3556 = vadd.f32 %v3555, 1e-05
    %v3557 = vrsqrt.pop %v3556
    %v3558 = vmul.f32 %v3557, %v3556
    %v3559 = vmul.f32 %v3558, %v3557
    %v3560 = vmul.f32 0.5, %v3559
    %v3561 = vsub.f32 1.5, %v3560
    %v3562 = vmul.f32 %v3557, %v3561
    %vm3563 = vweird.f32 %v3556
    %vm3564 = vweird.f32 %v3557
    %vm3565 = vmor %vm3563, %vm3564
    %v3566 = vsel %vm3565, %v3557, %v3562
    %v3567 = vmul.f32 %v2848, %v3566
    %v3568 = vmul.f32 %v3211, %v3567
    %v3569 = vsub.f32 %v2849, %v3568
    %v3571 = vperm.slane %v3567, 0
    %v3573 = vmul.f32 %v2844, %v3571
    %v3574 = vmul.f32 %v2845, %v3571
    %v3575 = vmul.f32 %v2846, %v3571
    %v3576 = vmul.f32 %v2847, %v3571
    %v3578 = vperm.slane %v3569, 0
    %v3580 = vadd.f32 %v3573, %v3578
    %v3581 = vadd.f32 %v3574, %v3578
    %v3582 = vadd.f32 %v3575, %v3578
    %v3583 = vadd.f32 %v3576, %v3578
    %v3584 = vmax.f32 %v3580, 0.0
    %v3585 = vmax.f32 %v3581, 0.0
    %v3586 = vmax.f32 %v3582, 0.0
    %v3587 = vmax.f32 %v3583, 0.0
    %3588 = vmatpush.msra.mxu0 0.0
    %3589 = vmatpush.msra.mxu0 0.0
    %3590 = vmatpush.msra.mxu0 0.0
    %3591 = vmatpush.msra.mxu0 0.0
    %3592 = vmatpush.msra.mxu0 0.0
    %3593 = vmatpush.msra.mxu0 0.0
    %3594 = vmatpush.msra.mxu0 0.0
    %3595 = vmatpush.msra.mxu0 0.0
    %3596 = vmatpush.msra.mxu0 0.0
    %3597 = vmatpush.msra.mxu0 0.0
    %3598 = vmatpush.msra.mxu0 0.0
    %3599 = vmatpush.msra.mxu0 0.0
    %v3600 = vand.u32 %v3587, 4294901760
    %3601 = vmatpush.msra.mxu0 %v3600
    %v3602 = vand.u32 %v3586, 4294901760
    %3603 = vmatpush.msra.mxu0 %v3602
    %v3604 = vand.u32 %v3585, 4294901760
    %3605 = vmatpush.msra.mxu0 %v3604
    %v3606 = vand.u32 %v3584, 4294901760
    %3607 = vmatpush.msra.mxu0 %v3606
    %v3608 = vand.u32 %v909, 4294901760
    %v3609 = vsub.f32 %v909, %v3608
    %v3610 = vand.u32 %v3609, 4294901760
    %v3611 = vsub.f32 %v3609, %v3610
    %v3612 = vand.u32 %v3611, 4294901760
    %3613 = vmatmul.f32.gmra.mxu0 %v3612
    %v3614 = vpop.f32.mrf.mxu0
    %v3615 = vadd.f32 0.0, %v3614
    %v3616 = vand.u32 %v912, 4294901760
    %v3617 = vsub.f32 %v912, %v3616
    %v3618 = vand.u32 %v3617, 4294901760
    %v3619 = vsub.f32 %v3617, %v3618
    %v3620 = vand.u32 %v3619, 4294901760
    %3621 = vmatmul.f32.gmra.mxu0 %v3620
    %v3622 = vpop.f32.mrf.mxu0
    %v3623 = vadd.f32 0.0, %v3622
    %v3624 = vand.u32 %v915, 4294901760
    %v3625 = vsub.f32 %v915, %v3624
    %v3626 = vand.u32 %v3625, 4294901760
    %v3627 = vsub.f32 %v3625, %v3626
    %v3628 = vand.u32 %v3627, 4294901760
    %3629 = vmatmul.f32.gmra.mxu0 %v3628
    %v3630 = vpop.f32.mrf.mxu0
    %v3631 = vadd.f32 0.0, %v3630
    %v3632 = vand.u32 %v918, 4294901760
    %v3633 = vsub.f32 %v918, %v3632
    %v3634 = vand.u32 %v3633, 4294901760
    %v3635 = vsub.f32 %v3633, %v3634
    %v3636 = vand.u32 %v3635, 4294901760
    %3637 = vmatmul.f32.gmra.mxu0 %v3636
    %v3638 = vpop.f32.mrf.mxu0
    %v3639 = vadd.f32 0.0, %v3638
    %3640 = vdwg.mxu0
    %3641 = vmatpush.msra.mxu0 0.0
    %3642 = vmatpush.msra.mxu0 0.0
    %3643 = vmatpush.msra.mxu0 0.0
    %3644 = vmatpush.msra.mxu0 0.0
    %3645 = vmatpush.msra.mxu0 0.0
    %3646 = vmatpush.msra.mxu0 0.0
    %3647 = vmatpush.msra.mxu0 0.0
    %3648 = vmatpush.msra.mxu0 0.0
    %3649 = vmatpush.msra.mxu0 0.0
    %3650 = vmatpush.msra.mxu0 0.0
    %3651 = vmatpush.msra.mxu0 0.0
    %3652 = vmatpush.msra.mxu0 0.0
    %v3653 = vand.u32 %v3587, 4294901760
    %v3654 = vsub.f32 %v3587, %v3653
    %v3655 = vand.u32 %v3654, 4294901760
    %v3656 = vsub.f32 %v3654, %v3655
    %v3657 = vand.u32 %v3656, 4294901760
    %3658 = vmatpush.msra.mxu0 %v3657
    %v3659 = vand.u32 %v3586, 4294901760
    %v3660 = vsub.f32 %v3586, %v3659
    %v3661 = vand.u32 %v3660, 4294901760
    %v3662 = vsub.f32 %v3660, %v3661
    %v3663 = vand.u32 %v3662, 4294901760
    %3664 = vmatpush.msra.mxu0 %v3663
    %v3665 = vand.u32 %v3585, 4294901760
    %v3666 = vsub.f32 %v3585, %v3665
    %v3667 = vand.u32 %v3666, 4294901760
    %v3668 = vsub.f32 %v3666, %v3667
    %v3669 = vand.u32 %v3668, 4294901760
    %3670 = vmatpush.msra.mxu0 %v3669
    %v3671 = vand.u32 %v3584, 4294901760
    %v3672 = vsub.f32 %v3584, %v3671
    %v3673 = vand.u32 %v3672, 4294901760
    %v3674 = vsub.f32 %v3672, %v3673
    %v3675 = vand.u32 %v3674, 4294901760
    %3676 = vmatpush.msra.mxu0 %v3675
    %v3677 = vand.u32 %v909, 4294901760
    %3678 = vmatmul.f32.gmra.mxu0 %v3677
    %v3679 = vpop.f32.mrf.mxu0
    %v3680 = vadd.f32 %v3615, %v3679
    %v3681 = vand.u32 %v912, 4294901760
    %3682 = vmatmul.f32.gmra.mxu0 %v3681
    %v3683 = vpop.f32.mrf.mxu0
    %v3684 = vadd.f32 %v3623, %v3683
    %v3685 = vand.u32 %v915, 4294901760
    %3686 = vmatmul.f32.gmra.mxu0 %v3685
    %v3687 = vpop.f32.mrf.mxu0
    %v3688 = vadd.f32 %v3631, %v3687
    %v3689 = vand.u32 %v918, 4294901760
    %3690 = vmatmul.f32.gmra.mxu0 %v3689
    %v3691 = vpop.f32.mrf.mxu0
    %v3692 = vadd.f32 %v3639, %v3691
    %3693 = vdwg.mxu0
    %3694 = vmatpush.msra.mxu0 0.0
    %3695 = vmatpush.msra.mxu0 0.0
    %3696 = vmatpush.msra.mxu0 0.0
    %3697 = vmatpush.msra.mxu0 0.0
    %3698 = vmatpush.msra.mxu0 0.0
    %3699 = vmatpush.msra.mxu0 0.0
    %3700 = vmatpush.msra.mxu0 0.0
    %3701 = vmatpush.msra.mxu0 0.0
    %3702 = vmatpush.msra.mxu0 0.0
    %3703 = vmatpush.msra.mxu0 0.0
    %3704 = vmatpush.msra.mxu0 0.0
    %3705 = vmatpush.msra.mxu0 0.0
    %v3706 = vand.u32 %v3587, 4294901760
    %v3707 = vsub.f32 %v3587, %v3706
    %3708 = vmatpush.msra.mxu0 %v3707
    %v3709 = vand.u32 %v3586, 4294901760
    %v3710 = vsub.f32 %v3586, %v3709
    %3711 = vmatpush.msra.mxu0 %v3710
    %v3712 = vand.u32 %v3585, 4294901760
    %v3713 = vsub.f32 %v3585, %v3712
    %3714 = vmatpush.msra.mxu0 %v3713
    %v3715 = vand.u32 %v3584, 4294901760
    %v3716 = vsub.f32 %v3584, %v3715
    %3717 = vmatpush.msra.mxu0 %v3716
    %v3718 = vand.u32 %v909, 4294901760
    %v3719 = vsub.f32 %v909, %v3718
    %3720 = vmatmul.f32.gmra.mxu0 %v3719
    %v3721 = vpop.f32.mrf.mxu0
    %v3722 = vadd.f32 %v3680, %v3721
    %v3723 = vand.u32 %v912, 4294901760
    %v3724 = vsub.f32 %v912, %v3723
    %3725 = vmatmul.f32.gmra.mxu0 %v3724
    %v3726 = vpop.f32.mrf.mxu0
    %v3727 = vadd.f32 %v3684, %v3726
    %v3728 = vand.u32 %v915, 4294901760
    %v3729 = vsub.f32 %v915, %v3728
    %3730 = vmatmul.f32.gmra.mxu0 %v3729
    %v3731 = vpop.f32.mrf.mxu0
    %v3732 = vadd.f32 %v3688, %v3731
    %v3733 = vand.u32 %v918, 4294901760
    %v3734 = vsub.f32 %v918, %v3733
    %3735 = vmatmul.f32.gmra.mxu0 %v3734
    %v3736 = vpop.f32.mrf.mxu0
    %v3737 = vadd.f32 %v3692, %v3736
    %3738 = vdwg.mxu0
    %3739 = vmatpush.msra.mxu0 0.0
    %3740 = vmatpush.msra.mxu0 0.0
    %3741 = vmatpush.msra.mxu0 0.0
    %3742 = vmatpush.msra.mxu0 0.0
    %3743 = vmatpush.msra.mxu0 0.0
    %3744 = vmatpush.msra.mxu0 0.0
    %3745 = vmatpush.msra.mxu0 0.0
    %3746 = vmatpush.msra.mxu0 0.0
    %3747 = vmatpush.msra.mxu0 0.0
    %3748 = vmatpush.msra.mxu0 0.0
    %3749 = vmatpush.msra.mxu0 0.0
    %3750 = vmatpush.msra.mxu0 0.0
    %v3751 = vand.u32 %v3587, 4294901760
    %3752 = vmatpush.msra.mxu0 %v3751
    %v3753 = vand.u32 %v3586, 4294901760
    %3754 = vmatpush.msra.mxu0 %v3753
    %v3755 = vand.u32 %v3585, 4294901760
    %3756 = vmatpush.msra.mxu0 %v3755
    %v3757 = vand.u32 %v3584, 4294901760
    %3758 = vmatpush.msra.mxu0 %v3757
    %v3759 = vand.u32 %v909, 4294901760
    %v3760 = vsub.f32 %v909, %v3759
    %v3761 = vand.u32 %v3760, 4294901760
    %3762 = vmatmul.f32.gmra.mxu0 %v3761
    %v3763 = vpop.f32.mrf.mxu0
    %v3764 = vadd.f32 %v3722, %v3763
    %v3765 = vand.u32 %v912, 4294901760
    %v3766 = vsub.f32 %v912, %v3765
    %v3767 = vand.u32 %v3766, 4294901760
    %3768 = vmatmul.f32.gmra.mxu0 %v3767
    %v3769 = vpop.f32.mrf.mxu0
    %v3770 = vadd.f32 %v3727, %v3769
    %v3771 = vand.u32 %v915, 4294901760
    %v3772 = vsub.f32 %v915, %v3771
    %v3773 = vand.u32 %v3772, 4294901760
    %3774 = vmatmul.f32.gmra.mxu0 %v3773
    %v3775 = vpop.f32.mrf.mxu0
    %v3776 = vadd.f32 %v3732, %v3775
    %v3777 = vand.u32 %v918, 4294901760
    %v3778 = vsub.f32 %v918, %v3777
    %v3779 = vand.u32 %v3778, 4294901760
    %3780 = vmatmul.f32.gmra.mxu0 %v3779
    %v3781 = vpop.f32.mrf.mxu0
    %v3782 = vadd.f32 %v3737, %v3781
    %3783 = vdwg.mxu0
    %3784 = vmatpush.msra.mxu0 0.0
    %3785 = vmatpush.msra.mxu0 0.0
    %3786 = vmatpush.msra.mxu0 0.0
    %3787 = vmatpush.msra.mxu0 0.0
    %3788 = vmatpush.msra.mxu0 0.0
    %3789 = vmatpush.msra.mxu0 0.0
    %3790 = vmatpush.msra.mxu0 0.0
    %3791 = vmatpush.msra.mxu0 0.0
    %3792 = vmatpush.msra.mxu0 0.0
    %3793 = vmatpush.msra.mxu0 0.0
    %3794 = vmatpush.msra.mxu0 0.0
    %3795 = vmatpush.msra.mxu0 0.0
    %v3796 = vand.u32 %v3587, 4294901760
    %v3797 = vsub.f32 %v3587, %v3796
    %v3798 = vand.u32 %v3797, 4294901760
    %3799 = vmatpush.msra.mxu0 %v3798
    %v3800 = vand.u32 %v3586, 4294901760
    %v3801 = vsub.f32 %v3586, %v3800
    %v3802 = vand.u32 %v3801, 4294901760
    %3803 = vmatpush.msra.mxu0 %v3802
    %v3804 = vand.u32 %v3585, 4294901760
    %v3805 = vsub.f32 %v3585, %v3804
    %v3806 = vand.u32 %v3805, 4294901760
    %3807 = vmatpush.msra.mxu0 %v3806
    %v3808 = vand.u32 %v3584, 4294901760
    %v3809 = vsub.f32 %v3584, %v3808
    %v3810 = vand.u32 %v3809, 4294901760
    %3811 = vmatpush.msra.mxu0 %v3810
    %v3812 = vand.u32 %v909, 4294901760
    %3813 = vmatmul.f32.gmra.mxu0 %v3812
    %v3814 = vpop.f32.mrf.mxu0
    %v3815 = vadd.f32 %v3764, %v3814
    %v3816 = vand.u32 %v912, 4294901760
    %3817 = vmatmul.f32.gmra.mxu0 %v3816
    %v3818 = vpop.f32.mrf.mxu0
    %v3819 = vadd.f32 %v3770, %v3818
    %v3820 = vand.u32 %v915, 4294901760
    %3821 = vmatmul.f32.gmra.mxu0 %v3820
    %v3822 = vpop.f32.mrf.mxu0
    %v3823 = vadd.f32 %v3776, %v3822
    %v3824 = vand.u32 %v918, 4294901760
    %3825 = vmatmul.f32.gmra.mxu0 %v3824
    %v3826 = vpop.f32.mrf.mxu0
    %v3827 = vadd.f32 %v3782, %v3826
    %3828 = vdwg.mxu0
    %3829 = vmatpush.msra.mxu0 0.0
    %3830 = vmatpush.msra.mxu0 0.0
    %3831 = vmatpush.msra.mxu0 0.0
    %3832 = vmatpush.msra.mxu0 0.0
    %3833 = vmatpush.msra.mxu0 0.0
    %3834 = vmatpush.msra.mxu0 0.0
    %3835 = vmatpush.msra.mxu0 0.0
    %3836 = vmatpush.msra.mxu0 0.0
    %3837 = vmatpush.msra.mxu0 0.0
    %3838 = vmatpush.msra.mxu0 0.0
    %3839 = vmatpush.msra.mxu0 0.0
    %3840 = vmatpush.msra.mxu0 0.0
    %v3841 = vand.u32 %v3587, 4294901760
    %3842 = vmatpush.msra.mxu0 %v3841
    %v3843 = vand.u32 %v3586, 4294901760
    %3844 = vmatpush.msra.mxu0 %v3843
    %v3845 = vand.u32 %v3585, 4294901760
    %3846 = vmatpush.msra.mxu0 %v3845
    %v3847 = vand.u32 %v3584, 4294901760
    %3848 = vmatpush.msra.mxu0 %v3847
    %v3849 = vand.u32 %v909, 4294901760
    %3850 = vmatmul.f32.gmra.mxu0 %v3849
    %v3851 = vpop.f32.mrf.mxu0
    %v3852 = vadd.f32 %v3815, %v3851
    %v3853 = vand.u32 %v912, 4294901760
    %3854 = vmatmul.f32.gmra.mxu0 %v3853
    %v3855 = vpop.f32.mrf.mxu0
    %v3856 = vadd.f32 %v3819, %v3855
    %v3857 = vand.u32 %v915, 4294901760
    %3858 = vmatmul.f32.gmra.mxu0 %v3857
    %v3859 = vpop.f32.mrf.mxu0
    %v3860 = vadd.f32 %v3823, %v3859
    %v3861 = vand.u32 %v918, 4294901760
    %3862 = vmatmul.f32.gmra.mxu0 %v3861
    %v3863 = vpop.f32.mrf.mxu0
    %v3864 = vadd.f32 %v3827, %v3863
    %3865 = vdwg.mxu0
    %3866 = vmatpush.msra.mxu0 0.0
    %3867 = vmatpush.msra.mxu0 0.0
    %3868 = vmatpush.msra.mxu0 0.0
    %3869 = vmatpush.msra.mxu0 0.0
    %3870 = vmatpush.msra.mxu0 0.0
    %3871 = vmatpush.msra.mxu0 0.0
    %3872 = vmatpush.msra.mxu0 0.0
    %3873 = vmatpush.msra.mxu0 0.0
    %3874 = vmatpush.msra.mxu0 0.0
    %3875 = vmatpush.msra.mxu0 0.0
    %3876 = vmatpush.msra.mxu0 0.0
    %3877 = vmatpush.msra.mxu0 0.0
    %v3878 = vand.u32 %v3587, 4294901760
    %3879 = vmatpush.msra.mxu0 %v3878
    %v3880 = vand.u32 %v3586, 4294901760
    %3881 = vmatpush.msra.mxu0 %v3880
    %v3882 = vand.u32 %v3585, 4294901760
    %3883 = vmatpush.msra.mxu0 %v3882
    %v3884 = vand.u32 %v3584, 4294901760
    %3885 = vmatpush.msra.mxu0 %v3884
    %v3886 = vand.u32 %v1203, 4294901760
    %v3887 = vsub.f32 %v1203, %v3886
    %v3888 = vand.u32 %v3887, 4294901760
    %v3889 = vsub.f32 %v3887, %v3888
    %v3890 = vand.u32 %v3889, 4294901760
    %3891 = vmatmul.f32.gmra.mxu0 %v3890
    %v3892 = vpop.f32.mrf.mxu0
    %v3893 = vadd.f32 0.0, %v3892
    %v3894 = vand.u32 %v1206, 4294901760
    %v3895 = vsub.f32 %v1206, %v3894
    %v3896 = vand.u32 %v3895, 4294901760
    %v3897 = vsub.f32 %v3895, %v3896
    %v3898 = vand.u32 %v3897, 4294901760
    %3899 = vmatmul.f32.gmra.mxu0 %v3898
    %v3900 = vpop.f32.mrf.mxu0
    %v3901 = vadd.f32 0.0, %v3900
    %v3902 = vand.u32 %v1209, 4294901760
    %v3903 = vsub.f32 %v1209, %v3902
    %v3904 = vand.u32 %v3903, 4294901760
    %v3905 = vsub.f32 %v3903, %v3904
    %v3906 = vand.u32 %v3905, 4294901760
    %3907 = vmatmul.f32.gmra.mxu0 %v3906
    %v3908 = vpop.f32.mrf.mxu0
    %v3909 = vadd.f32 0.0, %v3908
    %v3910 = vand.u32 %v1212, 4294901760
    %v3911 = vsub.f32 %v1212, %v3910
    %v3912 = vand.u32 %v3911, 4294901760
    %v3913 = vsub.f32 %v3911, %v3912
    %v3914 = vand.u32 %v3913, 4294901760
    %3915 = vmatmul.f32.gmra.mxu0 %v3914
    %v3916 = vpop.f32.mrf.mxu0
    %v3917 = vadd.f32 0.0, %v3916
    %3918 = vdwg.mxu0
    %3919 = vmatpush.msra.mxu0 0.0
    %3920 = vmatpush.msra.mxu0 0.0
    %3921 = vmatpush.msra.mxu0 0.0
    %3922 = vmatpush.msra.mxu0 0.0
    %3923 = vmatpush.msra.mxu0 0.0
    %3924 = vmatpush.msra.mxu0 0.0
    %3925 = vmatpush.msra.mxu0 0.0
    %3926 = vmatpush.msra.mxu0 0.0
    %3927 = vmatpush.msra.mxu0 0.0
    %3928 = vmatpush.msra.mxu0 0.0
    %3929 = vmatpush.msra.mxu0 0.0
    %3930 = vmatpush.msra.mxu0 0.0
    %v3931 = vand.u32 %v3587, 4294901760
    %v3932 = vsub.f32 %v3587, %v3931
    %v3933 = vand.u32 %v3932, 4294901760
    %v3934 = vsub.f32 %v3932, %v3933
    %v3935 = vand.u32 %v3934, 4294901760
    %3936 = vmatpush.msra.mxu0 %v3935
    %v3937 = vand.u32 %v3586, 4294901760
    %v3938 = vsub.f32 %v3586, %v3937
    %v3939 = vand.u32 %v3938, 4294901760
    %v3940 = vsub.f32 %v3938, %v3939
    %v3941 = vand.u32 %v3940, 4294901760
    %3942 = vmatpush.msra.mxu0 %v3941
    %v3943 = vand.u32 %v3585, 4294901760
    %v3944 = vsub.f32 %v3585, %v3943
    %v3945 = vand.u32 %v3944, 4294901760
    %v3946 = vsub.f32 %v3944, %v3945
    %v3947 = vand.u32 %v3946, 4294901760
    %3948 = vmatpush.msra.mxu0 %v3947
    %v3949 = vand.u32 %v3584, 4294901760
    %v3950 = vsub.f32 %v3584, %v3949
    %v3951 = vand.u32 %v3950, 4294901760
    %v3952 = vsub.f32 %v3950, %v3951
    %v3953 = vand.u32 %v3952, 4294901760
    %3954 = vmatpush.msra.mxu0 %v3953
    %v3955 = vand.u32 %v1203, 4294901760
    %3956 = vmatmul.f32.gmra.mxu0 %v3955
    %v3957 = vpop.f32.mrf.mxu0
    %v3958 = vadd.f32 %v3893, %v3957
    %v3959 = vand.u32 %v1206, 4294901760
    %3960 = vmatmul.f32.gmra.mxu0 %v3959
    %v3961 = vpop.f32.mrf.mxu0
    %v3962 = vadd.f32 %v3901, %v3961
    %v3963 = vand.u32 %v1209, 4294901760
    %3964 = vmatmul.f32.gmra.mxu0 %v3963
    %v3965 = vpop.f32.mrf.mxu0
    %v3966 = vadd.f32 %v3909, %v3965
    %v3967 = vand.u32 %v1212, 4294901760
    %3968 = vmatmul.f32.gmra.mxu0 %v3967
    %v3969 = vpop.f32.mrf.mxu0
    %v3970 = vadd.f32 %v3917, %v3969
    %3971 = vdwg.mxu0
    %3972 = vmatpush.msra.mxu0 0.0
    %3973 = vmatpush.msra.mxu0 0.0
    %3974 = vmatpush.msra.mxu0 0.0
    %3975 = vmatpush.msra.mxu0 0.0
    %3976 = vmatpush.msra.mxu0 0.0
    %3977 = vmatpush.msra.mxu0 0.0
    %3978 = vmatpush.msra.mxu0 0.0
    %3979 = vmatpush.msra.mxu0 0.0
    %3980 = vmatpush.msra.mxu0 0.0
    %3981 = vmatpush.msra.mxu0 0.0
    %3982 = vmatpush.msra.mxu0 0.0
    %3983 = vmatpush.msra.mxu0 0.0
    %v3984 = vand.u32 %v3587, 4294901760
    %v3985 = vsub.f32 %v3587, %v3984
    %3986 = vmatpush.msra.mxu0 %v3985
    %v3987 = vand.u32 %v3586, 4294901760
    %v3988 = vsub.f32 %v3586, %v3987
    %3989 = vmatpush.msra.mxu0 %v3988
    %v3990 = vand.u32 %v3585, 4294901760
    %v3991 = vsub.f32 %v3585, %v3990
    %3992 = vmatpush.msra.mxu0 %v3991
    %v3993 = vand.u32 %v3584, 4294901760
    %v3994 = vsub.f32 %v3584, %v3993
    %3995 = vmatpush.msra.mxu0 %v3994
    %v3996 = vand.u32 %v1203, 4294901760
    %v3997 = vsub.f32 %v1203, %v3996
    %3998 = vmatmul.f32.gmra.mxu0 %v3997
    %v3999 = vpop.f32.mrf.mxu0
    %v4000 = vadd.f32 %v3958, %v3999
    %v4001 = vand.u32 %v1206, 4294901760
    %v4002 = vsub.f32 %v1206, %v4001
    %4003 = vmatmul.f32.gmra.mxu0 %v4002
    %v4004 = vpop.f32.mrf.mxu0
    %v4005 = vadd.f32 %v3962, %v4004
    %v4006 = vand.u32 %v1209, 4294901760
    %v4007 = vsub.f32 %v1209, %v4006
    %4008 = vmatmul.f32.gmra.mxu0 %v4007
    %v4009 = vpop.f32.mrf.mxu0
    %v4010 = vadd.f32 %v3966, %v4009
    %v4011 = vand.u32 %v1212, 4294901760
    %v4012 = vsub.f32 %v1212, %v4011
    %4013 = vmatmul.f32.gmra.mxu0 %v4012
    %v4014 = vpop.f32.mrf.mxu0
    %v4015 = vadd.f32 %v3970, %v4014
    %4016 = vdwg.mxu0
    %4017 = vmatpush.msra.mxu0 0.0
    %4018 = vmatpush.msra.mxu0 0.0
    %4019 = vmatpush.msra.mxu0 0.0
    %4020 = vmatpush.msra.mxu0 0.0
    %4021 = vmatpush.msra.mxu0 0.0
    %4022 = vmatpush.msra.mxu0 0.0
    %4023 = vmatpush.msra.mxu0 0.0
    %4024 = vmatpush.msra.mxu0 0.0
    %4025 = vmatpush.msra.mxu0 0.0
    %4026 = vmatpush.msra.mxu0 0.0
    %4027 = vmatpush.msra.mxu0 0.0
    %4028 = vmatpush.msra.mxu0 0.0
    %v4029 = vand.u32 %v3587, 4294901760
    %4030 = vmatpush.msra.mxu0 %v4029
    %v4031 = vand.u32 %v3586, 4294901760
    %4032 = vmatpush.msra.mxu0 %v4031
    %v4033 = vand.u32 %v3585, 4294901760
    %4034 = vmatpush.msra.mxu0 %v4033
    %v4035 = vand.u32 %v3584, 4294901760
    %4036 = vmatpush.msra.mxu0 %v4035
    %v4037 = vand.u32 %v1203, 4294901760
    %v4038 = vsub.f32 %v1203, %v4037
    %v4039 = vand.u32 %v4038, 4294901760
    %4040 = vmatmul.f32.gmra.mxu0 %v4039
    %v4041 = vpop.f32.mrf.mxu0
    %v4042 = vadd.f32 %v4000, %v4041
    %v4043 = vand.u32 %v1206, 4294901760
    %v4044 = vsub.f32 %v1206, %v4043
    %v4045 = vand.u32 %v4044, 4294901760
    %4046 = vmatmul.f32.gmra.mxu0 %v4045
    %v4047 = vpop.f32.mrf.mxu0
    %v4048 = vadd.f32 %v4005, %v4047
    %v4049 = vand.u32 %v1209, 4294901760
    %v4050 = vsub.f32 %v1209, %v4049
    %v4051 = vand.u32 %v4050, 4294901760
    %4052 = vmatmul.f32.gmra.mxu0 %v4051
    %v4053 = vpop.f32.mrf.mxu0
    %v4054 = vadd.f32 %v4010, %v4053
    %v4055 = vand.u32 %v1212, 4294901760
    %v4056 = vsub.f32 %v1212, %v4055
    %v4057 = vand.u32 %v4056, 4294901760
    %4058 = vmatmul.f32.gmra.mxu0 %v4057
    %v4059 = vpop.f32.mrf.mxu0
    %v4060 = vadd.f32 %v4015, %v4059
    %4061 = vdwg.mxu0
    %4062 = vmatpush.msra.mxu0 0.0
    %4063 = vmatpush.msra.mxu0 0.0
    %4064 = vmatpush.msra.mxu0 0.0
    %4065 = vmatpush.msra.mxu0 0.0
    %4066 = vmatpush.msra.mxu0 0.0
    %4067 = vmatpush.msra.mxu0 0.0
    %4068 = vmatpush.msra.mxu0 0.0
    %4069 = vmatpush.msra.mxu0 0.0
    %4070 = vmatpush.msra.mxu0 0.0
    %4071 = vmatpush.msra.mxu0 0.0
    %4072 = vmatpush.msra.mxu0 0.0
    %4073 = vmatpush.msra.mxu0 0.0
    %v4074 = vand.u32 %v3587, 4294901760
    %v4075 = vsub.f32 %v3587, %v4074
    %v4076 = vand.u32 %v4075, 4294901760
    %4077 = vmatpush.msra.mxu0 %v4076
    %v4078 = vand.u32 %v3586, 4294901760
    %v4079 = vsub.f32 %v3586, %v4078
    %v4080 = vand.u32 %v4079, 4294901760
    %4081 = vmatpush.msra.mxu0 %v4080
    %v4082 = vand.u32 %v3585, 4294901760
    %v4083 = vsub.f32 %v3585, %v4082
    %v4084 = vand.u32 %v4083, 4294901760
    %4085 = vmatpush.msra.mxu0 %v4084
    %v4086 = vand.u32 %v3584, 4294901760
    %v4087 = vsub.f32 %v3584, %v4086
    %v4088 = vand.u32 %v4087, 4294901760
    %4089 = vmatpush.msra.mxu0 %v4088
    %v4090 = vand.u32 %v1203, 4294901760
    %4091 = vmatmul.f32.gmra.mxu0 %v4090
    %v4092 = vpop.f32.mrf.mxu0
    %v4093 = vadd.f32 %v4042, %v4092
    %v4094 = vand.u32 %v1206, 4294901760
    %4095 = vmatmul.f32.gmra.mxu0 %v4094
    %v4096 = vpop.f32.mrf.mxu0
    %v4097 = vadd.f32 %v4048, %v4096
    %v4098 = vand.u32 %v1209, 4294901760
    %4099 = vmatmul.f32.gmra.mxu0 %v4098
    %v4100 = vpop.f32.mrf.mxu0
    %v4101 = vadd.f32 %v4054, %v4100
    %v4102 = vand.u32 %v1212, 4294901760
    %4103 = vmatmul.f32.gmra.mxu0 %v4102
    %v4104 = vpop.f32.mrf.mxu0
    %v4105 = vadd.f32 %v4060, %v4104
    %4106 = vdwg.mxu0
    %4107 = vmatpush.msra.mxu0 0.0
    %4108 = vmatpush.msra.mxu0 0.0
    %4109 = vmatpush.msra.mxu0 0.0
    %4110 = vmatpush.msra.mxu0 0.0
    %4111 = vmatpush.msra.mxu0 0.0
    %4112 = vmatpush.msra.mxu0 0.0
    %4113 = vmatpush.msra.mxu0 0.0
    %4114 = vmatpush.msra.mxu0 0.0
    %4115 = vmatpush.msra.mxu0 0.0
    %4116 = vmatpush.msra.mxu0 0.0
    %4117 = vmatpush.msra.mxu0 0.0
    %4118 = vmatpush.msra.mxu0 0.0
    %v4119 = vand.u32 %v3587, 4294901760
    %4120 = vmatpush.msra.mxu0 %v4119
    %v4121 = vand.u32 %v3586, 4294901760
    %4122 = vmatpush.msra.mxu0 %v4121
    %v4123 = vand.u32 %v3585, 4294901760
    %4124 = vmatpush.msra.mxu0 %v4123
    %v4125 = vand.u32 %v3584, 4294901760
    %4126 = vmatpush.msra.mxu0 %v4125
    %v4127 = vand.u32 %v1203, 4294901760
    %4128 = vmatmul.f32.gmra.mxu0 %v4127
    %v4129 = vpop.f32.mrf.mxu0
    %v4130 = vadd.f32 %v4093, %v4129
    %v4131 = vand.u32 %v1206, 4294901760
    %4132 = vmatmul.f32.gmra.mxu0 %v4131
    %v4133 = vpop.f32.mrf.mxu0
    %v4134 = vadd.f32 %v4097, %v4133
    %v4135 = vand.u32 %v1209, 4294901760
    %4136 = vmatmul.f32.gmra.mxu0 %v4135
    %v4137 = vpop.f32.mrf.mxu0
    %v4138 = vadd.f32 %v4101, %v4137
    %v4139 = vand.u32 %v1212, 4294901760
    %4140 = vmatmul.f32.gmra.mxu0 %v4139
    %v4141 = vpop.f32.mrf.mxu0
    %v4142 = vadd.f32 %v4105, %v4141
    %4143 = vdwg.mxu0
    %v4144 = vld [vmem:[#allocation10] sm:$0xff]
    %v4145 = vld [vmem:[#allocation10 + $0x8] sm:$0xff]
    %v4146 = vld [vmem:[#allocation10 + $0x10] sm:$0xff]
    %v4147 = vld [vmem:[#allocation10 + $0x18] sm:$0xff]
    %v4148 = vld [vmem:[#allocation10 + $0x20] sm:$0xff]
    %v4149 = vld [vmem:[#allocation10 + $0x28] sm:$0xff]
    %v4150 = vld [vmem:[#allocation10 + $0x30] sm:$0xff]
    %v4151 = vld [vmem:[#allocation10 + $0x38] sm:$0xff]
    %v4152 = vld [vmem:[#allocation10 + $0x40] sm:$0xff]
    %v4153 = vld [vmem:[#allocation10 + $0x48] sm:$0xff]
    %v4154 = vld [vmem:[#allocation10 + $0x50] sm:$0xff]
    %v4155 = vld [vmem:[#allocation10 + $0x58] sm:$0xff]
    %v4156 = vld [vmem:[#allocation10 + $0x60] sm:$0xff]
    %v4157 = vld [vmem:[#allocation10 + $0x68] sm:$0xff]
    %v4158 = vld [vmem:[#allocation10 + $0x70] sm:$0xff]
    %v4159 = vld [vmem:[#allocation10 + $0x78] sm:$0xff]
    %s4160 = scalar_lea.vmem [#allocation10], 128
    %v4161 = vld [vmem:[%s4160] sm:$0xff]
    %v4162 = vld [vmem:[%s4160 + $0x8] sm:$0xff]
    %v4163 = vld [vmem:[%s4160 + $0x10] sm:$0xff]
    %v4164 = vld [vmem:[%s4160 + $0x18] sm:$0xff]
    %v4165 = vld [vmem:[%s4160 + $0x20] sm:$0xff]
    %v4166 = vld [vmem:[%s4160 + $0x28] sm:$0xff]
    %v4167 = vld [vmem:[%s4160 + $0x30] sm:$0xff]
    %v4168 = vld [vmem:[%s4160 + $0x38] sm:$0xff]
    %v4169 = vld [vmem:[%s4160 + $0x40] sm:$0xff]
    %v4170 = vld [vmem:[%s4160 + $0x48] sm:$0xff]
    %v4171 = vld [vmem:[%s4160 + $0x50] sm:$0xff]
    %v4172 = vld [vmem:[%s4160 + $0x58] sm:$0xff]
    %v4173 = vld [vmem:[%s4160 + $0x60] sm:$0xff]
    %v4174 = vld [vmem:[%s4160 + $0x68] sm:$0xff]
    %v4175 = vld [vmem:[%s4160 + $0x70] sm:$0xff]
    %v4176 = vld [vmem:[%s4160 + $0x78] sm:$0xff]
    %v4177 = vand.u32 %v4176, 4294901760
    %4178 = vmatpush.msra.mxu0 %v4177
    %v4179 = vand.u32 %v4175, 4294901760
    %4180 = vmatpush.msra.mxu0 %v4179
    %v4181 = vand.u32 %v4174, 4294901760
    %4182 = vmatpush.msra.mxu0 %v4181
    %v4183 = vand.u32 %v4173, 4294901760
    %4184 = vmatpush.msra.mxu0 %v4183
    %v4185 = vand.u32 %v4172, 4294901760
    %4186 = vmatpush.msra.mxu0 %v4185
    %v4187 = vand.u32 %v4171, 4294901760
    %4188 = vmatpush.msra.mxu0 %v4187
    %v4189 = vand.u32 %v4170, 4294901760
    %4190 = vmatpush.msra.mxu0 %v4189
    %v4191 = vand.u32 %v4169, 4294901760
    %4192 = vmatpush.msra.mxu0 %v4191
    %v4193 = vand.u32 %v4168, 4294901760
    %4194 = vmatpush.msra.mxu0 %v4193
    %v4195 = vand.u32 %v4167, 4294901760
    %4196 = vmatpush.msra.mxu0 %v4195
    %v4197 = vand.u32 %v4166, 4294901760
    %4198 = vmatpush.msra.mxu0 %v4197
    %v4199 = vand.u32 %v4165, 4294901760
    %4200 = vmatpush.msra.mxu0 %v4199
    %v4201 = vand.u32 %v4164, 4294901760
    %4202 = vmatpush.msra.mxu0 %v4201
    %v4203 = vand.u32 %v4163, 4294901760
    %4204 = vmatpush.msra.mxu0 %v4203
    %v4205 = vand.u32 %v4162, 4294901760
    %4206 = vmatpush.msra.mxu0 %v4205
    %v4207 = vand.u32 %v4161, 4294901760
    %4208 = vmatpush.msra.mxu0 %v4207
    %v4209 = vand.u32 %v3584, 4294901760
    %v4210 = vsub.f32 %v3584, %v4209
    %v4211 = vand.u32 %v4210, 4294901760
    %v4212 = vsub.f32 %v4210, %v4211
    %v4213 = vand.u32 %v4212, 4294901760
    %4214 = vmatmul.f32.gmra.mxu0 %v4213
    %v4215 = vpop.f32.mrf.mxu0
    %v4216 = vadd.f32 0.0, %v4215
    %v4217 = vand.u32 %v3585, 4294901760
    %v4218 = vsub.f32 %v3585, %v4217
    %v4219 = vand.u32 %v4218, 4294901760
    %v4220 = vsub.f32 %v4218, %v4219
    %v4221 = vand.u32 %v4220, 4294901760
    %4222 = vmatmul.f32.gmra.mxu0 %v4221
    %v4223 = vpop.f32.mrf.mxu0
    %v4224 = vadd.f32 0.0, %v4223
    %v4225 = vand.u32 %v3586, 4294901760
    %v4226 = vsub.f32 %v3586, %v4225
    %v4227 = vand.u32 %v4226, 4294901760
    %v4228 = vsub.f32 %v4226, %v4227
    %v4229 = vand.u32 %v4228, 4294901760
    %4230 = vmatmul.f32.gmra.mxu0 %v4229
    %v4231 = vpop.f32.mrf.mxu0
    %v4232 = vadd.f32 0.0, %v4231
    %v4233 = vand.u32 %v3587, 4294901760
    %v4234 = vsub.f32 %v3587, %v4233
    %v4235 = vand.u32 %v4234, 4294901760
    %v4236 = vsub.f32 %v4234, %v4235
    %v4237 = vand.u32 %v4236, 4294901760
    %4238 = vmatmul.f32.gmra.mxu0 %v4237
    %v4239 = vpop.f32.mrf.mxu0
    %v4240 = vadd.f32 0.0, %v4239
    %4241 = vdwg.mxu0
    %v4242 = vand.u32 %v4176, 4294901760
    %v4243 = vsub.f32 %v4176, %v4242
    %v4244 = vand.u32 %v4243, 4294901760
    %v4245 = vsub.f32 %v4243, %v4244
    %v4246 = vand.u32 %v4245, 4294901760
    %4247 = vmatpush.msra.mxu0 %v4246
    %v4248 = vand.u32 %v4175, 4294901760
    %v4249 = vsub.f32 %v4175, %v4248
    %v4250 = vand.u32 %v4249, 4294901760
    %v4251 = vsub.f32 %v4249, %v4250
    %v4252 = vand.u32 %v4251, 4294901760
    %4253 = vmatpush.msra.mxu0 %v4252
    %v4254 = vand.u32 %v4174, 4294901760
    %v4255 = vsub.f32 %v4174, %v4254
    %v4256 = vand.u32 %v4255, 4294901760
    %v4257 = vsub.f32 %v4255, %v4256
    %v4258 = vand.u32 %v4257, 4294901760
    %4259 = vmatpush.msra.mxu0 %v4258
    %v4260 = vand.u32 %v4173, 4294901760
    %v4261 = vsub.f32 %v4173, %v4260
    %v4262 = vand.u32 %v4261, 4294901760
    %v4263 = vsub.f32 %v4261, %v4262
    %v4264 = vand.u32 %v4263, 4294901760
    %4265 = vmatpush.msra.mxu0 %v4264
    %v4266 = vand.u32 %v4172, 4294901760
    %v4267 = vsub.f32 %v4172, %v4266
    %v4268 = vand.u32 %v4267, 4294901760
    %v4269 = vsub.f32 %v4267, %v4268
    %v4270 = vand.u32 %v4269, 4294901760
    %4271 = vmatpush.msra.mxu0 %v4270
    %v4272 = vand.u32 %v4171, 4294901760
    %v4273 = vsub.f32 %v4171, %v4272
    %v4274 = vand.u32 %v4273, 4294901760
    %v4275 = vsub.f32 %v4273, %v4274
    %v4276 = vand.u32 %v4275, 4294901760
    %4277 = vmatpush.msra.mxu0 %v4276
    %v4278 = vand.u32 %v4170, 4294901760
    %v4279 = vsub.f32 %v4170, %v4278
    %v4280 = vand.u32 %v4279, 4294901760
    %v4281 = vsub.f32 %v4279, %v4280
    %v4282 = vand.u32 %v4281, 4294901760
    %4283 = vmatpush.msra.mxu0 %v4282
    %v4284 = vand.u32 %v4169, 4294901760
    %v4285 = vsub.f32 %v4169, %v4284
    %v4286 = vand.u32 %v4285, 4294901760
    %v4287 = vsub.f32 %v4285, %v4286
    %v4288 = vand.u32 %v4287, 4294901760
    %4289 = vmatpush.msra.mxu0 %v4288
    %v4290 = vand.u32 %v4168, 4294901760
    %v4291 = vsub.f32 %v4168, %v4290
    %v4292 = vand.u32 %v4291, 4294901760
    %v4293 = vsub.f32 %v4291, %v4292
    %v4294 = vand.u32 %v4293, 4294901760
    %4295 = vmatpush.msra.mxu0 %v4294
    %v4296 = vand.u32 %v4167, 4294901760
    %v4297 = vsub.f32 %v4167, %v4296
    %v4298 = vand.u32 %v4297, 4294901760
    %v4299 = vsub.f32 %v4297, %v4298
    %v4300 = vand.u32 %v4299, 4294901760
    %4301 = vmatpush.msra.mxu0 %v4300
    %v4302 = vand.u32 %v4166, 4294901760
    %v4303 = vsub.f32 %v4166, %v4302
    %v4304 = vand.u32 %v4303, 4294901760
    %v4305 = vsub.f32 %v4303, %v4304
    %v4306 = vand.u32 %v4305, 4294901760
    %4307 = vmatpush.msra.mxu0 %v4306
    %v4308 = vand.u32 %v4165, 4294901760
    %v4309 = vsub.f32 %v4165, %v4308
    %v4310 = vand.u32 %v4309, 4294901760
    %v4311 = vsub.f32 %v4309, %v4310
    %v4312 = vand.u32 %v4311, 4294901760
    %4313 = vmatpush.msra.mxu0 %v4312
    %v4314 = vand.u32 %v4164, 4294901760
    %v4315 = vsub.f32 %v4164, %v4314
    %v4316 = vand.u32 %v4315, 4294901760
    %v4317 = vsub.f32 %v4315, %v4316
    %v4318 = vand.u32 %v4317, 4294901760
    %4319 = vmatpush.msra.mxu0 %v4318
    %v4320 = vand.u32 %v4163, 4294901760
    %v4321 = vsub.f32 %v4163, %v4320
    %v4322 = vand.u32 %v4321, 4294901760
    %v4323 = vsub.f32 %v4321, %v4322
    %v4324 = vand.u32 %v4323, 4294901760
    %4325 = vmatpush.msra.mxu0 %v4324
    %v4326 = vand.u32 %v4162, 4294901760
    %v4327 = vsub.f32 %v4162, %v4326
    %v4328 = vand.u32 %v4327, 4294901760
    %v4329 = vsub.f32 %v4327, %v4328
    %v4330 = vand.u32 %v4329, 4294901760
    %4331 = vmatpush.msra.mxu0 %v4330
    %v4332 = vand.u32 %v4161, 4294901760
    %v4333 = vsub.f32 %v4161, %v4332
    %v4334 = vand.u32 %v4333, 4294901760
    %v4335 = vsub.f32 %v4333, %v4334
    %v4336 = vand.u32 %v4335, 4294901760
    %4337 = vmatpush.msra.mxu0 %v4336
    %v4338 = vand.u32 %v3584, 4294901760
    %4339 = vmatmul.f32.gmra.mxu0 %v4338
    %v4340 = vpop.f32.mrf.mxu0
    %v4341 = vadd.f32 %v4216, %v4340
    %v4342 = vand.u32 %v3585, 4294901760
    %4343 = vmatmul.f32.gmra.mxu0 %v4342
    %v4344 = vpop.f32.mrf.mxu0
    %v4345 = vadd.f32 %v4224, %v4344
    %v4346 = vand.u32 %v3586, 4294901760
    %4347 = vmatmul.f32.gmra.mxu0 %v4346
    %v4348 = vpop.f32.mrf.mxu0
    %v4349 = vadd.f32 %v4232, %v4348
    %v4350 = vand.u32 %v3587, 4294901760
    %4351 = vmatmul.f32.gmra.mxu0 %v4350
    %v4352 = vpop.f32.mrf.mxu0
    %v4353 = vadd.f32 %v4240, %v4352
    %4354 = vdwg.mxu0
    %v4355 = vand.u32 %v4176, 4294901760
    %v4356 = vsub.f32 %v4176, %v4355
    %4357 = vmatpush.msra.mxu0 %v4356
    %v4358 = vand.u32 %v4175, 4294901760
    %v4359 = vsub.f32 %v4175, %v4358
    %4360 = vmatpush.msra.mxu0 %v4359
    %v4361 = vand.u32 %v4174, 4294901760
    %v4362 = vsub.f32 %v4174, %v4361
    %4363 = vmatpush.msra.mxu0 %v4362
    %v4364 = vand.u32 %v4173, 4294901760
    %v4365 = vsub.f32 %v4173, %v4364
    %4366 = vmatpush.msra.mxu0 %v4365
    %v4367 = vand.u32 %v4172, 4294901760
    %v4368 = vsub.f32 %v4172, %v4367
    %4369 = vmatpush.msra.mxu0 %v4368
    %v4370 = vand.u32 %v4171, 4294901760
    %v4371 = vsub.f32 %v4171, %v4370
    %4372 = vmatpush.msra.mxu0 %v4371
    %v4373 = vand.u32 %v4170, 4294901760
    %v4374 = vsub.f32 %v4170, %v4373
    %4375 = vmatpush.msra.mxu0 %v4374
    %v4376 = vand.u32 %v4169, 4294901760
    %v4377 = vsub.f32 %v4169, %v4376
    %4378 = vmatpush.msra.mxu0 %v4377
    %v4379 = vand.u32 %v4168, 4294901760
    %v4380 = vsub.f32 %v4168, %v4379
    %4381 = vmatpush.msra.mxu0 %v4380
    %v4382 = vand.u32 %v4167, 4294901760
    %v4383 = vsub.f32 %v4167, %v4382
    %4384 = vmatpush.msra.mxu0 %v4383
    %v4385 = vand.u32 %v4166, 4294901760
    %v4386 = vsub.f32 %v4166, %v4385
    %4387 = vmatpush.msra.mxu0 %v4386
    %v4388 = vand.u32 %v4165, 4294901760
    %v4389 = vsub.f32 %v4165, %v4388
    %4390 = vmatpush.msra.mxu0 %v4389
    %v4391 = vand.u32 %v4164, 4294901760
    %v4392 = vsub.f32 %v4164, %v4391
    %4393 = vmatpush.msra.mxu0 %v4392
    %v4394 = vand.u32 %v4163, 4294901760
    %v4395 = vsub.f32 %v4163, %v4394
    %4396 = vmatpush.msra.mxu0 %v4395
    %v4397 = vand.u32 %v4162, 4294901760
    %v4398 = vsub.f32 %v4162, %v4397
    %4399 = vmatpush.msra.mxu0 %v4398
    %v4400 = vand.u32 %v4161, 4294901760
    %v4401 = vsub.f32 %v4161, %v4400
    %4402 = vmatpush.msra.mxu0 %v4401
    %v4403 = vand.u32 %v3584, 4294901760
    %v4404 = vsub.f32 %v3584, %v4403
    %4405 = vmatmul.f32.gmra.mxu0 %v4404
    %v4406 = vpop.f32.mrf.mxu0
    %v4407 = vadd.f32 %v4341, %v4406
    %v4408 = vand.u32 %v3585, 4294901760
    %v4409 = vsub.f32 %v3585, %v4408
    %4410 = vmatmul.f32.gmra.mxu0 %v4409
    %v4411 = vpop.f32.mrf.mxu0
    %v4412 = vadd.f32 %v4345, %v4411
    %v4413 = vand.u32 %v3586, 4294901760
    %v4414 = vsub.f32 %v3586, %v4413
    %4415 = vmatmul.f32.gmra.mxu0 %v4414
    %v4416 = vpop.f32.mrf.mxu0
    %v4417 = vadd.f32 %v4349, %v4416
    %v4418 = vand.u32 %v3587, 4294901760
    %v4419 = vsub.f32 %v3587, %v4418
    %4420 = vmatmul.f32.gmra.mxu0 %v4419
    %v4421 = vpop.f32.mrf.mxu0
    %v4422 = vadd.f32 %v4353, %v4421
    %4423 = vdwg.mxu0
    %v4424 = vand.u32 %v4176, 4294901760
    %4425 = vmatpush.msra.mxu0 %v4424
    %v4426 = vand.u32 %v4175, 4294901760
    %4427 = vmatpush.msra.mxu0 %v4426
    %v4428 = vand.u32 %v4174, 4294901760
    %4429 = vmatpush.msra.mxu0 %v4428
    %v4430 = vand.u32 %v4173, 4294901760
    %4431 = vmatpush.msra.mxu0 %v4430
    %v4432 = vand.u32 %v4172, 4294901760
    %4433 = vmatpush.msra.mxu0 %v4432
    %v4434 = vand.u32 %v4171, 4294901760
    %4435 = vmatpush.msra.mxu0 %v4434
    %v4436 = vand.u32 %v4170, 4294901760
    %4437 = vmatpush.msra.mxu0 %v4436
    %v4438 = vand.u32 %v4169, 4294901760
    %4439 = vmatpush.msra.mxu0 %v4438
    %v4440 = vand.u32 %v4168, 4294901760
    %4441 = vmatpush.msra.mxu0 %v4440
    %v4442 = vand.u32 %v4167, 4294901760
    %4443 = vmatpush.msra.mxu0 %v4442
    %v4444 = vand.u32 %v4166, 4294901760
    %4445 = vmatpush.msra.mxu0 %v4444
    %v4446 = vand.u32 %v4165, 4294901760
    %4447 = vmatpush.msra.mxu0 %v4446
    %v4448 = vand.u32 %v4164, 4294901760
    %4449 = vmatpush.msra.mxu0 %v4448
    %v4450 = vand.u32 %v4163, 4294901760
    %4451 = vmatpush.msra.mxu0 %v4450
    %v4452 = vand.u32 %v4162, 4294901760
    %4453 = vmatpush.msra.mxu0 %v4452
    %v4454 = vand.u32 %v4161, 4294901760
    %4455 = vmatpush.msra.mxu0 %v4454
    %v4456 = vand.u32 %v3584, 4294901760
    %v4457 = vsub.f32 %v3584, %v4456
    %v4458 = vand.u32 %v4457, 4294901760
    %4459 = vmatmul.f32.gmra.mxu0 %v4458
    %v4460 = vpop.f32.mrf.mxu0
    %v4461 = vadd.f32 %v4407, %v4460
    %v4462 = vand.u32 %v3585, 4294901760
    %v4463 = vsub.f32 %v3585, %v4462
    %v4464 = vand.u32 %v4463, 4294901760
    %4465 = vmatmul.f32.gmra.mxu0 %v4464
    %v4466 = vpop.f32.mrf.mxu0
    %v4467 = vadd.f32 %v4412, %v4466
    %v4468 = vand.u32 %v3586, 4294901760
    %v4469 = vsub.f32 %v3586, %v4468
    %v4470 = vand.u32 %v4469, 4294901760
    %4471 = vmatmul.f32.gmra.mxu0 %v4470
    %v4472 = vpop.f32.mrf.mxu0
    %v4473 = vadd.f32 %v4417, %v4472
    %v4474 = vand.u32 %v3587, 4294901760
    %v4475 = vsub.f32 %v3587, %v4474
    %v4476 = vand.u32 %v4475, 4294901760
    %4477 = vmatmul.f32.gmra.mxu0 %v4476
    %v4478 = vpop.f32.mrf.mxu0
    %v4479 = vadd.f32 %v4422, %v4478
    %4480 = vdwg.mxu0
    %v4481 = vand.u32 %v4176, 4294901760
    %v4482 = vsub.f32 %v4176, %v4481
    %v4483 = vand.u32 %v4482, 4294901760
    %4484 = vmatpush.msra.mxu0 %v4483
    %v4485 = vand.u32 %v4175, 4294901760
    %v4486 = vsub.f32 %v4175, %v4485
    %v4487 = vand.u32 %v4486, 4294901760
    %4488 = vmatpush.msra.mxu0 %v4487
    %v4489 = vand.u32 %v4174, 4294901760
    %v4490 = vsub.f32 %v4174, %v4489
    %v4491 = vand.u32 %v4490, 4294901760
    %4492 = vmatpush.msra.mxu0 %v4491
    %v4493 = vand.u32 %v4173, 4294901760
    %v4494 = vsub.f32 %v4173, %v4493
    %v4495 = vand.u32 %v4494, 4294901760
    %4496 = vmatpush.msra.mxu0 %v4495
    %v4497 = vand.u32 %v4172, 4294901760
    %v4498 = vsub.f32 %v4172, %v4497
    %v4499 = vand.u32 %v4498, 4294901760
    %4500 = vmatpush.msra.mxu0 %v4499
    %v4501 = vand.u32 %v4171, 4294901760
    %v4502 = vsub.f32 %v4171, %v4501
    %v4503 = vand.u32 %v4502, 4294901760
    %4504 = vmatpush.msra.mxu0 %v4503
    %v4505 = vand.u32 %v4170, 4294901760
    %v4506 = vsub.f32 %v4170, %v4505
    %v4507 = vand.u32 %v4506, 4294901760
    %4508 = vmatpush.msra.mxu0 %v4507
    %v4509 = vand.u32 %v4169, 4294901760
    %v4510 = vsub.f32 %v4169, %v4509
    %v4511 = vand.u32 %v4510, 4294901760
    %4512 = vmatpush.msra.mxu0 %v4511
    %v4513 = vand.u32 %v4168, 4294901760
    %v4514 = vsub.f32 %v4168, %v4513
    %v4515 = vand.u32 %v4514, 4294901760
    %4516 = vmatpush.msra.mxu0 %v4515
    %v4517 = vand.u32 %v4167, 4294901760
    %v4518 = vsub.f32 %v4167, %v4517
    %v4519 = vand.u32 %v4518, 4294901760
    %4520 = vmatpush.msra.mxu0 %v4519
    %v4521 = vand.u32 %v4166, 4294901760
    %v4522 = vsub.f32 %v4166, %v4521
    %v4523 = vand.u32 %v4522, 4294901760
    %4524 = vmatpush.msra.mxu0 %v4523
    %v4525 = vand.u32 %v4165, 4294901760
    %v4526 = vsub.f32 %v4165, %v4525
    %v4527 = vand.u32 %v4526, 4294901760
    %4528 = vmatpush.msra.mxu0 %v4527
    %v4529 = vand.u32 %v4164, 4294901760
    %v4530 = vsub.f32 %v4164, %v4529
    %v4531 = vand.u32 %v4530, 4294901760
    %4532 = vmatpush.msra.mxu0 %v4531
    %v4533 = vand.u32 %v4163, 4294901760
    %v4534 = vsub.f32 %v4163, %v4533
    %v4535 = vand.u32 %v4534, 4294901760
    %4536 = vmatpush.msra.mxu0 %v4535
    %v4537 = vand.u32 %v4162, 4294901760
    %v4538 = vsub.f32 %v4162, %v4537
    %v4539 = vand.u32 %v4538, 4294901760
    %4540 = vmatpush.msra.mxu0 %v4539
    %v4541 = vand.u32 %v4161, 4294901760
    %v4542 = vsub.f32 %v4161, %v4541
    %v4543 = vand.u32 %v4542, 4294901760
    %4544 = vmatpush.msra.mxu0 %v4543
    %v4545 = vand.u32 %v3584, 4294901760
    %4546 = vmatmul.f32.gmra.mxu0 %v4545
    %v4547 = vpop.f32.mrf.mxu0
    %v4548 = vadd.f32 %v4461, %v4547
    %v4549 = vand.u32 %v3585, 4294901760
    %4550 = vmatmul.f32.gmra.mxu0 %v4549
    %v4551 = vpop.f32.mrf.mxu0
    %v4552 = vadd.f32 %v4467, %v4551
    %v4553 = vand.u32 %v3586, 4294901760
    %4554 = vmatmul.f32.gmra.mxu0 %v4553
    %v4555 = vpop.f32.mrf.mxu0
    %v4556 = vadd.f32 %v4473, %v4555
    %v4557 = vand.u32 %v3587, 4294901760
    %4558 = vmatmul.f32.gmra.mxu0 %v4557
    %v4559 = vpop.f32.mrf.mxu0
    %v4560 = vadd.f32 %v4479, %v4559
    %4561 = vdwg.mxu0
    %v4562 = vand.u32 %v4176, 4294901760
    %4563 = vmatpush.msra.mxu0 %v4562
    %v4564 = vand.u32 %v4175, 4294901760
    %4565 = vmatpush.msra.mxu0 %v4564
    %v4566 = vand.u32 %v4174, 4294901760
    %4567 = vmatpush.msra.mxu0 %v4566
    %v4568 = vand.u32 %v4173, 4294901760
    %4569 = vmatpush.msra.mxu0 %v4568
    %v4570 = vand.u32 %v4172, 4294901760
    %4571 = vmatpush.msra.mxu0 %v4570
    %v4572 = vand.u32 %v4171, 4294901760
    %4573 = vmatpush.msra.mxu0 %v4572
    %v4574 = vand.u32 %v4170, 4294901760
    %4575 = vmatpush.msra.mxu0 %v4574
    %v4576 = vand.u32 %v4169, 4294901760
    %4577 = vmatpush.msra.mxu0 %v4576
    %v4578 = vand.u32 %v4168, 4294901760
    %4579 = vmatpush.msra.mxu0 %v4578
    %v4580 = vand.u32 %v4167, 4294901760
    %4581 = vmatpush.msra.mxu0 %v4580
    %v4582 = vand.u32 %v4166, 4294901760
    %4583 = vmatpush.msra.mxu0 %v4582
    %v4584 = vand.u32 %v4165, 4294901760
    %4585 = vmatpush.msra.mxu0 %v4584
    %v4586 = vand.u32 %v4164, 4294901760
    %4587 = vmatpush.msra.mxu0 %v4586
    %v4588 = vand.u32 %v4163, 4294901760
    %4589 = vmatpush.msra.mxu0 %v4588
    %v4590 = vand.u32 %v4162, 4294901760
    %4591 = vmatpush.msra.mxu0 %v4590
    %v4592 = vand.u32 %v4161, 4294901760
    %4593 = vmatpush.msra.mxu0 %v4592
    %v4594 = vand.u32 %v3584, 4294901760
    %4595 = vmatmul.f32.gmra.mxu0 %v4594
    %v4596 = vpop.f32.mrf.mxu0
    %v4597 = vadd.f32 %v4548, %v4596
    %v4598 = vand.u32 %v3585, 4294901760
    %4599 = vmatmul.f32.gmra.mxu0 %v4598
    %v4600 = vpop.f32.mrf.mxu0
    %v4601 = vadd.f32 %v4552, %v4600
    %v4602 = vand.u32 %v3586, 4294901760
    %4603 = vmatmul.f32.gmra.mxu0 %v4602
    %v4604 = vpop.f32.mrf.mxu0
    %v4605 = vadd.f32 %v4556, %v4604
    %v4606 = vand.u32 %v3587, 4294901760
    %4607 = vmatmul.f32.gmra.mxu0 %v4606
    %v4608 = vpop.f32.mrf.mxu0
    %v4609 = vadd.f32 %v4560, %v4608
    %4610 = vdwg.mxu0
    %v4611 = vand.u32 %v4159, 4294901760
    %4612 = vmatpush.msra.mxu0 %v4611
    %v4613 = vand.u32 %v4158, 4294901760
    %4614 = vmatpush.msra.mxu0 %v4613
    %v4615 = vand.u32 %v4157, 4294901760
    %4616 = vmatpush.msra.mxu0 %v4615
    %v4617 = vand.u32 %v4156, 4294901760
    %4618 = vmatpush.msra.mxu0 %v4617
    %v4619 = vand.u32 %v4155, 4294901760
    %4620 = vmatpush.msra.mxu0 %v4619
    %v4621 = vand.u32 %v4154, 4294901760
    %4622 = vmatpush.msra.mxu0 %v4621
    %v4623 = vand.u32 %v4153, 4294901760
    %4624 = vmatpush.msra.mxu0 %v4623
    %v4625 = vand.u32 %v4152, 4294901760
    %4626 = vmatpush.msra.mxu0 %v4625
    %v4627 = vand.u32 %v4151, 4294901760
    %4628 = vmatpush.msra.mxu0 %v4627
    %v4629 = vand.u32 %v4150, 4294901760
    %4630 = vmatpush.msra.mxu0 %v4629
    %v4631 = vand.u32 %v4149, 4294901760
    %4632 = vmatpush.msra.mxu0 %v4631
    %v4633 = vand.u32 %v4148, 4294901760
    %4634 = vmatpush.msra.mxu0 %v4633
    %v4635 = vand.u32 %v4147, 4294901760
    %4636 = vmatpush.msra.mxu0 %v4635
    %v4637 = vand.u32 %v4146, 4294901760
    %4638 = vmatpush.msra.mxu0 %v4637
    %v4639 = vand.u32 %v4145, 4294901760
    %4640 = vmatpush.msra.mxu0 %v4639
    %v4641 = vand.u32 %v4144, 4294901760
    %4642 = vmatpush.msra.mxu0 %v4641
    %v4643 = vand.u32 %v3852, 4294901760
    %v4644 = vsub.f32 %v3852, %v4643
    %v4645 = vand.u32 %v4644, 4294901760
    %v4646 = vsub.f32 %v4644, %v4645
    %v4647 = vand.u32 %v4646, 4294901760
    %4648 = vmatmul.f32.gmra.mxu0 %v4647
    %v4649 = vpop.f32.mrf.mxu0
    %v4650 = vadd.f32 %v4597, %v4649
    %v4651 = vand.u32 %v3856, 4294901760
    %v4652 = vsub.f32 %v3856, %v4651
    %v4653 = vand.u32 %v4652, 4294901760
    %v4654 = vsub.f32 %v4652, %v4653
    %v4655 = vand.u32 %v4654, 4294901760
    %4656 = vmatmul.f32.gmra.mxu0 %v4655
    %v4657 = vpop.f32.mrf.mxu0
    %v4658 = vadd.f32 %v4601, %v4657
    %v4659 = vand.u32 %v3860, 4294901760
    %v4660 = vsub.f32 %v3860, %v4659
    %v4661 = vand.u32 %v4660, 4294901760
    %v4662 = vsub.f32 %v4660, %v4661
    %v4663 = vand.u32 %v4662, 4294901760
    %4664 = vmatmul.f32.gmra.mxu0 %v4663
    %v4665 = vpop.f32.mrf.mxu0
    %v4666 = vadd.f32 %v4605, %v4665
    %v4667 = vand.u32 %v3864, 4294901760
    %v4668 = vsub.f32 %v3864, %v4667
    %v4669 = vand.u32 %v4668, 4294901760
    %v4670 = vsub.f32 %v4668, %v4669
    %v4671 = vand.u32 %v4670, 4294901760
    %4672 = vmatmul.f32.gmra.mxu0 %v4671
    %v4673 = vpop.f32.mrf.mxu0
    %v4674 = vadd.f32 %v4609, %v4673
    %4675 = vdwg.mxu0
    %v4676 = vand.u32 %v4159, 4294901760
    %v4677 = vsub.f32 %v4159, %v4676
    %v4678 = vand.u32 %v4677, 4294901760
    %v4679 = vsub.f32 %v4677, %v4678
    %v4680 = vand.u32 %v4679, 4294901760
    %4681 = vmatpush.msra.mxu0 %v4680
    %v4682 = vand.u32 %v4158, 4294901760
    %v4683 = vsub.f32 %v4158, %v4682
    %v4684 = vand.u32 %v4683, 4294901760
    %v4685 = vsub.f32 %v4683, %v4684
    %v4686 = vand.u32 %v4685, 4294901760
    %4687 = vmatpush.msra.mxu0 %v4686
    %v4688 = vand.u32 %v4157, 4294901760
    %v4689 = vsub.f32 %v4157, %v4688
    %v4690 = vand.u32 %v4689, 4294901760
    %v4691 = vsub.f32 %v4689, %v4690
    %v4692 = vand.u32 %v4691, 4294901760
    %4693 = vmatpush.msra.mxu0 %v4692
    %v4694 = vand.u32 %v4156, 4294901760
    %v4695 = vsub.f32 %v4156, %v4694
    %v4696 = vand.u32 %v4695, 4294901760
    %v4697 = vsub.f32 %v4695, %v4696
    %v4698 = vand.u32 %v4697, 4294901760
    %4699 = vmatpush.msra.mxu0 %v4698
    %v4700 = vand.u32 %v4155, 4294901760
    %v4701 = vsub.f32 %v4155, %v4700
    %v4702 = vand.u32 %v4701, 4294901760
    %v4703 = vsub.f32 %v4701, %v4702
    %v4704 = vand.u32 %v4703, 4294901760
    %4705 = vmatpush.msra.mxu0 %v4704
    %v4706 = vand.u32 %v4154, 4294901760
    %v4707 = vsub.f32 %v4154, %v4706
    %v4708 = vand.u32 %v4707, 4294901760
    %v4709 = vsub.f32 %v4707, %v4708
    %v4710 = vand.u32 %v4709, 4294901760
    %4711 = vmatpush.msra.mxu0 %v4710
    %v4712 = vand.u32 %v4153, 4294901760
    %v4713 = vsub.f32 %v4153, %v4712
    %v4714 = vand.u32 %v4713, 4294901760
    %v4715 = vsub.f32 %v4713, %v4714
    %v4716 = vand.u32 %v4715, 4294901760
    %4717 = vmatpush.msra.mxu0 %v4716
    %v4718 = vand.u32 %v4152, 4294901760
    %v4719 = vsub.f32 %v4152, %v4718
    %v4720 = vand.u32 %v4719, 4294901760
    %v4721 = vsub.f32 %v4719, %v4720
    %v4722 = vand.u32 %v4721, 4294901760
    %4723 = vmatpush.msra.mxu0 %v4722
    %v4724 = vand.u32 %v4151, 4294901760
    %v4725 = vsub.f32 %v4151, %v4724
    %v4726 = vand.u32 %v4725, 4294901760
    %v4727 = vsub.f32 %v4725, %v4726
    %v4728 = vand.u32 %v4727, 4294901760
    %4729 = vmatpush.msra.mxu0 %v4728
    %v4730 = vand.u32 %v4150, 4294901760
    %v4731 = vsub.f32 %v4150, %v4730
    %v4732 = vand.u32 %v4731, 4294901760
    %v4733 = vsub.f32 %v4731, %v4732
    %v4734 = vand.u32 %v4733, 4294901760
    %4735 = vmatpush.msra.mxu0 %v4734
    %v4736 = vand.u32 %v4149, 4294901760
    %v4737 = vsub.f32 %v4149, %v4736
    %v4738 = vand.u32 %v4737, 4294901760
    %v4739 = vsub.f32 %v4737, %v4738
    %v4740 = vand.u32 %v4739, 4294901760
    %4741 = vmatpush.msra.mxu0 %v4740
    %v4742 = vand.u32 %v4148, 4294901760
    %v4743 = vsub.f32 %v4148, %v4742
    %v4744 = vand.u32 %v4743, 4294901760
    %v4745 = vsub.f32 %v4743, %v4744
    %v4746 = vand.u32 %v4745, 4294901760
    %4747 = vmatpush.msra.mxu0 %v4746
    %v4748 = vand.u32 %v4147, 4294901760
    %v4749 = vsub.f32 %v4147, %v4748
    %v4750 = vand.u32 %v4749, 4294901760
    %v4751 = vsub.f32 %v4749, %v4750
    %v4752 = vand.u32 %v4751, 4294901760
    %4753 = vmatpush.msra.mxu0 %v4752
    %v4754 = vand.u32 %v4146, 4294901760
    %v4755 = vsub.f32 %v4146, %v4754
    %v4756 = vand.u32 %v4755, 4294901760
    %v4757 = vsub.f32 %v4755, %v4756
    %v4758 = vand.u32 %v4757, 4294901760
    %4759 = vmatpush.msra.mxu0 %v4758
    %v4760 = vand.u32 %v4145, 4294901760
    %v4761 = vsub.f32 %v4145, %v4760
    %v4762 = vand.u32 %v4761, 4294901760
    %v4763 = vsub.f32 %v4761, %v4762
    %v4764 = vand.u32 %v4763, 4294901760
    %4765 = vmatpush.msra.mxu0 %v4764
    %v4766 = vand.u32 %v4144, 4294901760
    %v4767 = vsub.f32 %v4144, %v4766
    %v4768 = vand.u32 %v4767, 4294901760
    %v4769 = vsub.f32 %v4767, %v4768
    %v4770 = vand.u32 %v4769, 4294901760
    %4771 = vmatpush.msra.mxu0 %v4770
    %v4772 = vand.u32 %v3852, 4294901760
    %4773 = vmatmul.f32.gmra.mxu0 %v4772
    %v4774 = vpop.f32.mrf.mxu0
    %v4775 = vadd.f32 %v4650, %v4774
    %v4776 = vand.u32 %v3856, 4294901760
    %4777 = vmatmul.f32.gmra.mxu0 %v4776
    %v4778 = vpop.f32.mrf.mxu0
    %v4779 = vadd.f32 %v4658, %v4778
    %v4780 = vand.u32 %v3860, 4294901760
    %4781 = vmatmul.f32.gmra.mxu0 %v4780
    %v4782 = vpop.f32.mrf.mxu0
    %v4783 = vadd.f32 %v4666, %v4782
    %v4784 = vand.u32 %v3864, 4294901760
    %4785 = vmatmul.f32.gmra.mxu0 %v4784
    %v4786 = vpop.f32.mrf.mxu0
    %v4787 = vadd.f32 %v4674, %v4786
    %4788 = vdwg.mxu0
    %v4789 = vand.u32 %v4159, 4294901760
    %v4790 = vsub.f32 %v4159, %v4789
    %4791 = vmatpush.msra.mxu0 %v4790
    %v4792 = vand.u32 %v4158, 4294901760
    %v4793 = vsub.f32 %v4158, %v4792
    %4794 = vmatpush.msra.mxu0 %v4793
    %v4795 = vand.u32 %v4157, 4294901760
    %v4796 = vsub.f32 %v4157, %v4795
    %4797 = vmatpush.msra.mxu0 %v4796
    %v4798 = vand.u32 %v4156, 4294901760
    %v4799 = vsub.f32 %v4156, %v4798
    %4800 = vmatpush.msra.mxu0 %v4799
    %v4801 = vand.u32 %v4155, 4294901760
    %v4802 = vsub.f32 %v4155, %v4801
    %4803 = vmatpush.msra.mxu0 %v4802
    %v4804 = vand.u32 %v4154, 4294901760
    %v4805 = vsub.f32 %v4154, %v4804
    %4806 = vmatpush.msra.mxu0 %v4805
    %v4807 = vand.u32 %v4153, 4294901760
    %v4808 = vsub.f32 %v4153, %v4807
    %4809 = vmatpush.msra.mxu0 %v4808
    %v4810 = vand.u32 %v4152, 4294901760
    %v4811 = vsub.f32 %v4152, %v4810
    %4812 = vmatpush.msra.mxu0 %v4811
    %v4813 = vand.u32 %v4151, 4294901760
    %v4814 = vsub.f32 %v4151, %v4813
    %4815 = vmatpush.msra.mxu0 %v4814
    %v4816 = vand.u32 %v4150, 4294901760
    %v4817 = vsub.f32 %v4150, %v4816
    %4818 = vmatpush.msra.mxu0 %v4817
    %v4819 = vand.u32 %v4149, 4294901760
    %v4820 = vsub.f32 %v4149, %v4819
    %4821 = vmatpush.msra.mxu0 %v4820
    %v4822 = vand.u32 %v4148, 4294901760
    %v4823 = vsub.f32 %v4148, %v4822
    %4824 = vmatpush.msra.mxu0 %v4823
    %v4825 = vand.u32 %v4147, 4294901760
    %v4826 = vsub.f32 %v4147, %v4825
    %4827 = vmatpush.msra.mxu0 %v4826
    %v4828 = vand.u32 %v4146, 4294901760
    %v4829 = vsub.f32 %v4146, %v4828
    %4830 = vmatpush.msra.mxu0 %v4829
    %v4831 = vand.u32 %v4145, 4294901760
    %v4832 = vsub.f32 %v4145, %v4831
    %4833 = vmatpush.msra.mxu0 %v4832
    %v4834 = vand.u32 %v4144, 4294901760
    %v4835 = vsub.f32 %v4144, %v4834
    %4836 = vmatpush.msra.mxu0 %v4835
    %v4837 = vand.u32 %v3852, 4294901760
    %v4838 = vsub.f32 %v3852, %v4837
    %4839 = vmatmul.f32.gmra.mxu0 %v4838
    %v4840 = vpop.f32.mrf.mxu0
    %v4841 = vadd.f32 %v4775, %v4840
    %v4842 = vand.u32 %v3856, 4294901760
    %v4843 = vsub.f32 %v3856, %v4842
    %4844 = vmatmul.f32.gmra.mxu0 %v4843
    %v4845 = vpop.f32.mrf.mxu0
    %v4846 = vadd.f32 %v4779, %v4845
    %v4847 = vand.u32 %v3860, 4294901760
    %v4848 = vsub.f32 %v3860, %v4847
    %4849 = vmatmul.f32.gmra.mxu0 %v4848
    %v4850 = vpop.f32.mrf.mxu0
    %v4851 = vadd.f32 %v4783, %v4850
    %v4852 = vand.u32 %v3864, 4294901760
    %v4853 = vsub.f32 %v3864, %v4852
    %4854 = vmatmul.f32.gmra.mxu0 %v4853
    %v4855 = vpop.f32.mrf.mxu0
    %v4856 = vadd.f32 %v4787, %v4855
    %4857 = vdwg.mxu0
    %v4858 = vand.u32 %v4159, 4294901760
    %4859 = vmatpush.msra.mxu0 %v4858
    %v4860 = vand.u32 %v4158, 4294901760
    %4861 = vmatpush.msra.mxu0 %v4860
    %v4862 = vand.u32 %v4157, 4294901760
    %4863 = vmatpush.msra.mxu0 %v4862
    %v4864 = vand.u32 %v4156, 4294901760
    %4865 = vmatpush.msra.mxu0 %v4864
    %v4866 = vand.u32 %v4155, 4294901760
    %4867 = vmatpush.msra.mxu0 %v4866
    %v4868 = vand.u32 %v4154, 4294901760
    %4869 = vmatpush.msra.mxu0 %v4868
    %v4870 = vand.u32 %v4153, 4294901760
    %4871 = vmatpush.msra.mxu0 %v4870
    %v4872 = vand.u32 %v4152, 4294901760
    %4873 = vmatpush.msra.mxu0 %v4872
    %v4874 = vand.u32 %v4151, 4294901760
    %4875 = vmatpush.msra.mxu0 %v4874
    %v4876 = vand.u32 %v4150, 4294901760
    %4877 = vmatpush.msra.mxu0 %v4876
    %v4878 = vand.u32 %v4149, 4294901760
    %4879 = vmatpush.msra.mxu0 %v4878
    %v4880 = vand.u32 %v4148, 4294901760
    %4881 = vmatpush.msra.mxu0 %v4880
    %v4882 = vand.u32 %v4147, 4294901760
    %4883 = vmatpush.msra.mxu0 %v4882
    %v4884 = vand.u32 %v4146, 4294901760
    %4885 = vmatpush.msra.mxu0 %v4884
    %v4886 = vand.u32 %v4145, 4294901760
    %4887 = vmatpush.msra.mxu0 %v4886
    %v4888 = vand.u32 %v4144, 4294901760
    %4889 = vmatpush.msra.mxu0 %v4888
    %v4890 = vand.u32 %v3852, 4294901760
    %v4891 = vsub.f32 %v3852, %v4890
    %v4892 = vand.u32 %v4891, 4294901760
    %4893 = vmatmul.f32.gmra.mxu0 %v4892
    %v4894 = vpop.f32.mrf.mxu0
    %v4895 = vadd.f32 %v4841, %v4894
    %v4896 = vand.u32 %v3856, 4294901760
    %v4897 = vsub.f32 %v3856, %v4896
    %v4898 = vand.u32 %v4897, 4294901760
    %4899 = vmatmul.f32.gmra.mxu0 %v4898
    %v4900 = vpop.f32.mrf.mxu0
    %v4901 = vadd.f32 %v4846, %v4900
    %v4902 = vand.u32 %v3860, 4294901760
    %v4903 = vsub.f32 %v3860, %v4902
    %v4904 = vand.u32 %v4903, 4294901760
    %4905 = vmatmul.f32.gmra.mxu0 %v4904
    %v4906 = vpop.f32.mrf.mxu0
    %v4907 = vadd.f32 %v4851, %v4906
    %v4908 = vand.u32 %v3864, 4294901760
    %v4909 = vsub.f32 %v3864, %v4908
    %v4910 = vand.u32 %v4909, 4294901760
    %4911 = vmatmul.f32.gmra.mxu0 %v4910
    %v4912 = vpop.f32.mrf.mxu0
    %v4913 = vadd.f32 %v4856, %v4912
    %4914 = vdwg.mxu0
    %v4915 = vand.u32 %v4159, 4294901760
    %v4916 = vsub.f32 %v4159, %v4915
    %v4917 = vand.u32 %v4916, 4294901760
    %4918 = vmatpush.msra.mxu0 %v4917
    %v4919 = vand.u32 %v4158, 4294901760
    %v4920 = vsub.f32 %v4158, %v4919
    %v4921 = vand.u32 %v4920, 4294901760
    %4922 = vmatpush.msra.mxu0 %v4921
    %v4923 = vand.u32 %v4157, 4294901760
    %v4924 = vsub.f32 %v4157, %v4923
    %v4925 = vand.u32 %v4924, 4294901760
    %4926 = vmatpush.msra.mxu0 %v4925
    %v4927 = vand.u32 %v4156, 4294901760
    %v4928 = vsub.f32 %v4156, %v4927
    %v4929 = vand.u32 %v4928, 4294901760
    %4930 = vmatpush.msra.mxu0 %v4929
    %v4931 = vand.u32 %v4155, 4294901760
    %v4932 = vsub.f32 %v4155, %v4931
    %v4933 = vand.u32 %v4932, 4294901760
    %4934 = vmatpush.msra.mxu0 %v4933
    %v4935 = vand.u32 %v4154, 4294901760
    %v4936 = vsub.f32 %v4154, %v4935
    %v4937 = vand.u32 %v4936, 4294901760
    %4938 = vmatpush.msra.mxu0 %v4937
    %v4939 = vand.u32 %v4153, 4294901760
    %v4940 = vsub.f32 %v4153, %v4939
    %v4941 = vand.u32 %v4940, 4294901760
    %4942 = vmatpush.msra.mxu0 %v4941
    %v4943 = vand.u32 %v4152, 4294901760
    %v4944 = vsub.f32 %v4152, %v4943
    %v4945 = vand.u32 %v4944, 4294901760
    %4946 = vmatpush.msra.mxu0 %v4945
    %v4947 = vand.u32 %v4151, 4294901760
    %v4948 = vsub.f32 %v4151, %v4947
    %v4949 = vand.u32 %v4948, 4294901760
    %4950 = vmatpush.msra.mxu0 %v4949
    %v4951 = vand.u32 %v4150, 4294901760
    %v4952 = vsub.f32 %v4150, %v4951
    %v4953 = vand.u32 %v4952, 4294901760
    %4954 = vmatpush.msra.mxu0 %v4953
    %v4955 = vand.u32 %v4149, 4294901760
    %v4956 = vsub.f32 %v4149, %v4955
    %v4957 = vand.u32 %v4956, 4294901760
    %4958 = vmatpush.msra.mxu0 %v4957
    %v4959 = vand.u32 %v4148, 4294901760
    %v4960 = vsub.f32 %v4148, %v4959
    %v4961 = vand.u32 %v4960, 4294901760
    %4962 = vmatpush.msra.mxu0 %v4961
    %v4963 = vand.u32 %v4147, 4294901760
    %v4964 = vsub.f32 %v4147, %v4963
    %v4965 = vand.u32 %v4964, 4294901760
    %4966 = vmatpush.msra.mxu0 %v4965
    %v4967 = vand.u32 %v4146, 4294901760
    %v4968 = vsub.f32 %v4146, %v4967
    %v4969 = vand.u32 %v4968, 4294901760
    %4970 = vmatpush.msra.mxu0 %v4969
    %v4971 = vand.u32 %v4145, 4294901760
    %v4972 = vsub.f32 %v4145, %v4971
    %v4973 = vand.u32 %v4972, 4294901760
    %4974 = vmatpush.msra.mxu0 %v4973
    %v4975 = vand.u32 %v4144, 4294901760
    %v4976 = vsub.f32 %v4144, %v4975
    %v4977 = vand.u32 %v4976, 4294901760
    %4978 = vmatpush.msra.mxu0 %v4977
    %v4979 = vand.u32 %v3852, 4294901760
    %4980 = vmatmul.f32.gmra.mxu0 %v4979
    %v4981 = vpop.f32.mrf.mxu0
    %v4982 = vadd.f32 %v4895, %v4981
    %v4983 = vand.u32 %v3856, 4294901760
    %4984 = vmatmul.f32.gmra.mxu0 %v4983
    %v4985 = vpop.f32.mrf.mxu0
    %v4986 = vadd.f32 %v4901, %v4985
    %v4987 = vand.u32 %v3860, 4294901760
    %4988 = vmatmul.f32.gmra.mxu0 %v4987
    %v4989 = vpop.f32.mrf.mxu0
    %v4990 = vadd.f32 %v4907, %v4989
    %v4991 = vand.u32 %v3864, 4294901760
    %4992 = vmatmul.f32.gmra.mxu0 %v4991
    %v4993 = vpop.f32.mrf.mxu0
    %v4994 = vadd.f32 %v4913, %v4993
    %4995 = vdwg.mxu0
    %v4996 = vand.u32 %v4159, 4294901760
    %4997 = vmatpush.msra.mxu0 %v4996
    %v4998 = vand.u32 %v4158, 4294901760
    %4999 = vmatpush.msra.mxu0 %v4998
    %v5000 = vand.u32 %v4157, 4294901760
    %5001 = vmatpush.msra.mxu0 %v5000
    %v5002 = vand.u32 %v4156, 4294901760
    %5003 = vmatpush.msra.mxu0 %v5002
    %v5004 = vand.u32 %v4155, 4294901760
    %5005 = vmatpush.msra.mxu0 %v5004
    %v5006 = vand.u32 %v4154, 4294901760
    %5007 = vmatpush.msra.mxu0 %v5006
    %v5008 = vand.u32 %v4153, 4294901760
    %5009 = vmatpush.msra.mxu0 %v5008
    %v5010 = vand.u32 %v4152, 4294901760
    %5011 = vmatpush.msra.mxu0 %v5010
    %v5012 = vand.u32 %v4151, 4294901760
    %5013 = vmatpush.msra.mxu0 %v5012
    %v5014 = vand.u32 %v4150, 4294901760
    %5015 = vmatpush.msra.mxu0 %v5014
    %v5016 = vand.u32 %v4149, 4294901760
    %5017 = vmatpush.msra.mxu0 %v5016
    %v5018 = vand.u32 %v4148, 4294901760
    %5019 = vmatpush.msra.mxu0 %v5018
    %v5020 = vand.u32 %v4147, 4294901760
    %5021 = vmatpush.msra.mxu0 %v5020
    %v5022 = vand.u32 %v4146, 4294901760
    %5023 = vmatpush.msra.mxu0 %v5022
    %v5024 = vand.u32 %v4145, 4294901760
    %5025 = vmatpush.msra.mxu0 %v5024
    %v5026 = vand.u32 %v4144, 4294901760
    %5027 = vmatpush.msra.mxu0 %v5026
    %v5028 = vand.u32 %v3852, 4294901760
    %5029 = vmatmul.f32.gmra.mxu0 %v5028
    %v5030 = vpop.f32.mrf.mxu0
    %v5031 = vadd.f32 %v4982, %v5030
    %v5032 = vand.u32 %v3856, 4294901760
    %5033 = vmatmul.f32.gmra.mxu0 %v5032
    %v5034 = vpop.f32.mrf.mxu0
    %v5035 = vadd.f32 %v4986, %v5034
    %v5036 = vand.u32 %v3860, 4294901760
    %5037 = vmatmul.f32.gmra.mxu0 %v5036
    %v5038 = vpop.f32.mrf.mxu0
    %v5039 = vadd.f32 %v4990, %v5038
    %v5040 = vand.u32 %v3864, 4294901760
    %5041 = vmatmul.f32.gmra.mxu0 %v5040
    %v5042 = vpop.f32.mrf.mxu0
    %v5043 = vadd.f32 %v4994, %v5042
    %5044 = vdwg.mxu0
    %s5045 = scalar_lea.vmem [#allocation10], 256
    %v5046 = vld [vmem:[%s5045] sm:$0xff]
    %v5047 = vld [vmem:[%s5045 + $0x8] sm:$0xff]
    %v5048 = vld [vmem:[%s5045 + $0x10] sm:$0xff]
    %v5049 = vld [vmem:[%s5045 + $0x18] sm:$0xff]
    %v5050 = vld [vmem:[%s5045 + $0x20] sm:$0xff]
    %v5051 = vld [vmem:[%s5045 + $0x28] sm:$0xff]
    %v5052 = vld [vmem:[%s5045 + $0x30] sm:$0xff]
    %v5053 = vld [vmem:[%s5045 + $0x38] sm:$0xff]
    %v5054 = vld [vmem:[%s5045 + $0x40] sm:$0xff]
    %v5055 = vld [vmem:[%s5045 + $0x48] sm:$0xff]
    %v5056 = vld [vmem:[%s5045 + $0x50] sm:$0xff]
    %v5057 = vld [vmem:[%s5045 + $0x58] sm:$0xff]
    %v5058 = vld [vmem:[%s5045 + $0x60] sm:$0xff]
    %v5059 = vld [vmem:[%s5045 + $0x68] sm:$0xff]
    %v5060 = vld [vmem:[%s5045 + $0x70] sm:$0xff]
    %v5061 = vld [vmem:[%s5045 + $0x78] sm:$0xff]
    %v5062 = vand.u32 %v5061, 4294901760
    %5063 = vmatpush.msra.mxu0 %v5062
    %v5064 = vand.u32 %v5060, 4294901760
    %5065 = vmatpush.msra.mxu0 %v5064
    %v5066 = vand.u32 %v5059, 4294901760
    %5067 = vmatpush.msra.mxu0 %v5066
    %v5068 = vand.u32 %v5058, 4294901760
    %5069 = vmatpush.msra.mxu0 %v5068
    %v5070 = vand.u32 %v5057, 4294901760
    %5071 = vmatpush.msra.mxu0 %v5070
    %v5072 = vand.u32 %v5056, 4294901760
    %5073 = vmatpush.msra.mxu0 %v5072
    %v5074 = vand.u32 %v5055, 4294901760
    %5075 = vmatpush.msra.mxu0 %v5074
    %v5076 = vand.u32 %v5054, 4294901760
    %5077 = vmatpush.msra.mxu0 %v5076
    %v5078 = vand.u32 %v5053, 4294901760
    %5079 = vmatpush.msra.mxu0 %v5078
    %v5080 = vand.u32 %v5052, 4294901760
    %5081 = vmatpush.msra.mxu0 %v5080
    %v5082 = vand.u32 %v5051, 4294901760
    %5083 = vmatpush.msra.mxu0 %v5082
    %v5084 = vand.u32 %v5050, 4294901760
    %5085 = vmatpush.msra.mxu0 %v5084
    %v5086 = vand.u32 %v5049, 4294901760
    %5087 = vmatpush.msra.mxu0 %v5086
    %v5088 = vand.u32 %v5048, 4294901760
    %5089 = vmatpush.msra.mxu0 %v5088
    %v5090 = vand.u32 %v5047, 4294901760
    %5091 = vmatpush.msra.mxu0 %v5090
    %v5092 = vand.u32 %v5046, 4294901760
    %5093 = vmatpush.msra.mxu0 %v5092
    %v5094 = vand.u32 %v4130, 4294901760
    %v5095 = vsub.f32 %v4130, %v5094
    %v5096 = vand.u32 %v5095, 4294901760
    %v5097 = vsub.f32 %v5095, %v5096
    %v5098 = vand.u32 %v5097, 4294901760
    %5099 = vmatmul.f32.gmra.mxu0 %v5098
    %v5100 = vpop.f32.mrf.mxu0
    %v5101 = vadd.f32 0.0, %v5100
    %v5102 = vand.u32 %v4134, 4294901760
    %v5103 = vsub.f32 %v4134, %v5102
    %v5104 = vand.u32 %v5103, 4294901760
    %v5105 = vsub.f32 %v5103, %v5104
    %v5106 = vand.u32 %v5105, 4294901760
    %5107 = vmatmul.f32.gmra.mxu0 %v5106
    %v5108 = vpop.f32.mrf.mxu0
    %v5109 = vadd.f32 0.0, %v5108
    %v5110 = vand.u32 %v4138, 4294901760
    %v5111 = vsub.f32 %v4138, %v5110
    %v5112 = vand.u32 %v5111, 4294901760
    %v5113 = vsub.f32 %v5111, %v5112
    %v5114 = vand.u32 %v5113, 4294901760
    %5115 = vmatmul.f32.gmra.mxu0 %v5114
    %v5116 = vpop.f32.mrf.mxu0
    %v5117 = vadd.f32 0.0, %v5116
    %v5118 = vand.u32 %v4142, 4294901760
    %v5119 = vsub.f32 %v4142, %v5118
    %v5120 = vand.u32 %v5119, 4294901760
    %v5121 = vsub.f32 %v5119, %v5120
    %v5122 = vand.u32 %v5121, 4294901760
    %5123 = vmatmul.f32.gmra.mxu0 %v5122
    %v5124 = vpop.f32.mrf.mxu0
    %v5125 = vadd.f32 0.0, %v5124
    %5126 = vdwg.mxu0
    %v5127 = vand.u32 %v5061, 4294901760
    %v5128 = vsub.f32 %v5061, %v5127
    %v5129 = vand.u32 %v5128, 4294901760
    %v5130 = vsub.f32 %v5128, %v5129
    %v5131 = vand.u32 %v5130, 4294901760
    %5132 = vmatpush.msra.mxu0 %v5131
    %v5133 = vand.u32 %v5060, 4294901760
    %v5134 = vsub.f32 %v5060, %v5133
    %v5135 = vand.u32 %v5134, 4294901760
    %v5136 = vsub.f32 %v5134, %v5135
    %v5137 = vand.u32 %v5136, 4294901760
    %5138 = vmatpush.msra.mxu0 %v5137
    %v5139 = vand.u32 %v5059, 4294901760
    %v5140 = vsub.f32 %v5059, %v5139
    %v5141 = vand.u32 %v5140, 4294901760
    %v5142 = vsub.f32 %v5140, %v5141
    %v5143 = vand.u32 %v5142, 4294901760
    %5144 = vmatpush.msra.mxu0 %v5143
    %v5145 = vand.u32 %v5058, 4294901760
    %v5146 = vsub.f32 %v5058, %v5145
    %v5147 = vand.u32 %v5146, 4294901760
    %v5148 = vsub.f32 %v5146, %v5147
    %v5149 = vand.u32 %v5148, 4294901760
    %5150 = vmatpush.msra.mxu0 %v5149
    %v5151 = vand.u32 %v5057, 4294901760
    %v5152 = vsub.f32 %v5057, %v5151
    %v5153 = vand.u32 %v5152, 4294901760
    %v5154 = vsub.f32 %v5152, %v5153
    %v5155 = vand.u32 %v5154, 4294901760
    %5156 = vmatpush.msra.mxu0 %v5155
    %v5157 = vand.u32 %v5056, 4294901760
    %v5158 = vsub.f32 %v5056, %v5157
    %v5159 = vand.u32 %v5158, 4294901760
    %v5160 = vsub.f32 %v5158, %v5159
    %v5161 = vand.u32 %v5160, 4294901760
    %5162 = vmatpush.msra.mxu0 %v5161
    %v5163 = vand.u32 %v5055, 4294901760
    %v5164 = vsub.f32 %v5055, %v5163
    %v5165 = vand.u32 %v5164, 4294901760
    %v5166 = vsub.f32 %v5164, %v5165
    %v5167 = vand.u32 %v5166, 4294901760
    %5168 = vmatpush.msra.mxu0 %v5167
    %v5169 = vand.u32 %v5054, 4294901760
    %v5170 = vsub.f32 %v5054, %v5169
    %v5171 = vand.u32 %v5170, 4294901760
    %v5172 = vsub.f32 %v5170, %v5171
    %v5173 = vand.u32 %v5172, 4294901760
    %5174 = vmatpush.msra.mxu0 %v5173
    %v5175 = vand.u32 %v5053, 4294901760
    %v5176 = vsub.f32 %v5053, %v5175
    %v5177 = vand.u32 %v5176, 4294901760
    %v5178 = vsub.f32 %v5176, %v5177
    %v5179 = vand.u32 %v5178, 4294901760
    %5180 = vmatpush.msra.mxu0 %v5179
    %v5181 = vand.u32 %v5052, 4294901760
    %v5182 = vsub.f32 %v5052, %v5181
    %v5183 = vand.u32 %v5182, 4294901760
    %v5184 = vsub.f32 %v5182, %v5183
    %v5185 = vand.u32 %v5184, 4294901760
    %5186 = vmatpush.msra.mxu0 %v5185
    %v5187 = vand.u32 %v5051, 4294901760
    %v5188 = vsub.f32 %v5051, %v5187
    %v5189 = vand.u32 %v5188, 4294901760
    %v5190 = vsub.f32 %v5188, %v5189
    %v5191 = vand.u32 %v5190, 4294901760
    %5192 = vmatpush.msra.mxu0 %v5191
    %v5193 = vand.u32 %v5050, 4294901760
    %v5194 = vsub.f32 %v5050, %v5193
    %v5195 = vand.u32 %v5194, 4294901760
    %v5196 = vsub.f32 %v5194, %v5195
    %v5197 = vand.u32 %v5196, 4294901760
    %5198 = vmatpush.msra.mxu0 %v5197
    %v5199 = vand.u32 %v5049, 4294901760
    %v5200 = vsub.f32 %v5049, %v5199
    %v5201 = vand.u32 %v5200, 4294901760
    %v5202 = vsub.f32 %v5200, %v5201
    %v5203 = vand.u32 %v5202, 4294901760
    %5204 = vmatpush.msra.mxu0 %v5203
    %v5205 = vand.u32 %v5048, 4294901760
    %v5206 = vsub.f32 %v5048, %v5205
    %v5207 = vand.u32 %v5206, 4294901760
    %v5208 = vsub.f32 %v5206, %v5207
    %v5209 = vand.u32 %v5208, 4294901760
    %5210 = vmatpush.msra.mxu0 %v5209
    %v5211 = vand.u32 %v5047, 4294901760
    %v5212 = vsub.f32 %v5047, %v5211
    %v5213 = vand.u32 %v5212, 4294901760
    %v5214 = vsub.f32 %v5212, %v5213
    %v5215 = vand.u32 %v5214, 4294901760
    %5216 = vmatpush.msra.mxu0 %v5215
    %v5217 = vand.u32 %v5046, 4294901760
    %v5218 = vsub.f32 %v5046, %v5217
    %v5219 = vand.u32 %v5218, 4294901760
    %v5220 = vsub.f32 %v5218, %v5219
    %v5221 = vand.u32 %v5220, 4294901760
    %5222 = vmatpush.msra.mxu0 %v5221
    %v5223 = vand.u32 %v4130, 4294901760
    %5224 = vmatmul.f32.gmra.mxu0 %v5223
    %v5225 = vpop.f32.mrf.mxu0
    %v5226 = vadd.f32 %v5101, %v5225
    %v5227 = vand.u32 %v4134, 4294901760
    %5228 = vmatmul.f32.gmra.mxu0 %v5227
    %v5229 = vpop.f32.mrf.mxu0
    %v5230 = vadd.f32 %v5109, %v5229
    %v5231 = vand.u32 %v4138, 4294901760
    %5232 = vmatmul.f32.gmra.mxu0 %v5231
    %v5233 = vpop.f32.mrf.mxu0
    %v5234 = vadd.f32 %v5117, %v5233
    %v5235 = vand.u32 %v4142, 4294901760
    %5236 = vmatmul.f32.gmra.mxu0 %v5235
    %v5237 = vpop.f32.mrf.mxu0
    %v5238 = vadd.f32 %v5125, %v5237
    %5239 = vdwg.mxu0
    %v5240 = vand.u32 %v5061, 4294901760
    %v5241 = vsub.f32 %v5061, %v5240
    %5242 = vmatpush.msra.mxu0 %v5241
    %v5243 = vand.u32 %v5060, 4294901760
    %v5244 = vsub.f32 %v5060, %v5243
    %5245 = vmatpush.msra.mxu0 %v5244
    %v5246 = vand.u32 %v5059, 4294901760
    %v5247 = vsub.f32 %v5059, %v5246
    %5248 = vmatpush.msra.mxu0 %v5247
    %v5249 = vand.u32 %v5058, 4294901760
    %v5250 = vsub.f32 %v5058, %v5249
    %5251 = vmatpush.msra.mxu0 %v5250
    %v5252 = vand.u32 %v5057, 4294901760
    %v5253 = vsub.f32 %v5057, %v5252
    %5254 = vmatpush.msra.mxu0 %v5253
    %v5255 = vand.u32 %v5056, 4294901760
    %v5256 = vsub.f32 %v5056, %v5255
    %5257 = vmatpush.msra.mxu0 %v5256
    %v5258 = vand.u32 %v5055, 4294901760
    %v5259 = vsub.f32 %v5055, %v5258
    %5260 = vmatpush.msra.mxu0 %v5259
    %v5261 = vand.u32 %v5054, 4294901760
    %v5262 = vsub.f32 %v5054, %v5261
    %5263 = vmatpush.msra.mxu0 %v5262
    %v5264 = vand.u32 %v5053, 4294901760
    %v5265 = vsub.f32 %v5053, %v5264
    %5266 = vmatpush.msra.mxu0 %v5265
    %v5267 = vand.u32 %v5052, 4294901760
    %v5268 = vsub.f32 %v5052, %v5267
    %5269 = vmatpush.msra.mxu0 %v5268
    %v5270 = vand.u32 %v5051, 4294901760
    %v5271 = vsub.f32 %v5051, %v5270
    %5272 = vmatpush.msra.mxu0 %v5271
    %v5273 = vand.u32 %v5050, 4294901760
    %v5274 = vsub.f32 %v5050, %v5273
    %5275 = vmatpush.msra.mxu0 %v5274
    %v5276 = vand.u32 %v5049, 4294901760
    %v5277 = vsub.f32 %v5049, %v5276
    %5278 = vmatpush.msra.mxu0 %v5277
    %v5279 = vand.u32 %v5048, 4294901760
    %v5280 = vsub.f32 %v5048, %v5279
    %5281 = vmatpush.msra.mxu0 %v5280
    %v5282 = vand.u32 %v5047, 4294901760
    %v5283 = vsub.f32 %v5047, %v5282
    %5284 = vmatpush.msra.mxu0 %v5283
    %v5285 = vand.u32 %v5046, 4294901760
    %v5286 = vsub.f32 %v5046, %v5285
    %5287 = vmatpush.msra.mxu0 %v5286
    %v5288 = vand.u32 %v4130, 4294901760
    %v5289 = vsub.f32 %v4130, %v5288
    %5290 = vmatmul.f32.gmra.mxu0 %v5289
    %v5291 = vpop.f32.mrf.mxu0
    %v5292 = vadd.f32 %v5226, %v5291
    %v5293 = vand.u32 %v4134, 4294901760
    %v5294 = vsub.f32 %v4134, %v5293
    %5295 = vmatmul.f32.gmra.mxu0 %v5294
    %v5296 = vpop.f32.mrf.mxu0
    %v5297 = vadd.f32 %v5230, %v5296
    %v5298 = vand.u32 %v4138, 4294901760
    %v5299 = vsub.f32 %v4138, %v5298
    %5300 = vmatmul.f32.gmra.mxu0 %v5299
    %v5301 = vpop.f32.mrf.mxu0
    %v5302 = vadd.f32 %v5234, %v5301
    %v5303 = vand.u32 %v4142, 4294901760
    %v5304 = vsub.f32 %v4142, %v5303
    %5305 = vmatmul.f32.gmra.mxu0 %v5304
    %v5306 = vpop.f32.mrf.mxu0
    %v5307 = vadd.f32 %v5238, %v5306
    %5308 = vdwg.mxu0
    %v5309 = vand.u32 %v5061, 4294901760
    %5310 = vmatpush.msra.mxu0 %v5309
    %v5311 = vand.u32 %v5060, 4294901760
    %5312 = vmatpush.msra.mxu0 %v5311
    %v5313 = vand.u32 %v5059, 4294901760
    %5314 = vmatpush.msra.mxu0 %v5313
    %v5315 = vand.u32 %v5058, 4294901760
    %5316 = vmatpush.msra.mxu0 %v5315
    %v5317 = vand.u32 %v5057, 4294901760
    %5318 = vmatpush.msra.mxu0 %v5317
    %v5319 = vand.u32 %v5056, 4294901760
    %5320 = vmatpush.msra.mxu0 %v5319
    %v5321 = vand.u32 %v5055, 4294901760
    %5322 = vmatpush.msra.mxu0 %v5321
    %v5323 = vand.u32 %v5054, 4294901760
    %5324 = vmatpush.msra.mxu0 %v5323
    %v5325 = vand.u32 %v5053, 4294901760
    %5326 = vmatpush.msra.mxu0 %v5325
    %v5327 = vand.u32 %v5052, 4294901760
    %5328 = vmatpush.msra.mxu0 %v5327
    %v5329 = vand.u32 %v5051, 4294901760
    %5330 = vmatpush.msra.mxu0 %v5329
    %v5331 = vand.u32 %v5050, 4294901760
    %5332 = vmatpush.msra.mxu0 %v5331
    %v5333 = vand.u32 %v5049, 4294901760
    %5334 = vmatpush.msra.mxu0 %v5333
    %v5335 = vand.u32 %v5048, 4294901760
    %5336 = vmatpush.msra.mxu0 %v5335
    %v5337 = vand.u32 %v5047, 4294901760
    %5338 = vmatpush.msra.mxu0 %v5337
    %v5339 = vand.u32 %v5046, 4294901760
    %5340 = vmatpush.msra.mxu0 %v5339
    %v5341 = vand.u32 %v4130, 4294901760
    %v5342 = vsub.f32 %v4130, %v5341
    %v5343 = vand.u32 %v5342, 4294901760
    %5344 = vmatmul.f32.gmra.mxu0 %v5343
    %v5345 = vpop.f32.mrf.mxu0
    %v5346 = vadd.f32 %v5292, %v5345
    %v5347 = vand.u32 %v4134, 4294901760
    %v5348 = vsub.f32 %v4134, %v5347
    %v5349 = vand.u32 %v5348, 4294901760
    %5350 = vmatmul.f32.gmra.mxu0 %v5349
    %v5351 = vpop.f32.mrf.mxu0
    %v5352 = vadd.f32 %v5297, %v5351
    %v5353 = vand.u32 %v4138, 4294901760
    %v5354 = vsub.f32 %v4138, %v5353
    %v5355 = vand.u32 %v5354, 4294901760
    %5356 = vmatmul.f32.gmra.mxu0 %v5355
    %v5357 = vpop.f32.mrf.mxu0
    %v5358 = vadd.f32 %v5302, %v5357
    %v5359 = vand.u32 %v4142, 4294901760
    %v5360 = vsub.f32 %v4142, %v5359
    %v5361 = vand.u32 %v5360, 4294901760
    %5362 = vmatmul.f32.gmra.mxu0 %v5361
    %v5363 = vpop.f32.mrf.mxu0
    %v5364 = vadd.f32 %v5307, %v5363
    %5365 = vdwg.mxu0
    %v5366 = vand.u32 %v5061, 4294901760
    %v5367 = vsub.f32 %v5061, %v5366
    %v5368 = vand.u32 %v5367, 4294901760
    %5369 = vmatpush.msra.mxu0 %v5368
    %v5370 = vand.u32 %v5060, 4294901760
    %v5371 = vsub.f32 %v5060, %v5370
    %v5372 = vand.u32 %v5371, 4294901760
    %5373 = vmatpush.msra.mxu0 %v5372
    %v5374 = vand.u32 %v5059, 4294901760
    %v5375 = vsub.f32 %v5059, %v5374
    %v5376 = vand.u32 %v5375, 4294901760
    %5377 = vmatpush.msra.mxu0 %v5376
    %v5378 = vand.u32 %v5058, 4294901760
    %v5379 = vsub.f32 %v5058, %v5378
    %v5380 = vand.u32 %v5379, 4294901760
    %5381 = vmatpush.msra.mxu0 %v5380
    %v5382 = vand.u32 %v5057, 4294901760
    %v5383 = vsub.f32 %v5057, %v5382
    %v5384 = vand.u32 %v5383, 4294901760
    %5385 = vmatpush.msra.mxu0 %v5384
    %v5386 = vand.u32 %v5056, 4294901760
    %v5387 = vsub.f32 %v5056, %v5386
    %v5388 = vand.u32 %v5387, 4294901760
    %5389 = vmatpush.msra.mxu0 %v5388
    %v5390 = vand.u32 %v5055, 4294901760
    %v5391 = vsub.f32 %v5055, %v5390
    %v5392 = vand.u32 %v5391, 4294901760
    %5393 = vmatpush.msra.mxu0 %v5392
    %v5394 = vand.u32 %v5054, 4294901760
    %v5395 = vsub.f32 %v5054, %v5394
    %v5396 = vand.u32 %v5395, 4294901760
    %5397 = vmatpush.msra.mxu0 %v5396
    %v5398 = vand.u32 %v5053, 4294901760
    %v5399 = vsub.f32 %v5053, %v5398
    %v5400 = vand.u32 %v5399, 4294901760
    %5401 = vmatpush.msra.mxu0 %v5400
    %v5402 = vand.u32 %v5052, 4294901760
    %v5403 = vsub.f32 %v5052, %v5402
    %v5404 = vand.u32 %v5403, 4294901760
    %5405 = vmatpush.msra.mxu0 %v5404
    %v5406 = vand.u32 %v5051, 4294901760
    %v5407 = vsub.f32 %v5051, %v5406
    %v5408 = vand.u32 %v5407, 4294901760
    %5409 = vmatpush.msra.mxu0 %v5408
    %v5410 = vand.u32 %v5050, 4294901760
    %v5411 = vsub.f32 %v5050, %v5410
    %v5412 = vand.u32 %v5411, 4294901760
    %5413 = vmatpush.msra.mxu0 %v5412
    %v5414 = vand.u32 %v5049, 4294901760
    %v5415 = vsub.f32 %v5049, %v5414
    %v5416 = vand.u32 %v5415, 4294901760
    %5417 = vmatpush.msra.mxu0 %v5416
    %v5418 = vand.u32 %v5048, 4294901760
    %v5419 = vsub.f32 %v5048, %v5418
    %v5420 = vand.u32 %v5419, 4294901760
    %5421 = vmatpush.msra.mxu0 %v5420
    %v5422 = vand.u32 %v5047, 4294901760
    %v5423 = vsub.f32 %v5047, %v5422
    %v5424 = vand.u32 %v5423, 4294901760
    %5425 = vmatpush.msra.mxu0 %v5424
    %v5426 = vand.u32 %v5046, 4294901760
    %v5427 = vsub.f32 %v5046, %v5426
    %v5428 = vand.u32 %v5427, 4294901760
    %5429 = vmatpush.msra.mxu0 %v5428
    %v5430 = vand.u32 %v4130, 4294901760
    %5431 = vmatmul.f32.gmra.mxu0 %v5430
    %v5432 = vpop.f32.mrf.mxu0
    %v5433 = vadd.f32 %v5346, %v5432
    %v5434 = vand.u32 %v4134, 4294901760
    %5435 = vmatmul.f32.gmra.mxu0 %v5434
    %v5436 = vpop.f32.mrf.mxu0
    %v5437 = vadd.f32 %v5352, %v5436
    %v5438 = vand.u32 %v4138, 4294901760
    %5439 = vmatmul.f32.gmra.mxu0 %v5438
    %v5440 = vpop.f32.mrf.mxu0
    %v5441 = vadd.f32 %v5358, %v5440
    %v5442 = vand.u32 %v4142, 4294901760
    %5443 = vmatmul.f32.gmra.mxu0 %v5442
    %v5444 = vpop.f32.mrf.mxu0
    %v5445 = vadd.f32 %v5364, %v5444
    %5446 = vdwg.mxu0
    %v5447 = vand.u32 %v5061, 4294901760
    %5448 = vmatpush.msra.mxu0 %v5447
    %v5449 = vand.u32 %v5060, 4294901760
    %5450 = vmatpush.msra.mxu0 %v5449
    %v5451 = vand.u32 %v5059, 4294901760
    %5452 = vmatpush.msra.mxu0 %v5451
    %v5453 = vand.u32 %v5058, 4294901760
    %5454 = vmatpush.msra.mxu0 %v5453
    %v5455 = vand.u32 %v5057, 4294901760
    %5456 = vmatpush.msra.mxu0 %v5455
    %v5457 = vand.u32 %v5056, 4294901760
    %5458 = vmatpush.msra.mxu0 %v5457
    %v5459 = vand.u32 %v5055, 4294901760
    %5460 = vmatpush.msra.mxu0 %v5459
    %v5461 = vand.u32 %v5054, 4294901760
    %5462 = vmatpush.msra.mxu0 %v5461
    %v5463 = vand.u32 %v5053, 4294901760
    %5464 = vmatpush.msra.mxu0 %v5463
    %v5465 = vand.u32 %v5052, 4294901760
    %5466 = vmatpush.msra.mxu0 %v5465
    %v5467 = vand.u32 %v5051, 4294901760
    %5468 = vmatpush.msra.mxu0 %v5467
    %v5469 = vand.u32 %v5050, 4294901760
    %5470 = vmatpush.msra.mxu0 %v5469
    %v5471 = vand.u32 %v5049, 4294901760
    %5472 = vmatpush.msra.mxu0 %v5471
    %v5473 = vand.u32 %v5048, 4294901760
    %5474 = vmatpush.msra.mxu0 %v5473
    %v5475 = vand.u32 %v5047, 4294901760
    %5476 = vmatpush.msra.mxu0 %v5475
    %v5477 = vand.u32 %v5046, 4294901760
    %5478 = vmatpush.msra.mxu0 %v5477
    %v5479 = vand.u32 %v4130, 4294901760
    %5480 = vmatmul.f32.gmra.mxu0 %v5479
    %v5481 = vpop.f32.mrf.mxu0
    %v5482 = vadd.f32 %v5433, %v5481
    %v5483 = vand.u32 %v4134, 4294901760
    %5484 = vmatmul.f32.gmra.mxu0 %v5483
    %v5485 = vpop.f32.mrf.mxu0
    %v5486 = vadd.f32 %v5437, %v5485
    %v5487 = vand.u32 %v4138, 4294901760
    %5488 = vmatmul.f32.gmra.mxu0 %v5487
    %v5489 = vpop.f32.mrf.mxu0
    %v5490 = vadd.f32 %v5441, %v5489
    %v5491 = vand.u32 %v4142, 4294901760
    %5492 = vmatmul.f32.gmra.mxu0 %v5491
    %v5493 = vpop.f32.mrf.mxu0
    %v5494 = vadd.f32 %v5445, %v5493
    %5495 = vdwg.mxu0
    %v5496 = vadd.f32 %v5031, %v5482
    %v5497 = vadd.f32 %v5035, %v5486
    %v5498 = vadd.f32 %v5039, %v5490
    %v5499 = vadd.f32 %v5043, %v5494
    %v5500 = vadd.f32 %v143, %v5496
    %v5501 = vadd.f32 %v144, %v5497
    %v5502 = vadd.f32 %v145, %v5498
    %v5503 = vadd.f32 %v146, %v5499
    %5504 = vst [vmem:[#allocation14] sm:$0xff] %v5500
    %5505 = vst [vmem:[#allocation14 + $0x8] sm:$0xff] %v5501
    %5506 = vst [vmem:[#allocation14 + $0x10] sm:$0xff] %v5502
    %5507 = vst [vmem:[#allocation14 + $0x18] sm:$0xff] %v5503
    // Predicated region
    $region70: #{tpu_custom_call.1} parent=1 // pred_check
      _
    $region71: #{tpu_custom_call.1} parent=1 // pred_check_branch
      %5509 = sbr.rel (0) target = $region73
    $region72: #{tpu_custom_call.1} parent=1 // pred_region
      %5511 = vsyncadd [#allocation4], 0
      %s5512 = sshll.u32 [#allocation14], 4
      %s5513 = int_to_ptr.vmem [resolvable:$true] %s5512
      %s5514 = sshll.u32 %s10, 4
      %s5515 = int_to_ptr.hbm [resolvable:$true] %s5514
      %5520 = dma.vmem_to_hbm [thread:$0]  %s5513, 512, %s5515, [#allocation4], 128, 128, 8
    $region73: #{tpu_custom_call.1} parent=1 // pred_fallthru
      _
    // Predicated region
    $region74: #{tpu_custom_call.1} parent=1 // pred_check
      _
    $region75: #{tpu_custom_call.1} parent=1 // pred_check_branch
      %5522 = sbr.rel (0) target = $region77
    $region76: #{tpu_custom_call.1} parent=1 // pred_region
      %5524 = dma.done [#allocation4], 512
    $region77: #{tpu_custom_call.1} parent=1 // pred_fallthru
      _
    %5525 = vsyncpa [#allocation3], 1
    %5526 = vsyncpa [#allocation6], 1
    %5527 = vsyncpa [#allocation9], 1
    %5528 = vsyncpa [#allocation12], 1
    %5529 = vsyncpa [#allocation4], 1

</llo_original>
